<compile_context>
chip_gen: v6e
topology: v6e:2x2x1
jax: 0.10.0
libtpu: 0.0.40
codegen_flags: <defaults>
</compile_context>

<pallas_src>
import jax
import jax.numpy as jnp
from jax.experimental import pallas as pl
from jax.experimental.pallas import tpu as pltpu

NOISE = 72                  # noise_channle
NOISE_PAD = 128             # zero-padded K for the first matmul (tile-aligned)
HID = 256                   # linear_size
NUM_STAGE = 2
NUM_LAYERS = 2 * NUM_STAGE  # each "Linear" stage = 2x (linear + BN + LeakyReLU)
HEAD_PAD = 128              # lane-dense output width
BN_EPS = 1e-5
LRELU_SLOPE = 0.01          # nn.LeakyReLU default negative_slope
VMEM_LIMIT = 32 * 1024 * 1024


# --------------------------------------------------------------------------- #
# Shared in-kernel math
# --------------------------------------------------------------------------- #
def _bn_lrelu(x, gamma, beta):
    """BatchNorm1d (training mode, batch stats, biased var) + LeakyReLU, in f32.
    Two-pass variance: no E[x^2]-E[x]^2 cancellation."""
    mean = jnp.mean(x, axis=0, keepdims=True)
    d = x - mean
    var = jnp.mean(d * d, axis=0, keepdims=True)
    y = d * jax.lax.rsqrt(var + BN_EPS) * gamma + beta
    return jnp.where(y >= 0, y, LRELU_SLOPE * y)


def _mlp_chain(noise, w1, g1, be1, load_w, load_g, load_be):
    """noise -> w1 -> BN -> LeakyReLU -> 4x (linear -> BN -> LeakyReLU).
    bf16 MXU operands, f32 accumulation; BN / LeakyReLU math stays f32.
    Linear biases are omitted: they cancel exactly in training-mode BN."""
    x = jnp.dot(noise, w1, preferred_element_type=jnp.float32)
    x = _bn_lrelu(x, g1, be1)
    for l in range(NUM_LAYERS):            # statically unrolled (4 layers)
        x = jnp.dot(x.astype(jnp.bfloat16), load_w(l),
                    preferred_element_type=jnp.float32)
        x = _bn_lrelu(x, load_g(l), load_be(l))
    return x                                # (n, HID) f32


# --------------------------------------------------------------------------- #
# Kernel A: grid=(2,) -- one branch per grid step (multi-TC chips: v7x/v4/v5p).
# --------------------------------------------------------------------------- #
def _branch_kernel(noise_ref, w1_ref, g1_ref, be1_ref,
                   ws_ref, gs_ref, bes_ref,
                   hw_ref, hb_ref, out_ref):
    x = _mlp_chain(noise_ref[...], w1_ref[...], g1_ref[...], be1_ref[...],
                   lambda l: ws_ref[l], lambda l: gs_ref[l], lambda l: bes_ref[l])

    is_r = pl.program_id(0) == 0

    @pl.when(is_r)
    def _():
        # Branch R: exact f32 pass-through of the first 128 features
        # (only [:, :7] consumed downstream; w2_R is unused in the torch forward).
        out_ref[...] = x[:, :HEAD_PAD]

    @pl.when(jnp.logical_not(is_r))
    def _():
        # Branch T: bf16 w2_T head (zero-padded to 128 lanes), f32 accumulation.
        out_ref[...] = (jnp.dot(x.astype(jnp.bfloat16), hw_ref[...],
                                preferred_element_type=jnp.float32)
                        + hb_ref[...])


# --------------------------------------------------------------------------- #
# Kernel B: single grid step, both branches in one body (single-TC v5e/v6e).
# --------------------------------------------------------------------------- #
def _fused_kernel(noise_ref, w1_ref, g1_ref, be1_ref,
                  ws_ref, gs_ref, bes_ref,
                  hw_ref, hb_ref, out_ref):
    def chain(b):
        return _mlp_chain(noise_ref[b], w1_ref[b], g1_ref[b], be1_ref[b],
                          lambda l: ws_ref[b, l],
                          lambda l: gs_ref[b, l],
                          lambda l: bes_ref[b, l])

    x_r = chain(0)
    out_ref[0] = x_r[:, :HEAD_PAD]          # exact f32 pass-through (R branch)

    x_t = chain(1)
    out_ref[1] = (jnp.dot(x_t.astype(jnp.bfloat16), hw_ref[...],
                          preferred_element_type=jnp.float32)
                  + hb_ref[...])


# --------------------------------------------------------------------------- #
# Launch plumbing
# --------------------------------------------------------------------------- #
def _branch_spec(shape):
    """Block = one branch (leading axis squeezed), full extent on the rest."""
    ndim_rest = len(shape) - 1
    return pl.BlockSpec((None,) + tuple(shape[1:]),
                        lambda i, _n=ndim_rest: (i,) + (0,) * _n)


def _use_per_core_branch_grid():
    """True on chips with 2 TensorCores per chip (megacore / v7x)."""
    try:
        kind = jax.devices()[0].device_kind.lower()
    except Exception:
        return False
    return ("7" in kind) or ("v4" in kind) or ("v5p" in kind)


def fused_branches(noise2, params):
    """noise2: (2, n, NOISE_PAD) bf16 -> (2, n, HEAD_PAD) f32.
    Branch 0: R-branch features (first 128 of 256).  Branch 1: w2_T head output."""
    n = noise2.shape[1]
    w1, g1, be1, ws, gs, bes, head_w, head_b = params
    out_shape = jax.ShapeDtypeStruct((2, n, HEAD_PAD), jnp.float32)

    if _use_per_core_branch_grid():
        # One branch per TensorCore (grid=(2,), "parallel").  The head weight is a
        # constant block (same index both steps) -> fetched once, not stacked.
        branch_args = (noise2, w1, g1, be1, ws, gs, bes)
        in_specs = [_branch_spec(a.shape) for a in branch_args] + [
            pl.BlockSpec(head_w.shape, lambda i: (0, 0)),
            pl.BlockSpec(head_b.shape, lambda i: (0, 0)),
        ]
        return pl.pallas_call(
            _branch_kernel,
            out_shape=out_shape,
            grid=(2,),
            in_specs=in_specs,
            out_specs=_branch_spec((2, n, HEAD_PAD)),
            compiler_params=pltpu.CompilerParams(
                dimension_semantics=("parallel",),
                vmem_limit_bytes=VMEM_LIMIT),
        )(*branch_args, head_w, head_b)

    # Single-TC chips: both branches in ONE kernel invocation (no 2nd grid-step
    # overhead; the two independent chains interleave for ILP).
    return pl.pallas_call(
        _fused_kernel,
        out_shape=out_shape,
        compiler_params=pltpu.CompilerParams(vmem_limit_bytes=VMEM_LIMIT),
    )(noise2, w1, g1, be1, ws, gs, bes, head_w, head_b)


# --------------------------------------------------------------------------- #
# Glue: Rodrigues (pytorch3d.axis_angle_to_matrix equivalent) -- tiny, plain JAX.
# --------------------------------------------------------------------------- #
def axis_angle_to_matrix(v, eps=1e-8):
    angle = jnp.linalg.norm(v, axis=-1, keepdims=True)        # (n, 1)
    k = v / jnp.maximum(angle, eps)                           # unit axis
    kx, ky, kz = k[:, 0], k[:, 1], k[:, 2]
    zero = jnp.zeros_like(kx)
    K = jnp.stack([jnp.stack([zero, -kz, ky], -1),
                   jnp.stack([kz, zero, -kx], -1),
                   jnp.stack([-ky, kx, zero], -1)], axis=-2)  # (n, 3, 3)
    s = jnp.sin(angle)[..., None]
    c = jnp.cos(angle)[..., None]
    eye = jnp.eye(3, dtype=v.dtype)[None]
    kkT = k[:, :, None] * k[:, None, :]
    return eye * c + s * K + (1.0 - c) * kkT


# --------------------------------------------------------------------------- #
# Parameter init (deterministic, synthetic), stacked on a leading branch axis.
# Linear biases are omitted (exactly cancelled by training-mode BatchNorm).
# --------------------------------------------------------------------------- #
def _init_branch(key):
    ks = jax.random.split(key, 1 + NUM_LAYERS)
    w1 = jax.random.normal(ks[0], (NOISE, HID), jnp.float32) / jnp.sqrt(NOISE)
    w1 = jnp.concatenate(
        [w1, jnp.zeros((NOISE_PAD - NOISE, HID), jnp.float32)], axis=0)  # pad K rows
    g1 = jnp.ones((1, HID), jnp.float32)
    be1 = jnp.zeros((1, HID), jnp.float32)
    ws = jnp.stack([jax.random.normal(ks[1 + l], (HID, HID), jnp.float32)
                    / jnp.sqrt(HID) for l in range(NUM_LAYERS)])
    gs = jnp.ones((NUM_LAYERS, 1, HID), jnp.float32)
    bes = jnp.zeros((NUM_LAYERS, 1, HID), jnp.float32)
    return w1, g1, be1, ws, gs, bes


def init_params(key):
    kR, kT, kW2, kB2 = jax.random.split(key, 4)
    pR = _init_branch(kR)
    pT = _init_branch(kT)
    w1, g1, be1, ws, gs, bes = tuple(jnp.stack([a, b]) for a, b in zip(pR, pT))

    # bf16 MXU weights (f32 accumulation in-kernel); BN params stay f32.
    w1 = w1.astype(jnp.bfloat16)
    ws = ws.astype(jnp.bfloat16)

    # Branch-T head only (branch R is a direct slice store in-kernel):
    # w2_T (256 -> 3) zero-padded to 128 lanes, bf16; bias stays f32 (512 B).
    w2_T = jax.random.normal(kW2, (HID, 3), jnp.float32) / jnp.sqrt(HID)
    b2_T = jax.random.normal(kB2, (3,), jnp.float32) * 0.01
    head_w = jnp.pad(w2_T, ((0, 0), (0, HEAD_PAD - 3))).astype(jnp.bfloat16)
    head_b = jnp.pad(b2_T, (0, HEAD_PAD - 3))[None, :].astype(jnp.float32)
    return (w1, g1, be1, ws, gs, bes, head_w, head_b)


# --------------------------------------------------------------------------- #
# Forward
# --------------------------------------------------------------------------- #
@jax.jit
def rt_generator_forward(inputs_3d, params, key):
    n = inputs_3d.shape[0]
    k_noise, k_ax = jax.random.split(key, 2)

    # torch.randn(n, 72) per branch, produced directly as a bf16 (2, n, 128) slab.
    # Lanes 72..127 multiply zero-padded w1 rows, so they may carry any samples.
    noise = jax.random.normal(k_noise, (2, n, NOISE_PAD), jnp.bfloat16)

    feats = fused_branches(noise, params)      # (2, n, HEAD_PAD) — one Pallas call
    r = feats[0]                               # R-branch features (first 128 of 256)
    t = feats[1, :, :3]                        # T-branch w2_T head output

    # --- rotation: axis-angle sampled around predicted mean/std (torch.normal) ---
    r_mean = r[:, :3]
    r_std = r[:, 3:6] * r[:, 3:6]
    r_axis = r_mean + r_std * jax.random.normal(k_ax, (n, 3), jnp.float32)
    norm = jnp.linalg.norm(r_axis, axis=-1, keepdims=True)
    r_axis = r_axis / jnp.maximum(norm, 1e-8)  # eps guard against zero-length axis
    r_axis = r_axis * r[:, 6:7]
    rM = axis_angle_to_matrix(r_axis)          # (n, 3, 3)

    # --- translation ---
    t = t.at[:, 2].set(t[:, 2] * t[:, 2])      # t[:, 2] = t[:, 2] ** 2

    # --- root-center, rotate, translate (tiny lane-3 math: plain XLA) ---
    centered = inputs_3d - inputs_3d[:, :1, :]
    out = jnp.einsum('bij,bkj->bki', rM, centered) + t[:, None, :]
    return rM, t, out


if __name__ == "__main__":
    key = jax.random.PRNGKey(0)
    k_params, k_x, k_fwd = jax.random.split(key, 3)

    n, J = 8, 16
    inputs_3d = jax.random.normal(k_x, (n, J, 3), jnp.float32)
    params = init_params(k_params)

    rM, t, out = rt_generator_forward(inputs_3d, params, k_fwd)
    jax.block_until_ready((rM, t, out))

    assert rM.shape == (n, 3, 3)
    assert t.shape == (n, 3)
    assert out.shape == (n, J, 3)
    assert bool(jnp.all(jnp.isfinite(out)))
    assert bool(jnp.all(jnp.isfinite(rM)))
    print("KERNEL_OK")
</pallas_src>

<mosaic_0001>
module attributes {stable_mosaic.version = 11 : i64} {
  func.func @_fused_kernel(%arg0: memref<2x8x128xbf16, #tpu.memory_space<vmem>>, %arg1: memref<2x128x256xbf16, #tpu.memory_space<vmem>>, %arg2: memref<2x1x256xf32, #tpu.memory_space<vmem>>, %arg3: memref<2x1x256xf32, #tpu.memory_space<vmem>>, %arg4: memref<2x4x256x256xbf16, #tpu.memory_space<vmem>>, %arg5: memref<2x4x1x256xf32, #tpu.memory_space<vmem>>, %arg6: memref<2x4x1x256xf32, #tpu.memory_space<vmem>>, %arg7: memref<256x128xbf16, #tpu.memory_space<vmem>>, %arg8: memref<1x128xf32, #tpu.memory_space<vmem>>, %arg9: memref<2x8x128xf32, #tpu.memory_space<vmem>>) attributes {dimension_semantics = [], scalar_prefetch = 0 : i64, scratch_operands = 0 : i64, tpu.core_type = #tpu.core_type<tc>} {
    %c0 = arith.constant 0 : index
    %c0_0 = arith.constant 0 : index
    %c0_1 = arith.constant 0 : index
    %0 = vector.load %arg0[%c0, %c0_0, %c0_1] : memref<2x8x128xbf16, #tpu.memory_space<vmem>>, vector<1x8x128xbf16>
    %1 = vector.shape_cast %0 : vector<1x8x128xbf16> to vector<8x128xbf16>
    %c0_2 = arith.constant 0 : index
    %c0_3 = arith.constant 0 : index
    %c0_4 = arith.constant 0 : index
    %2 = vector.load %arg1[%c0_2, %c0_3, %c0_4] : memref<2x128x256xbf16, #tpu.memory_space<vmem>>, vector<1x128x256xbf16>
    %3 = vector.shape_cast %2 : vector<1x128x256xbf16> to vector<128x256xbf16>
    %c0_5 = arith.constant 0 : index
    %c0_6 = arith.constant 0 : index
    %c0_7 = arith.constant 0 : index
    %4 = vector.load %arg2[%c0_5, %c0_6, %c0_7] : memref<2x1x256xf32, #tpu.memory_space<vmem>>, vector<1x1x256xf32>
    %5 = vector.shape_cast %4 : vector<1x1x256xf32> to vector<1x256xf32>
    %c0_8 = arith.constant 0 : index
    %c0_9 = arith.constant 0 : index
    %c0_10 = arith.constant 0 : index
    %6 = vector.load %arg3[%c0_8, %c0_9, %c0_10] : memref<2x1x256xf32, #tpu.memory_space<vmem>>, vector<1x1x256xf32>
    %7 = vector.shape_cast %6 : vector<1x1x256xf32> to vector<1x256xf32>
    %cst = arith.constant dense<0.000000e+00> : vector<8x256xf32>
    %8 = tpu.matmul %1, %3, %cst {dimension_numbers = #tpu.dot_dimension_numbers<[1], [0], [0], [1], [0, 0, 1, 1], [], []>} : vector<8x128xbf16>, vector<128x256xbf16>, vector<8x256xf32> -> vector<8x256xf32>
    %cst_11 = arith.constant dense<0.000000e+00> : vector<256xf32>
    %9 = vector.multi_reduction <add>, %8, %cst_11 [0] : vector<8x256xf32> to vector<256xf32>
    %10 = vector.shape_cast %9 : vector<256xf32> to vector<1x256xf32>
    %cst_12 = arith.constant 8.000000e+00 : f32
    %11 = vector.broadcast %cst_12 : f32 to vector<1x256xf32>
    %12 = arith.divf %10, %11 : vector<1x256xf32>
    %13 = vector.broadcast %12 : vector<1x256xf32> to vector<8x256xf32>
    %14 = arith.subf %8, %13 : vector<8x256xf32>
    %15 = arith.mulf %14, %14 : vector<8x256xf32>
    %cst_13 = arith.constant dense<0.000000e+00> : vector<256xf32>
    %16 = vector.multi_reduction <add>, %15, %cst_13 [0] : vector<8x256xf32> to vector<256xf32>
    %17 = vector.shape_cast %16 : vector<256xf32> to vector<1x256xf32>
    %cst_14 = arith.constant 8.000000e+00 : f32
    %18 = vector.broadcast %cst_14 : f32 to vector<1x256xf32>
    %19 = arith.divf %17, %18 : vector<1x256xf32>
    %cst_15 = arith.constant 9.99999974E-6 : f32
    %20 = vector.broadcast %cst_15 : f32 to vector<1x256xf32>
    %21 = arith.addf %19, %20 : vector<1x256xf32>
    %22 = math.rsqrt %21 : vector<1x256xf32>
    %23 = vector.broadcast %22 : vector<1x256xf32> to vector<8x256xf32>
    %24 = arith.mulf %14, %23 : vector<8x256xf32>
    %25 = vector.broadcast %5 : vector<1x256xf32> to vector<8x256xf32>
    %26 = arith.mulf %24, %25 : vector<8x256xf32>
    %27 = vector.broadcast %7 : vector<1x256xf32> to vector<8x256xf32>
    %28 = arith.addf %26, %27 : vector<8x256xf32>
    %cst_16 = arith.constant 0.000000e+00 : f32
    %29 = vector.broadcast %cst_16 : f32 to vector<8x256xf32>
    %30 = arith.cmpf oge, %28, %29 : vector<8x256xf32>
    %cst_17 = arith.constant 0.00999999977 : f32
    %31 = vector.broadcast %cst_17 : f32 to vector<8x256xf32>
    %32 = arith.mulf %31, %28 : vector<8x256xf32>
    %33 = arith.select %30, %28, %32 : vector<8x256xi1>, vector<8x256xf32>
    %34 = arith.truncf %33 : vector<8x256xf32> to vector<8x256xbf16>
    %c0_18 = arith.constant 0 : index
    %c0_19 = arith.constant 0 : index
    %c0_20 = arith.constant 0 : index
    %c0_21 = arith.constant 0 : index
    %35 = vector.load %arg4[%c0_18, %c0_19, %c0_20, %c0_21] : memref<2x4x256x256xbf16, #tpu.memory_space<vmem>>, vector<1x1x256x256xbf16>
    %36 = vector.shape_cast %35 : vector<1x1x256x256xbf16> to vector<256x256xbf16>
    %cst_22 = arith.constant dense<0.000000e+00> : vector<8x256xf32>
    %37 = tpu.matmul %34, %36, %cst_22 {dimension_numbers = #tpu.dot_dimension_numbers<[1], [0], [0], [1], [0, 0, 1, 1], [], []>} : vector<8x256xbf16>, vector<256x256xbf16>, vector<8x256xf32> -> vector<8x256xf32>
    %c0_23 = arith.constant 0 : index
    %c0_24 = arith.constant 0 : index
    %c0_25 = arith.constant 0 : index
    %c0_26 = arith.constant 0 : index
    %38 = vector.load %arg5[%c0_23, %c0_24, %c0_25, %c0_26] : memref<2x4x1x256xf32, #tpu.memory_space<vmem>>, vector<1x1x1x256xf32>
    %39 = vector.shape_cast %38 : vector<1x1x1x256xf32> to vector<1x256xf32>
    %c0_27 = arith.constant 0 : index
    %c0_28 = arith.constant 0 : index
    %c0_29 = arith.constant 0 : index
    %c0_30 = arith.constant 0 : index
    %40 = vector.load %arg6[%c0_27, %c0_28, %c0_29, %c0_30] : memref<2x4x1x256xf32, #tpu.memory_space<vmem>>, vector<1x1x1x256xf32>
    %41 = vector.shape_cast %40 : vector<1x1x1x256xf32> to vector<1x256xf32>
    %cst_31 = arith.constant dense<0.000000e+00> : vector<256xf32>
    %42 = vector.multi_reduction <add>, %37, %cst_31 [0] : vector<8x256xf32> to vector<256xf32>
    %43 = vector.shape_cast %42 : vector<256xf32> to vector<1x256xf32>
    %cst_32 = arith.constant 8.000000e+00 : f32
    %44 = vector.broadcast %cst_32 : f32 to vector<1x256xf32>
    %45 = arith.divf %43, %44 : vector<1x256xf32>
    %46 = vector.broadcast %45 : vector<1x256xf32> to vector<8x256xf32>
    %47 = arith.subf %37, %46 : vector<8x256xf32>
    %48 = arith.mulf %47, %47 : vector<8x256xf32>
    %cst_33 = arith.constant dense<0.000000e+00> : vector<256xf32>
    %49 = vector.multi_reduction <add>, %48, %cst_33 [0] : vector<8x256xf32> to vector<256xf32>
    %50 = vector.shape_cast %49 : vector<256xf32> to vector<1x256xf32>
    %cst_34 = arith.constant 8.000000e+00 : f32
    %51 = vector.broadcast %cst_34 : f32 to vector<1x256xf32>
    %52 = arith.divf %50, %51 : vector<1x256xf32>
    %cst_35 = arith.constant 9.99999974E-6 : f32
    %53 = vector.broadcast %cst_35 : f32 to vector<1x256xf32>
    %54 = arith.addf %52, %53 : vector<1x256xf32>
    %55 = math.rsqrt %54 : vector<1x256xf32>
    %56 = vector.broadcast %55 : vector<1x256xf32> to vector<8x256xf32>
    %57 = arith.mulf %47, %56 : vector<8x256xf32>
    %58 = vector.broadcast %39 : vector<1x256xf32> to vector<8x256xf32>
    %59 = arith.mulf %57, %58 : vector<8x256xf32>
    %60 = vector.broadcast %41 : vector<1x256xf32> to vector<8x256xf32>
    %61 = arith.addf %59, %60 : vector<8x256xf32>
    %cst_36 = arith.constant 0.000000e+00 : f32
    %62 = vector.broadcast %cst_36 : f32 to vector<8x256xf32>
    %63 = arith.cmpf oge, %61, %62 : vector<8x256xf32>
    %cst_37 = arith.constant 0.00999999977 : f32
    %64 = vector.broadcast %cst_37 : f32 to vector<8x256xf32>
    %65 = arith.mulf %64, %61 : vector<8x256xf32>
    %66 = arith.select %63, %61, %65 : vector<8x256xi1>, vector<8x256xf32>
    %67 = arith.truncf %66 : vector<8x256xf32> to vector<8x256xbf16>
    %c0_38 = arith.constant 0 : index
    %c1 = arith.constant 1 : index
    %c0_39 = arith.constant 0 : index
    %c0_40 = arith.constant 0 : index
    %68 = vector.load %arg4[%c0_38, %c1, %c0_39, %c0_40] : memref<2x4x256x256xbf16, #tpu.memory_space<vmem>>, vector<1x1x256x256xbf16>
    %69 = vector.shape_cast %68 : vector<1x1x256x256xbf16> to vector<256x256xbf16>
    %cst_41 = arith.constant dense<0.000000e+00> : vector<8x256xf32>
    %70 = tpu.matmul %67, %69, %cst_41 {dimension_numbers = #tpu.dot_dimension_numbers<[1], [0], [0], [1], [0, 0, 1, 1], [], []>} : vector<8x256xbf16>, vector<256x256xbf16>, vector<8x256xf32> -> vector<8x256xf32>
    %c0_42 = arith.constant 0 : index
    %c1_43 = arith.constant 1 : index
    %c0_44 = arith.constant 0 : index
    %c0_45 = arith.constant 0 : index
    %71 = vector.load %arg5[%c0_42, %c1_43, %c0_44, %c0_45] : memref<2x4x1x256xf32, #tpu.memory_space<vmem>>, vector<1x1x1x256xf32>
    %72 = vector.shape_cast %71 : vector<1x1x1x256xf32> to vector<1x256xf32>
    %c0_46 = arith.constant 0 : index
    %c1_47 = arith.constant 1 : index
    %c0_48 = arith.constant 0 : index
    %c0_49 = arith.constant 0 : index
    %73 = vector.load %arg6[%c0_46, %c1_47, %c0_48, %c0_49] : memref<2x4x1x256xf32, #tpu.memory_space<vmem>>, vector<1x1x1x256xf32>
    %74 = vector.shape_cast %73 : vector<1x1x1x256xf32> to vector<1x256xf32>
    %cst_50 = arith.constant dense<0.000000e+00> : vector<256xf32>
    %75 = vector.multi_reduction <add>, %70, %cst_50 [0] : vector<8x256xf32> to vector<256xf32>
    %76 = vector.shape_cast %75 : vector<256xf32> to vector<1x256xf32>
    %cst_51 = arith.constant 8.000000e+00 : f32
    %77 = vector.broadcast %cst_51 : f32 to vector<1x256xf32>
    %78 = arith.divf %76, %77 : vector<1x256xf32>
    %79 = vector.broadcast %78 : vector<1x256xf32> to vector<8x256xf32>
    %80 = arith.subf %70, %79 : vector<8x256xf32>
    %81 = arith.mulf %80, %80 : vector<8x256xf32>
    %cst_52 = arith.constant dense<0.000000e+00> : vector<256xf32>
    %82 = vector.multi_reduction <add>, %81, %cst_52 [0] : vector<8x256xf32> to vector<256xf32>
    %83 = vector.shape_cast %82 : vector<256xf32> to vector<1x256xf32>
    %cst_53 = arith.constant 8.000000e+00 : f32
    %84 = vector.broadcast %cst_53 : f32 to vector<1x256xf32>
    %85 = arith.divf %83, %84 : vector<1x256xf32>
    %cst_54 = arith.constant 9.99999974E-6 : f32
    %86 = vector.broadcast %cst_54 : f32 to vector<1x256xf32>
    %87 = arith.addf %85, %86 : vector<1x256xf32>
    %88 = math.rsqrt %87 : vector<1x256xf32>
    %89 = vector.broadcast %88 : vector<1x256xf32> to vector<8x256xf32>
    %90 = arith.mulf %80, %89 : vector<8x256xf32>
    %91 = vector.broadcast %72 : vector<1x256xf32> to vector<8x256xf32>
    %92 = arith.mulf %90, %91 : vector<8x256xf32>
    %93 = vector.broadcast %74 : vector<1x256xf32> to vector<8x256xf32>
    %94 = arith.addf %92, %93 : vector<8x256xf32>
    %cst_55 = arith.constant 0.000000e+00 : f32
    %95 = vector.broadcast %cst_55 : f32 to vector<8x256xf32>
    %96 = arith.cmpf oge, %94, %95 : vector<8x256xf32>
    %cst_56 = arith.constant 0.00999999977 : f32
    %97 = vector.broadcast %cst_56 : f32 to vector<8x256xf32>
    %98 = arith.mulf %97, %94 : vector<8x256xf32>
    %99 = arith.select %96, %94, %98 : vector<8x256xi1>, vector<8x256xf32>
    %100 = arith.truncf %99 : vector<8x256xf32> to vector<8x256xbf16>
    %c0_57 = arith.constant 0 : index
    %c2 = arith.constant 2 : index
    %c0_58 = arith.constant 0 : index
    %c0_59 = arith.constant 0 : index
    %101 = vector.load %arg4[%c0_57, %c2, %c0_58, %c0_59] : memref<2x4x256x256xbf16, #tpu.memory_space<vmem>>, vector<1x1x256x256xbf16>
    %102 = vector.shape_cast %101 : vector<1x1x256x256xbf16> to vector<256x256xbf16>
    %cst_60 = arith.constant dense<0.000000e+00> : vector<8x256xf32>
    %103 = tpu.matmul %100, %102, %cst_60 {dimension_numbers = #tpu.dot_dimension_numbers<[1], [0], [0], [1], [0, 0, 1, 1], [], []>} : vector<8x256xbf16>, vector<256x256xbf16>, vector<8x256xf32> -> vector<8x256xf32>
    %c0_61 = arith.constant 0 : index
    %c2_62 = arith.constant 2 : index
    %c0_63 = arith.constant 0 : index
    %c0_64 = arith.constant 0 : index
    %104 = vector.load %arg5[%c0_61, %c2_62, %c0_63, %c0_64] : memref<2x4x1x256xf32, #tpu.memory_space<vmem>>, vector<1x1x1x256xf32>
    %105 = vector.shape_cast %104 : vector<1x1x1x256xf32> to vector<1x256xf32>
    %c0_65 = arith.constant 0 : index
    %c2_66 = arith.constant 2 : index
    %c0_67 = arith.constant 0 : index
    %c0_68 = arith.constant 0 : index
    %106 = vector.load %arg6[%c0_65, %c2_66, %c0_67, %c0_68] : memref<2x4x1x256xf32, #tpu.memory_space<vmem>>, vector<1x1x1x256xf32>
    %107 = vector.shape_cast %106 : vector<1x1x1x256xf32> to vector<1x256xf32>
    %cst_69 = arith.constant dense<0.000000e+00> : vector<256xf32>
    %108 = vector.multi_reduction <add>, %103, %cst_69 [0] : vector<8x256xf32> to vector<256xf32>
    %109 = vector.shape_cast %108 : vector<256xf32> to vector<1x256xf32>
    %cst_70 = arith.constant 8.000000e+00 : f32
    %110 = vector.broadcast %cst_70 : f32 to vector<1x256xf32>
    %111 = arith.divf %109, %110 : vector<1x256xf32>
    %112 = vector.broadcast %111 : vector<1x256xf32> to vector<8x256xf32>
    %113 = arith.subf %103, %112 : vector<8x256xf32>
    %114 = arith.mulf %113, %113 : vector<8x256xf32>
    %cst_71 = arith.constant dense<0.000000e+00> : vector<256xf32>
    %115 = vector.multi_reduction <add>, %114, %cst_71 [0] : vector<8x256xf32> to vector<256xf32>
    %116 = vector.shape_cast %115 : vector<256xf32> to vector<1x256xf32>
    %cst_72 = arith.constant 8.000000e+00 : f32
    %117 = vector.broadcast %cst_72 : f32 to vector<1x256xf32>
    %118 = arith.divf %116, %117 : vector<1x256xf32>
    %cst_73 = arith.constant 9.99999974E-6 : f32
    %119 = vector.broadcast %cst_73 : f32 to vector<1x256xf32>
    %120 = arith.addf %118, %119 : vector<1x256xf32>
    %121 = math.rsqrt %120 : vector<1x256xf32>
    %122 = vector.broadcast %121 : vector<1x256xf32> to vector<8x256xf32>
    %123 = arith.mulf %113, %122 : vector<8x256xf32>
    %124 = vector.broadcast %105 : vector<1x256xf32> to vector<8x256xf32>
    %125 = arith.mulf %123, %124 : vector<8x256xf32>
    %126 = vector.broadcast %107 : vector<1x256xf32> to vector<8x256xf32>
    %127 = arith.addf %125, %126 : vector<8x256xf32>
    %cst_74 = arith.constant 0.000000e+00 : f32
    %128 = vector.broadcast %cst_74 : f32 to vector<8x256xf32>
    %129 = arith.cmpf oge, %127, %128 : vector<8x256xf32>
    %cst_75 = arith.constant 0.00999999977 : f32
    %130 = vector.broadcast %cst_75 : f32 to vector<8x256xf32>
    %131 = arith.mulf %130, %127 : vector<8x256xf32>
    %132 = arith.select %129, %127, %131 : vector<8x256xi1>, vector<8x256xf32>
    %133 = arith.truncf %132 : vector<8x256xf32> to vector<8x256xbf16>
    %c0_76 = arith.constant 0 : index
    %c3 = arith.constant 3 : index
    %c0_77 = arith.constant 0 : index
    %c0_78 = arith.constant 0 : index
    %134 = vector.load %arg4[%c0_76, %c3, %c0_77, %c0_78] : memref<2x4x256x256xbf16, #tpu.memory_space<vmem>>, vector<1x1x256x256xbf16>
    %135 = vector.shape_cast %134 : vector<1x1x256x256xbf16> to vector<256x256xbf16>
    %cst_79 = arith.constant dense<0.000000e+00> : vector<8x256xf32>
    %136 = tpu.matmul %133, %135, %cst_79 {dimension_numbers = #tpu.dot_dimension_numbers<[1], [0], [0], [1], [0, 0, 1, 1], [], []>} : vector<8x256xbf16>, vector<256x256xbf16>, vector<8x256xf32> -> vector<8x256xf32>
    %c0_80 = arith.constant 0 : index
    %c3_81 = arith.constant 3 : index
    %c0_82 = arith.constant 0 : index
    %c0_83 = arith.constant 0 : index
    %137 = vector.load %arg5[%c0_80, %c3_81, %c0_82, %c0_83] : memref<2x4x1x256xf32, #tpu.memory_space<vmem>>, vector<1x1x1x256xf32>
    %138 = vector.shape_cast %137 : vector<1x1x1x256xf32> to vector<1x256xf32>
    %c0_84 = arith.constant 0 : index
    %c3_85 = arith.constant 3 : index
    %c0_86 = arith.constant 0 : index
    %c0_87 = arith.constant 0 : index
    %139 = vector.load %arg6[%c0_84, %c3_85, %c0_86, %c0_87] : memref<2x4x1x256xf32, #tpu.memory_space<vmem>>, vector<1x1x1x256xf32>
    %140 = vector.shape_cast %139 : vector<1x1x1x256xf32> to vector<1x256xf32>
    %cst_88 = arith.constant dense<0.000000e+00> : vector<256xf32>
    %141 = vector.multi_reduction <add>, %136, %cst_88 [0] : vector<8x256xf32> to vector<256xf32>
    %142 = vector.shape_cast %141 : vector<256xf32> to vector<1x256xf32>
    %cst_89 = arith.constant 8.000000e+00 : f32
    %143 = vector.broadcast %cst_89 : f32 to vector<1x256xf32>
    %144 = arith.divf %142, %143 : vector<1x256xf32>
    %145 = vector.broadcast %144 : vector<1x256xf32> to vector<8x256xf32>
    %146 = arith.subf %136, %145 : vector<8x256xf32>
    %147 = arith.mulf %146, %146 : vector<8x256xf32>
    %cst_90 = arith.constant dense<0.000000e+00> : vector<256xf32>
    %148 = vector.multi_reduction <add>, %147, %cst_90 [0] : vector<8x256xf32> to vector<256xf32>
    %149 = vector.shape_cast %148 : vector<256xf32> to vector<1x256xf32>
    %cst_91 = arith.constant 8.000000e+00 : f32
    %150 = vector.broadcast %cst_91 : f32 to vector<1x256xf32>
    %151 = arith.divf %149, %150 : vector<1x256xf32>
    %cst_92 = arith.constant 9.99999974E-6 : f32
    %152 = vector.broadcast %cst_92 : f32 to vector<1x256xf32>
    %153 = arith.addf %151, %152 : vector<1x256xf32>
    %154 = math.rsqrt %153 : vector<1x256xf32>
    %155 = vector.broadcast %154 : vector<1x256xf32> to vector<8x256xf32>
    %156 = arith.mulf %146, %155 : vector<8x256xf32>
    %157 = vector.broadcast %138 : vector<1x256xf32> to vector<8x256xf32>
    %158 = arith.mulf %156, %157 : vector<8x256xf32>
    %159 = vector.broadcast %140 : vector<1x256xf32> to vector<8x256xf32>
    %160 = arith.addf %158, %159 : vector<8x256xf32>
    %cst_93 = arith.constant 0.000000e+00 : f32
    %161 = vector.broadcast %cst_93 : f32 to vector<8x256xf32>
    %162 = arith.cmpf oge, %160, %161 : vector<8x256xf32>
    %cst_94 = arith.constant 0.00999999977 : f32
    %163 = vector.broadcast %cst_94 : f32 to vector<8x256xf32>
    %164 = arith.mulf %163, %160 : vector<8x256xf32>
    %165 = arith.select %162, %160, %164 : vector<8x256xi1>, vector<8x256xf32>
    %166 = vector.extract_strided_slice %165 {offsets = [0, 0], sizes = [8, 128], strides = [1, 1]} : vector<8x256xf32> to vector<8x128xf32>
    %c0_95 = arith.constant 0 : index
    %c0_96 = arith.constant 0 : index
    %c0_97 = arith.constant 0 : index
    %167 = vector.load %arg9[%c0_95, %c0_96, %c0_97] : memref<2x8x128xf32, #tpu.memory_space<vmem>>, vector<1x8x128xf32>
    %168 = vector.shape_cast %167 : vector<1x8x128xf32> to vector<8x128xf32>
    %169 = vector.shape_cast %166 : vector<8x128xf32> to vector<1x8x128xf32>
    tpu.vector_store %arg9[%c0_95, %c0_96, %c0_97], %169 {strides = array<i32>} : memref<2x8x128xf32, #tpu.memory_space<vmem>>, vector<1x8x128xf32>,
    %c1_98 = arith.constant 1 : index
    %c0_99 = arith.constant 0 : index
    %c0_100 = arith.constant 0 : index
    %170 = vector.load %arg0[%c1_98, %c0_99, %c0_100] : memref<2x8x128xbf16, #tpu.memory_space<vmem>>, vector<1x8x128xbf16>
    %171 = vector.shape_cast %170 : vector<1x8x128xbf16> to vector<8x128xbf16>
    %c1_101 = arith.constant 1 : index
    %c0_102 = arith.constant 0 : index
    %c0_103 = arith.constant 0 : index
    %172 = vector.load %arg1[%c1_101, %c0_102, %c0_103] : memref<2x128x256xbf16, #tpu.memory_space<vmem>>, vector<1x128x256xbf16>
    %173 = vector.shape_cast %172 : vector<1x128x256xbf16> to vector<128x256xbf16>
    %c1_104 = arith.constant 1 : index
    %c0_105 = arith.constant 0 : index
    %c0_106 = arith.constant 0 : index
    %174 = vector.load %arg2[%c1_104, %c0_105, %c0_106] : memref<2x1x256xf32, #tpu.memory_space<vmem>>, vector<1x1x256xf32>
    %175 = vector.shape_cast %174 : vector<1x1x256xf32> to vector<1x256xf32>
    %c1_107 = arith.constant 1 : index
    %c0_108 = arith.constant 0 : index
    %c0_109 = arith.constant 0 : index
    %176 = vector.load %arg3[%c1_107, %c0_108, %c0_109] : memref<2x1x256xf32, #tpu.memory_space<vmem>>, vector<1x1x256xf32>
    %177 = vector.shape_cast %176 : vector<1x1x256xf32> to vector<1x256xf32>
    %cst_110 = arith.constant dense<0.000000e+00> : vector<8x256xf32>
    %178 = tpu.matmul %171, %173, %cst_110 {dimension_numbers = #tpu.dot_dimension_numbers<[1], [0], [0], [1], [0, 0, 1, 1], [], []>} : vector<8x128xbf16>, vector<128x256xbf16>, vector<8x256xf32> -> vector<8x256xf32>
    %cst_111 = arith.constant dense<0.000000e+00> : vector<256xf32>
    %179 = vector.multi_reduction <add>, %178, %cst_111 [0] : vector<8x256xf32> to vector<256xf32>
    %180 = vector.shape_cast %179 : vector<256xf32> to vector<1x256xf32>
    %cst_112 = arith.constant 8.000000e+00 : f32
    %181 = vector.broadcast %cst_112 : f32 to vector<1x256xf32>
    %182 = arith.divf %180, %181 : vector<1x256xf32>
    %183 = vector.broadcast %182 : vector<1x256xf32> to vector<8x256xf32>
    %184 = arith.subf %178, %183 : vector<8x256xf32>
    %185 = arith.mulf %184, %184 : vector<8x256xf32>
    %cst_113 = arith.constant dense<0.000000e+00> : vector<256xf32>
    %186 = vector.multi_reduction <add>, %185, %cst_113 [0] : vector<8x256xf32> to vector<256xf32>
    %187 = vector.shape_cast %186 : vector<256xf32> to vector<1x256xf32>
    %cst_114 = arith.constant 8.000000e+00 : f32
    %188 = vector.broadcast %cst_114 : f32 to vector<1x256xf32>
    %189 = arith.divf %187, %188 : vector<1x256xf32>
    %cst_115 = arith.constant 9.99999974E-6 : f32
    %190 = vector.broadcast %cst_115 : f32 to vector<1x256xf32>
    %191 = arith.addf %189, %190 : vector<1x256xf32>
    %192 = math.rsqrt %191 : vector<1x256xf32>
    %193 = vector.broadcast %192 : vector<1x256xf32> to vector<8x256xf32>
    %194 = arith.mulf %184, %193 : vector<8x256xf32>
    %195 = vector.broadcast %175 : vector<1x256xf32> to vector<8x256xf32>
    %196 = arith.mulf %194, %195 : vector<8x256xf32>
    %197 = vector.broadcast %177 : vector<1x256xf32> to vector<8x256xf32>
    %198 = arith.addf %196, %197 : vector<8x256xf32>
    %cst_116 = arith.constant 0.000000e+00 : f32
    %199 = vector.broadcast %cst_116 : f32 to vector<8x256xf32>
    %200 = arith.cmpf oge, %198, %199 : vector<8x256xf32>
    %cst_117 = arith.constant 0.00999999977 : f32
    %201 = vector.broadcast %cst_117 : f32 to vector<8x256xf32>
    %202 = arith.mulf %201, %198 : vector<8x256xf32>
    %203 = arith.select %200, %198, %202 : vector<8x256xi1>, vector<8x256xf32>
    %204 = arith.truncf %203 : vector<8x256xf32> to vector<8x256xbf16>
    %c1_118 = arith.constant 1 : index
    %c0_119 = arith.constant 0 : index
    %c0_120 = arith.constant 0 : index
    %c0_121 = arith.constant 0 : index
    %205 = vector.load %arg4[%c1_118, %c0_119, %c0_120, %c0_121] : memref<2x4x256x256xbf16, #tpu.memory_space<vmem>>, vector<1x1x256x256xbf16>
    %206 = vector.shape_cast %205 : vector<1x1x256x256xbf16> to vector<256x256xbf16>
    %cst_122 = arith.constant dense<0.000000e+00> : vector<8x256xf32>
    %207 = tpu.matmul %204, %206, %cst_122 {dimension_numbers = #tpu.dot_dimension_numbers<[1], [0], [0], [1], [0, 0, 1, 1], [], []>} : vector<8x256xbf16>, vector<256x256xbf16>, vector<8x256xf32> -> vector<8x256xf32>
    %c1_123 = arith.constant 1 : index
    %c0_124 = arith.constant 0 : index
    %c0_125 = arith.constant 0 : index
    %c0_126 = arith.constant 0 : index
    %208 = vector.load %arg5[%c1_123, %c0_124, %c0_125, %c0_126] : memref<2x4x1x256xf32, #tpu.memory_space<vmem>>, vector<1x1x1x256xf32>
    %209 = vector.shape_cast %208 : vector<1x1x1x256xf32> to vector<1x256xf32>
    %c1_127 = arith.constant 1 : index
    %c0_128 = arith.constant 0 : index
    %c0_129 = arith.constant 0 : index
    %c0_130 = arith.constant 0 : index
    %210 = vector.load %arg6[%c1_127, %c0_128, %c0_129, %c0_130] : memref<2x4x1x256xf32, #tpu.memory_space<vmem>>, vector<1x1x1x256xf32>
    %211 = vector.shape_cast %210 : vector<1x1x1x256xf32> to vector<1x256xf32>
    %cst_131 = arith.constant dense<0.000000e+00> : vector<256xf32>
    %212 = vector.multi_reduction <add>, %207, %cst_131 [0] : vector<8x256xf32> to vector<256xf32>
    %213 = vector.shape_cast %212 : vector<256xf32> to vector<1x256xf32>
    %cst_132 = arith.constant 8.000000e+00 : f32
    %214 = vector.broadcast %cst_132 : f32 to vector<1x256xf32>
    %215 = arith.divf %213, %214 : vector<1x256xf32>
    %216 = vector.broadcast %215 : vector<1x256xf32> to vector<8x256xf32>
    %217 = arith.subf %207, %216 : vector<8x256xf32>
    %218 = arith.mulf %217, %217 : vector<8x256xf32>
    %cst_133 = arith.constant dense<0.000000e+00> : vector<256xf32>
    %219 = vector.multi_reduction <add>, %218, %cst_133 [0] : vector<8x256xf32> to vector<256xf32>
    %220 = vector.shape_cast %219 : vector<256xf32> to vector<1x256xf32>
    %cst_134 = arith.constant 8.000000e+00 : f32
    %221 = vector.broadcast %cst_134 : f32 to vector<1x256xf32>
    %222 = arith.divf %220, %221 : vector<1x256xf32>
    %cst_135 = arith.constant 9.99999974E-6 : f32
    %223 = vector.broadcast %cst_135 : f32 to vector<1x256xf32>
    %224 = arith.addf %222, %223 : vector<1x256xf32>
    %225 = math.rsqrt %224 : vector<1x256xf32>
    %226 = vector.broadcast %225 : vector<1x256xf32> to vector<8x256xf32>
    %227 = arith.mulf %217, %226 : vector<8x256xf32>
    %228 = vector.broadcast %209 : vector<1x256xf32> to vector<8x256xf32>
    %229 = arith.mulf %227, %228 : vector<8x256xf32>
    %230 = vector.broadcast %211 : vector<1x256xf32> to vector<8x256xf32>
    %231 = arith.addf %229, %230 : vector<8x256xf32>
    %cst_136 = arith.constant 0.000000e+00 : f32
    %232 = vector.broadcast %cst_136 : f32 to vector<8x256xf32>
    %233 = arith.cmpf oge, %231, %232 : vector<8x256xf32>
    %cst_137 = arith.constant 0.00999999977 : f32
    %234 = vector.broadcast %cst_137 : f32 to vector<8x256xf32>
    %235 = arith.mulf %234, %231 : vector<8x256xf32>
    %236 = arith.select %233, %231, %235 : vector<8x256xi1>, vector<8x256xf32>
    %237 = arith.truncf %236 : vector<8x256xf32> to vector<8x256xbf16>
    %c1_138 = arith.constant 1 : index
    %c1_139 = arith.constant 1 : index
    %c0_140 = arith.constant 0 : index
    %c0_141 = arith.constant 0 : index
    %238 = vector.load %arg4[%c1_138, %c1_139, %c0_140, %c0_141] : memref<2x4x256x256xbf16, #tpu.memory_space<vmem>>, vector<1x1x256x256xbf16>
    %239 = vector.shape_cast %238 : vector<1x1x256x256xbf16> to vector<256x256xbf16>
    %cst_142 = arith.constant dense<0.000000e+00> : vector<8x256xf32>
    %240 = tpu.matmul %237, %239, %cst_142 {dimension_numbers = #tpu.dot_dimension_numbers<[1], [0], [0], [1], [0, 0, 1, 1], [], []>} : vector<8x256xbf16>, vector<256x256xbf16>, vector<8x256xf32> -> vector<8x256xf32>
    %c1_143 = arith.constant 1 : index
    %c1_144 = arith.constant 1 : index
    %c0_145 = arith.constant 0 : index
    %c0_146 = arith.constant 0 : index
    %241 = vector.load %arg5[%c1_143, %c1_144, %c0_145, %c0_146] : memref<2x4x1x256xf32, #tpu.memory_space<vmem>>, vector<1x1x1x256xf32>
    %242 = vector.shape_cast %241 : vector<1x1x1x256xf32> to vector<1x256xf32>
    %c1_147 = arith.constant 1 : index
    %c1_148 = arith.constant 1 : index
    %c0_149 = arith.constant 0 : index
    %c0_150 = arith.constant 0 : index
    %243 = vector.load %arg6[%c1_147, %c1_148, %c0_149, %c0_150] : memref<2x4x1x256xf32, #tpu.memory_space<vmem>>, vector<1x1x1x256xf32>
    %244 = vector.shape_cast %243 : vector<1x1x1x256xf32> to vector<1x256xf32>
    %cst_151 = arith.constant dense<0.000000e+00> : vector<256xf32>
    %245 = vector.multi_reduction <add>, %240, %cst_151 [0] : vector<8x256xf32> to vector<256xf32>
    %246 = vector.shape_cast %245 : vector<256xf32> to vector<1x256xf32>
    %cst_152 = arith.constant 8.000000e+00 : f32
    %247 = vector.broadcast %cst_152 : f32 to vector<1x256xf32>
    %248 = arith.divf %246, %247 : vector<1x256xf32>
    %249 = vector.broadcast %248 : vector<1x256xf32> to vector<8x256xf32>
    %250 = arith.subf %240, %249 : vector<8x256xf32>
    %251 = arith.mulf %250, %250 : vector<8x256xf32>
    %cst_153 = arith.constant dense<0.000000e+00> : vector<256xf32>
    %252 = vector.multi_reduction <add>, %251, %cst_153 [0] : vector<8x256xf32> to vector<256xf32>
    %253 = vector.shape_cast %252 : vector<256xf32> to vector<1x256xf32>
    %cst_154 = arith.constant 8.000000e+00 : f32
    %254 = vector.broadcast %cst_154 : f32 to vector<1x256xf32>
    %255 = arith.divf %253, %254 : vector<1x256xf32>
    %cst_155 = arith.constant 9.99999974E-6 : f32
    %256 = vector.broadcast %cst_155 : f32 to vector<1x256xf32>
    %257 = arith.addf %255, %256 : vector<1x256xf32>
    %258 = math.rsqrt %257 : vector<1x256xf32>
    %259 = vector.broadcast %258 : vector<1x256xf32> to vector<8x256xf32>
    %260 = arith.mulf %250, %259 : vector<8x256xf32>
    %261 = vector.broadcast %242 : vector<1x256xf32> to vector<8x256xf32>
    %262 = arith.mulf %260, %261 : vector<8x256xf32>
    %263 = vector.broadcast %244 : vector<1x256xf32> to vector<8x256xf32>
    %264 = arith.addf %262, %263 : vector<8x256xf32>
    %cst_156 = arith.constant 0.000000e+00 : f32
    %265 = vector.broadcast %cst_156 : f32 to vector<8x256xf32>
    %266 = arith.cmpf oge, %264, %265 : vector<8x256xf32>
    %cst_157 = arith.constant 0.00999999977 : f32
    %267 = vector.broadcast %cst_157 : f32 to vector<8x256xf32>
    %268 = arith.mulf %267, %264 : vector<8x256xf32>
    %269 = arith.select %266, %264, %268 : vector<8x256xi1>, vector<8x256xf32>
    %270 = arith.truncf %269 : vector<8x256xf32> to vector<8x256xbf16>
    %c1_158 = arith.constant 1 : index
    %c2_159 = arith.constant 2 : index
    %c0_160 = arith.constant 0 : index
    %c0_161 = arith.constant 0 : index
    %271 = vector.load %arg4[%c1_158, %c2_159, %c0_160, %c0_161] : memref<2x4x256x256xbf16, #tpu.memory_space<vmem>>, vector<1x1x256x256xbf16>
    %272 = vector.shape_cast %271 : vector<1x1x256x256xbf16> to vector<256x256xbf16>
    %cst_162 = arith.constant dense<0.000000e+00> : vector<8x256xf32>
    %273 = tpu.matmul %270, %272, %cst_162 {dimension_numbers = #tpu.dot_dimension_numbers<[1], [0], [0], [1], [0, 0, 1, 1], [], []>} : vector<8x256xbf16>, vector<256x256xbf16>, vector<8x256xf32> -> vector<8x256xf32>
    %c1_163 = arith.constant 1 : index
    %c2_164 = arith.constant 2 : index
    %c0_165 = arith.constant 0 : index
    %c0_166 = arith.constant 0 : index
    %274 = vector.load %arg5[%c1_163, %c2_164, %c0_165, %c0_166] : memref<2x4x1x256xf32, #tpu.memory_space<vmem>>, vector<1x1x1x256xf32>
    %275 = vector.shape_cast %274 : vector<1x1x1x256xf32> to vector<1x256xf32>
    %c1_167 = arith.constant 1 : index
    %c2_168 = arith.constant 2 : index
    %c0_169 = arith.constant 0 : index
    %c0_170 = arith.constant 0 : index
    %276 = vector.load %arg6[%c1_167, %c2_168, %c0_169, %c0_170] : memref<2x4x1x256xf32, #tpu.memory_space<vmem>>, vector<1x1x1x256xf32>
    %277 = vector.shape_cast %276 : vector<1x1x1x256xf32> to vector<1x256xf32>
    %cst_171 = arith.constant dense<0.000000e+00> : vector<256xf32>
    %278 = vector.multi_reduction <add>, %273, %cst_171 [0] : vector<8x256xf32> to vector<256xf32>
    %279 = vector.shape_cast %278 : vector<256xf32> to vector<1x256xf32>
    %cst_172 = arith.constant 8.000000e+00 : f32
    %280 = vector.broadcast %cst_172 : f32 to vector<1x256xf32>
    %281 = arith.divf %279, %280 : vector<1x256xf32>
    %282 = vector.broadcast %281 : vector<1x256xf32> to vector<8x256xf32>
    %283 = arith.subf %273, %282 : vector<8x256xf32>
    %284 = arith.mulf %283, %283 : vector<8x256xf32>
    %cst_173 = arith.constant dense<0.000000e+00> : vector<256xf32>
    %285 = vector.multi_reduction <add>, %284, %cst_173 [0] : vector<8x256xf32> to vector<256xf32>
    %286 = vector.shape_cast %285 : vector<256xf32> to vector<1x256xf32>
    %cst_174 = arith.constant 8.000000e+00 : f32
    %287 = vector.broadcast %cst_174 : f32 to vector<1x256xf32>
    %288 = arith.divf %286, %287 : vector<1x256xf32>
    %cst_175 = arith.constant 9.99999974E-6 : f32
    %289 = vector.broadcast %cst_175 : f32 to vector<1x256xf32>
    %290 = arith.addf %288, %289 : vector<1x256xf32>
    %291 = math.rsqrt %290 : vector<1x256xf32>
    %292 = vector.broadcast %291 : vector<1x256xf32> to vector<8x256xf32>
    %293 = arith.mulf %283, %292 : vector<8x256xf32>
    %294 = vector.broadcast %275 : vector<1x256xf32> to vector<8x256xf32>
    %295 = arith.mulf %293, %294 : vector<8x256xf32>
    %296 = vector.broadcast %277 : vector<1x256xf32> to vector<8x256xf32>
    %297 = arith.addf %295, %296 : vector<8x256xf32>
    %cst_176 = arith.constant 0.000000e+00 : f32
    %298 = vector.broadcast %cst_176 : f32 to vector<8x256xf32>
    %299 = arith.cmpf oge, %297, %298 : vector<8x256xf32>
    %cst_177 = arith.constant 0.00999999977 : f32
    %300 = vector.broadcast %cst_177 : f32 to vector<8x256xf32>
    %301 = arith.mulf %300, %297 : vector<8x256xf32>
    %302 = arith.select %299, %297, %301 : vector<8x256xi1>, vector<8x256xf32>
    %303 = arith.truncf %302 : vector<8x256xf32> to vector<8x256xbf16>
    %c1_178 = arith.constant 1 : index
    %c3_179 = arith.constant 3 : index
    %c0_180 = arith.constant 0 : index
    %c0_181 = arith.constant 0 : index
    %304 = vector.load %arg4[%c1_178, %c3_179, %c0_180, %c0_181] : memref<2x4x256x256xbf16, #tpu.memory_space<vmem>>, vector<1x1x256x256xbf16>
    %305 = vector.shape_cast %304 : vector<1x1x256x256xbf16> to vector<256x256xbf16>
    %cst_182 = arith.constant dense<0.000000e+00> : vector<8x256xf32>
    %306 = tpu.matmul %303, %305, %cst_182 {dimension_numbers = #tpu.dot_dimension_numbers<[1], [0], [0], [1], [0, 0, 1, 1], [], []>} : vector<8x256xbf16>, vector<256x256xbf16>, vector<8x256xf32> -> vector<8x256xf32>
    %c1_183 = arith.constant 1 : index
    %c3_184 = arith.constant 3 : index
    %c0_185 = arith.constant 0 : index
    %c0_186 = arith.constant 0 : index
    %307 = vector.load %arg5[%c1_183, %c3_184, %c0_185, %c0_186] : memref<2x4x1x256xf32, #tpu.memory_space<vmem>>, vector<1x1x1x256xf32>
    %308 = vector.shape_cast %307 : vector<1x1x1x256xf32> to vector<1x256xf32>
    %c1_187 = arith.constant 1 : index
    %c3_188 = arith.constant 3 : index
    %c0_189 = arith.constant 0 : index
    %c0_190 = arith.constant 0 : index
    %309 = vector.load %arg6[%c1_187, %c3_188, %c0_189, %c0_190] : memref<2x4x1x256xf32, #tpu.memory_space<vmem>>, vector<1x1x1x256xf32>
    %310 = vector.shape_cast %309 : vector<1x1x1x256xf32> to vector<1x256xf32>
    %cst_191 = arith.constant dense<0.000000e+00> : vector<256xf32>
    %311 = vector.multi_reduction <add>, %306, %cst_191 [0] : vector<8x256xf32> to vector<256xf32>
    %312 = vector.shape_cast %311 : vector<256xf32> to vector<1x256xf32>
    %cst_192 = arith.constant 8.000000e+00 : f32
    %313 = vector.broadcast %cst_192 : f32 to vector<1x256xf32>
    %314 = arith.divf %312, %313 : vector<1x256xf32>
    %315 = vector.broadcast %314 : vector<1x256xf32> to vector<8x256xf32>
    %316 = arith.subf %306, %315 : vector<8x256xf32>
    %317 = arith.mulf %316, %316 : vector<8x256xf32>
    %cst_193 = arith.constant dense<0.000000e+00> : vector<256xf32>
    %318 = vector.multi_reduction <add>, %317, %cst_193 [0] : vector<8x256xf32> to vector<256xf32>
    %319 = vector.shape_cast %318 : vector<256xf32> to vector<1x256xf32>
    %cst_194 = arith.constant 8.000000e+00 : f32
    %320 = vector.broadcast %cst_194 : f32 to vector<1x256xf32>
    %321 = arith.divf %319, %320 : vector<1x256xf32>
    %cst_195 = arith.constant 9.99999974E-6 : f32
    %322 = vector.broadcast %cst_195 : f32 to vector<1x256xf32>
    %323 = arith.addf %321, %322 : vector<1x256xf32>
    %324 = math.rsqrt %323 : vector<1x256xf32>
    %325 = vector.broadcast %324 : vector<1x256xf32> to vector<8x256xf32>
    %326 = arith.mulf %316, %325 : vector<8x256xf32>
    %327 = vector.broadcast %308 : vector<1x256xf32> to vector<8x256xf32>
    %328 = arith.mulf %326, %327 : vector<8x256xf32>
    %329 = vector.broadcast %310 : vector<1x256xf32> to vector<8x256xf32>
    %330 = arith.addf %328, %329 : vector<8x256xf32>
    %cst_196 = arith.constant 0.000000e+00 : f32
    %331 = vector.broadcast %cst_196 : f32 to vector<8x256xf32>
    %332 = arith.cmpf oge, %330, %331 : vector<8x256xf32>
    %cst_197 = arith.constant 0.00999999977 : f32
    %333 = vector.broadcast %cst_197 : f32 to vector<8x256xf32>
    %334 = arith.mulf %333, %330 : vector<8x256xf32>
    %335 = arith.select %332, %330, %334 : vector<8x256xi1>, vector<8x256xf32>
    %336 = arith.truncf %335 : vector<8x256xf32> to vector<8x256xbf16>
    %c0_198 = arith.constant 0 : index
    %c0_199 = arith.constant 0 : index
    %337 = vector.load %arg7[%c0_198, %c0_199] : memref<256x128xbf16, #tpu.memory_space<vmem>>, vector<256x128xbf16>
    %cst_200 = arith.constant dense<0.000000e+00> : vector<8x128xf32>
    %338 = tpu.matmul %336, %337, %cst_200 {dimension_numbers = #tpu.dot_dimension_numbers<[1], [0], [0], [1], [0, 0, 1, 1], [], []>} : vector<8x256xbf16>, vector<256x128xbf16>, vector<8x128xf32> -> vector<8x128xf32>
    %c0_201 = arith.constant 0 : index
    %c0_202 = arith.constant 0 : index
    %339 = vector.load %arg8[%c0_201, %c0_202] : memref<1x128xf32, #tpu.memory_space<vmem>>, vector<1x128xf32>
    %340 = vector.broadcast %339 : vector<1x128xf32> to vector<8x128xf32>
    %341 = arith.addf %338, %340 : vector<8x128xf32>
    %c1_203 = arith.constant 1 : index
    %c0_204 = arith.constant 0 : index
    %c0_205 = arith.constant 0 : index
    %342 = vector.load %arg9[%c1_203, %c0_204, %c0_205] : memref<2x8x128xf32, #tpu.memory_space<vmem>>, vector<1x8x128xf32>
    %343 = vector.shape_cast %342 : vector<1x8x128xf32> to vector<8x128xf32>
    %344 = vector.shape_cast %341 : vector<8x128xf32> to vector<1x8x128xf32>
    tpu.vector_store %arg9[%c1_203, %c0_204, %c0_205], %344 {strides = array<i32>} : memref<2x8x128xf32, #tpu.memory_space<vmem>>, vector<1x8x128xf32>,
    return
  }
}

</mosaic_0001>

<llo_original>
// kernel: rt_generator_forward.3
$region0: #{rt_generator_forward.3}
  #allocation0 [shape = 'u32[]', space=smem, size = 0x4, offset = 0x4, fixed_abs, tag = 'smem constant byte address 0x4 - core index']
  #allocation1 [shape = 'u32[144,128]{1,0:T(1,128)}', space=vmem, size = 0x12000, scoped, tag = 'internal scratch']
  %s0 = inlined_call_operand.vmem [shape: bf16[2,8,128], index: 0, kind: input, shape index: {}]
  %s1 = inlined_call_operand.hbm [shape: bf16[2,128,256], index: 1, kind: input, shape index: {}]
  %s2 = inlined_call_operand.vmem [shape: f32[2,1,256], index: 2, kind: input, shape index: {}]
  %s3 = inlined_call_operand.vmem [shape: f32[2,1,256], index: 3, kind: input, shape index: {}]
  %s4 = inlined_call_operand.hbm [shape: bf16[2,4,256,256], index: 4, kind: input, shape index: {}]
  %s5 = inlined_call_operand.vmem [shape: f32[2,4,1,256], index: 5, kind: input, shape index: {}]
  %s6 = inlined_call_operand.vmem [shape: f32[2,4,1,256], index: 6, kind: input, shape index: {}]
  %s7 = inlined_call_operand.hbm [shape: bf16[256,128], index: 7, kind: input, shape index: {}]
  %s8 = inlined_call_operand.vmem [shape: f32[1,128], index: 8, kind: input, shape index: {}]
  %s9 = inlined_call_operand.vmem [shape: f32[2,8,128], index: 9, kind: output, shape index: {}]
  %s10 = sld [smem:[#allocation0]]
  $region58: #{rt_generator_forward.3} parent=0
    _
  %s12 = ssub.s32 1, %s10
  %s13 = scalar_select 0, %s12, %s10
  $region1: #{rt_generator_forward.3} parent=0
    #allocation2 [shape = 'u8[131072]{0}', space=vmem, size = 0x20000, scoped, tag = 'input window, operand 1, single buffered']
    #allocation3 [shape = 's32[1]{0}', space=sflag, size = 0x4, scoped, tag = 'scoped memory for rt_generator_forward.3']
    #allocation4 [shape = 'u8[1048576]{0}', space=vmem, size = 0x100000, scoped, tag = 'input window, operand 4, single buffered']
    #allocation5 [shape = 's32[1]{0}', space=sflag, size = 0x4, scoped, tag = 'scoped memory for rt_generator_forward.3']
    #allocation6 [shape = 'u8[65536]{0}', space=vmem, size = 0x10000, scoped, tag = 'input window, operand 7, single buffered']
    %14 = vsyncpa [#allocation3], 0
    %15 = vsyncpa [#allocation5], 0
    // Predicated region
    $region2: #{rt_generator_forward.3} parent=1 // pred_check
      _
    $region3: #{rt_generator_forward.3} parent=1 // pred_check_branch
      %17 = sbr.rel (0) target = $region5
    $region4: #{rt_generator_forward.3} parent=1 // pred_region
      _
    $region5: #{rt_generator_forward.3} parent=1 // pred_fallthru
      _
    // Predicated region
    $region6: #{rt_generator_forward.3} parent=1 // pred_check
      _
    $region7: #{rt_generator_forward.3} parent=1 // pred_check_branch
      %19 = sbr.rel (0) target = $region9
    $region8: #{rt_generator_forward.3} parent=1 // pred_region
      %s21 = ssub.s32 4096, 4096
      %22 = vsyncadd [#allocation3], %s21
      %s23 = sshll.u32 [#allocation2], 4
      %s24 = int_to_ptr.vmem [resolvable:$true] %s23
      %29 = dma.hbm_to_vmem [thread:$0]  %s1, 4096, %s24, [#allocation3], 128, 128, 8
    $region9: #{rt_generator_forward.3} parent=1 // pred_fallthru
      _
    // Predicated region
    $region10: #{rt_generator_forward.3} parent=1 // pred_check
      _
    $region11: #{rt_generator_forward.3} parent=1 // pred_check_branch
      %31 = sbr.rel (0) target = $region13
    $region12: #{rt_generator_forward.3} parent=1 // pred_region
      _
    $region13: #{rt_generator_forward.3} parent=1 // pred_fallthru
      _
    // Predicated region
    $region14: #{rt_generator_forward.3} parent=1 // pred_check
      _
    $region15: #{rt_generator_forward.3} parent=1 // pred_check_branch
      %33 = sbr.rel (0) target = $region17
    $region16: #{rt_generator_forward.3} parent=1 // pred_region
      _
    $region17: #{rt_generator_forward.3} parent=1 // pred_fallthru
      _
    // Predicated region
    $region18: #{rt_generator_forward.3} parent=1 // pred_check
      _
    $region19: #{rt_generator_forward.3} parent=1 // pred_check_branch
      %35 = sbr.rel (0) target = $region21
    $region20: #{rt_generator_forward.3} parent=1 // pred_region
      %s37 = ssub.s32 32768, 32768
      %38 = vsyncadd [#allocation5], %s37
      %s39 = sshll.u32 [#allocation4], 4
      %s40 = int_to_ptr.vmem [resolvable:$true] %s39
      %45 = dma.hbm_to_vmem [thread:$0]  %s4, 32768, %s40, [#allocation5], 128, 128, 8
    $region21: #{rt_generator_forward.3} parent=1 // pred_fallthru
      _
    // Predicated region
    $region22: #{rt_generator_forward.3} parent=1 // pred_check
      _
    $region23: #{rt_generator_forward.3} parent=1 // pred_check_branch
      %47 = sbr.rel (0) target = $region25
    $region24: #{rt_generator_forward.3} parent=1 // pred_region
      _
    $region25: #{rt_generator_forward.3} parent=1 // pred_fallthru
      _
    // Predicated region
    $region26: #{rt_generator_forward.3} parent=1 // pred_check
      _
    $region27: #{rt_generator_forward.3} parent=1 // pred_check_branch
      %49 = sbr.rel (0) target = $region29
    $region28: #{rt_generator_forward.3} parent=1 // pred_region
      _
    $region29: #{rt_generator_forward.3} parent=1 // pred_fallthru
      _
    // Predicated region
    $region30: #{rt_generator_forward.3} parent=1 // pred_check
      _
    $region31: #{rt_generator_forward.3} parent=1 // pred_check_branch
      %51 = sbr.rel (0) target = $region33
    $region32: #{rt_generator_forward.3} parent=1 // pred_region
      %s53 = ssub.s32 2048, 2048
      %54 = vsyncadd [#allocation5], %s53
      %s55 = sshll.u32 [#allocation6], 4
      %s56 = int_to_ptr.vmem [resolvable:$true] %s55
      %61 = dma.hbm_to_vmem [thread:$0]  %s7, 2048, %s56, [#allocation5], 64, 64, 4
    $region33: #{rt_generator_forward.3} parent=1 // pred_fallthru
      _
    // Predicated region
    $region34: #{rt_generator_forward.3} parent=1 // pred_check
      _
    $region35: #{rt_generator_forward.3} parent=1 // pred_check_branch
      %63 = sbr.rel (0) target = $region37
    $region36: #{rt_generator_forward.3} parent=1 // pred_region
      _
    $region37: #{rt_generator_forward.3} parent=1 // pred_fallthru
      _
    // Predicated region
    $region38: #{rt_generator_forward.3} parent=1 // pred_check
      _
    $region39: #{rt_generator_forward.3} parent=1 // pred_check_branch
      %65 = sbr.rel (0) target = $region41
    $region40: #{rt_generator_forward.3} parent=1 // pred_region
      %66 = dma.done [#allocation3], 4096
    $region41: #{rt_generator_forward.3} parent=1 // pred_fallthru
      _
    // Predicated region
    $region42: #{rt_generator_forward.3} parent=1 // pred_check
      _
    $region43: #{rt_generator_forward.3} parent=1 // pred_check_branch
      %68 = sbr.rel (0) target = $region45
    $region44: #{rt_generator_forward.3} parent=1 // pred_region
      %69 = dma.done [#allocation5], 32768
    $region45: #{rt_generator_forward.3} parent=1 // pred_fallthru
      _
    // Predicated region
    $region46: #{rt_generator_forward.3} parent=1 // pred_check
      _
    $region47: #{rt_generator_forward.3} parent=1 // pred_check_branch
      %71 = sbr.rel (0) target = $region49
    $region48: #{rt_generator_forward.3} parent=1 // pred_region
      %72 = dma.done [#allocation5], 2048
    $region49: #{rt_generator_forward.3} parent=1 // pred_fallthru
      _
    %v74 = vld [vmem:[%s0] sm:$0xf]
    %v75 = vld [vmem:[#allocation2] sm:$0xff]
    %v76 = vld [vmem:[#allocation2 + $0x8] sm:$0xff]
    %v77 = vld [vmem:[#allocation2 + $0x10] sm:$0xff]
    %v78 = vld [vmem:[#allocation2 + $0x18] sm:$0xff]
    %v79 = vld [vmem:[#allocation2 + $0x20] sm:$0xff]
    %v80 = vld [vmem:[#allocation2 + $0x28] sm:$0xff]
    %v81 = vld [vmem:[#allocation2 + $0x30] sm:$0xff]
    %v82 = vld [vmem:[#allocation2 + $0x38] sm:$0xff]
    %v83 = vld [vmem:[#allocation2 + $0x40] sm:$0xff]
    %v84 = vld [vmem:[#allocation2 + $0x48] sm:$0xff]
    %v85 = vld [vmem:[#allocation2 + $0x50] sm:$0xff]
    %v86 = vld [vmem:[#allocation2 + $0x58] sm:$0xff]
    %v87 = vld [vmem:[#allocation2 + $0x60] sm:$0xff]
    %v88 = vld [vmem:[#allocation2 + $0x68] sm:$0xff]
    %v89 = vld [vmem:[#allocation2 + $0x70] sm:$0xff]
    %v90 = vld [vmem:[#allocation2 + $0x78] sm:$0xff]
    %v91 = vld [vmem:[%s2] sm:$0x3]
    %v92 = vld [vmem:[%s3] sm:$0x3]
    %v109 = vunpack.c.l.b16 %v75
    %v110 = vunpack.c.h.b16 %v75
    %v111 = vunpack.c.l.b16 %v76
    %v112 = vunpack.c.h.b16 %v76
    %v113 = vunpack.c.l.b16 %v77
    %v114 = vunpack.c.h.b16 %v77
    %v115 = vunpack.c.l.b16 %v78
    %v116 = vunpack.c.h.b16 %v78
    %v117 = vunpack.c.l.b16 %v79
    %v118 = vunpack.c.h.b16 %v79
    %v119 = vunpack.c.l.b16 %v80
    %v120 = vunpack.c.h.b16 %v80
    %v121 = vunpack.c.l.b16 %v81
    %v122 = vunpack.c.h.b16 %v81
    %v123 = vunpack.c.l.b16 %v82
    %v124 = vunpack.c.h.b16 %v82
    %v125 = vunpack.c.l.b16 %v83
    %v126 = vunpack.c.h.b16 %v83
    %v127 = vunpack.c.l.b16 %v84
    %v128 = vunpack.c.h.b16 %v84
    %v129 = vunpack.c.l.b16 %v85
    %v130 = vunpack.c.h.b16 %v85
    %v131 = vunpack.c.l.b16 %v86
    %v132 = vunpack.c.h.b16 %v86
    %v133 = vunpack.c.l.b16 %v87
    %v134 = vunpack.c.h.b16 %v87
    %v135 = vunpack.c.l.b16 %v88
    %v136 = vunpack.c.h.b16 %v88
    %v137 = vunpack.c.l.b16 %v89
    %v138 = vunpack.c.h.b16 %v89
    %v139 = vunpack.c.l.b16 %v90
    %v140 = vunpack.c.h.b16 %v90
    %v141 = vpack.c.b16 %v111, %v109
    %v142 = vpack.c.b16 %v112, %v110
    %v143 = vpack.c.b16 %v115, %v113
    %v144 = vpack.c.b16 %v116, %v114
    %v145 = vpack.c.b16 %v119, %v117
    %v146 = vpack.c.b16 %v120, %v118
    %v147 = vpack.c.b16 %v123, %v121
    %v148 = vpack.c.b16 %v124, %v122
    %v149 = vpack.c.b16 %v127, %v125
    %v150 = vpack.c.b16 %v128, %v126
    %v151 = vpack.c.b16 %v131, %v129
    %v152 = vpack.c.b16 %v132, %v130
    %v153 = vpack.c.b16 %v135, %v133
    %v154 = vpack.c.b16 %v136, %v134
    %v155 = vpack.c.b16 %v139, %v137
    %v156 = vpack.c.b16 %v140, %v138
    %173 = vmatprep.subr.bf16.mxu0 %v156
    %174 = vmatpush1.bf16.msra.mxu0 %v155
    %175 = vmatprep.subr.bf16.mxu0 %v154
    %176 = vmatpush1.bf16.msra.mxu0 %v153
    %177 = vmatprep.subr.bf16.mxu0 %v152
    %178 = vmatpush1.bf16.msra.mxu0 %v151
    %179 = vmatprep.subr.bf16.mxu0 %v150
    %180 = vmatpush1.bf16.msra.mxu0 %v149
    %181 = vmatprep.subr.bf16.mxu0 %v148
    %182 = vmatpush1.bf16.msra.mxu0 %v147
    %183 = vmatprep.subr.bf16.mxu0 %v146
    %184 = vmatpush1.bf16.msra.mxu0 %v145
    %185 = vmatprep.subr.bf16.mxu0 %v144
    %186 = vmatpush1.bf16.msra.mxu0 %v143
    %187 = vmatprep.subr.bf16.mxu0 %v142
    %188 = vmatpush1.bf16.msra.mxu0 %v141
    %189 = vmatprep.subr.bf16.mxu0 0
    %190 = vmatpush2.bf16.msra.mxu0 0
    %191 = vmatprep.subr.bf16.mxu0 0
    %192 = vmatpush2.bf16.msra.mxu0 0
    %193 = vmatprep.subr.bf16.mxu0 0
    %194 = vmatpush2.bf16.msra.mxu0 0
    %195 = vmatprep.subr.bf16.mxu0 0
    %196 = vmatpush2.bf16.msra.mxu0 0
    %197 = vmatprep.subr.bf16.mxu0 0
    %198 = vmatpush2.bf16.msra.mxu0 0
    %199 = vmatprep.subr.bf16.mxu0 0
    %200 = vmatpush2.bf16.msra.mxu0 0
    %201 = vmatprep.subr.bf16.mxu0 0
    %202 = vmatpush2.bf16.msra.mxu0 0
    %203 = vmatprep.subr.bf16.mxu0 0
    %204 = vmatpush2.bf16.msra.mxu0 0
    %205 = vmatprep.mubr.bf16.mxu0 0
    %206 = vmatmul.mubr.bf16.gmra.mxu0 %v74
    %v207 = vpop.f32.mrf.mxu0
    %v208 = vadd.f32 0.0, %v207
    %v209 = vpop.f32.mrf.mxu0
    %v210 = vadd.f32 0.0, %v209
    %v211 = vpop.f32.mrf.mxu0
    %v212 = vpop.f32.mrf.mxu0
    %213 = vdwg.mxu0
    %v214 = vrot.slane %v208, 4
    %v215 = vadd.f32 %v208, %v214
    %v216 = vrot.slane %v215, 2
    %v217 = vadd.f32 %v215, %v216
    %v218 = vrot.slane %v217, 1
    %v219 = vadd.f32 %v217, %v218
    %v220 = vrot.slane %v210, 4
    %v221 = vadd.f32 %v210, %v220
    %v222 = vrot.slane %v221, 2
    %v223 = vadd.f32 %v221, %v222
    %v224 = vrot.slane %v223, 1
    %v225 = vadd.f32 %v223, %v224
    %v226 = vrcp.pop 8.0
    %v227 = vmul.f32 %v219, %v226
    %v228 = vmul.f32 %v225, %v226
    %v229 = vsub.f32 %v208, %v227
    %v230 = vsub.f32 %v210, %v228
    %v231 = vmul.f32 %v229, %v229
    %v232 = vmul.f32 %v230, %v230
    %v233 = vrot.slane %v231, 4
    %v234 = vadd.f32 %v231, %v233
    %v235 = vrot.slane %v234, 2
    %v236 = vadd.f32 %v234, %v235
    %v237 = vrot.slane %v236, 1
    %v238 = vadd.f32 %v236, %v237
    %v239 = vrot.slane %v232, 4
    %v240 = vadd.f32 %v232, %v239
    %v241 = vrot.slane %v240, 2
    %v242 = vadd.f32 %v240, %v241
    %v243 = vrot.slane %v242, 1
    %v244 = vadd.f32 %v242, %v243
    %v245 = vmul.f32 %v238, %v226
    %v246 = vmul.f32 %v244, %v226
    %v247 = vadd.f32 %v245, 1e-05
    %v248 = vadd.f32 %v246, 1e-05
    %v249 = vrsqrt.pop %v247
    %v250 = vrsqrt.pop %v248
    %v251 = vmul.f32 %v229, %v249
    %v252 = vmul.f32 %v230, %v250
    %v254 = vlaneseq
    %v255 = vshrl.u32 %v254, 7
    %v256 = vsub.s32 0, %v255
    %v257 = vrot.slane %v91, %v256
    %v258 = vlaneseq
    %v259 = vshrl.u32 %v258, 7
    %v260 = vsub.s32 1, %v259
    %v261 = vrot.slane %v91, %v260
    %v264 = vmul.f32 %v251, %v257
    %v265 = vmul.f32 %v252, %v261
    %v267 = vlaneseq
    %v268 = vshrl.u32 %v267, 7
    %v269 = vsub.s32 0, %v268
    %v270 = vrot.slane %v92, %v269
    %v271 = vlaneseq
    %v272 = vshrl.u32 %v271, 7
    %v273 = vsub.s32 1, %v272
    %v274 = vrot.slane %v92, %v273
    %v277 = vadd.f32 %v264, %v270
    %v278 = vadd.f32 %v265, %v274
    %vm279 = vcmp.ge.f32.partialorder %v277, 0.0
    %vm280 = vcmp.ge.f32.partialorder %v278, 0.0
    %v281 = vmul.f32 %v277, 0.01
    %v282 = vmul.f32 %v278, 0.01
    %v283 = vsel %vm279, %v277, %v281
    %v284 = vsel %vm280, %v278, %v282
    %v285 = vpack.c.bf16 %v283, %v283
    %v286 = vpack.c.bf16 %v284, %v284
    %v287 = vld [vmem:[#allocation4] sm:$0xff]
    %v288 = vld [vmem:[#allocation4 + $0x8] sm:$0xff]
    %v289 = vld [vmem:[#allocation4 + $0x10] sm:$0xff]
    %v290 = vld [vmem:[#allocation4 + $0x18] sm:$0xff]
    %v291 = vld [vmem:[#allocation4 + $0x20] sm:$0xff]
    %v292 = vld [vmem:[#allocation4 + $0x28] sm:$0xff]
    %v293 = vld [vmem:[#allocation4 + $0x30] sm:$0xff]
    %v294 = vld [vmem:[#allocation4 + $0x38] sm:$0xff]
    %v295 = vld [vmem:[#allocation4 + $0x40] sm:$0xff]
    %v296 = vld [vmem:[#allocation4 + $0x48] sm:$0xff]
    %v297 = vld [vmem:[#allocation4 + $0x50] sm:$0xff]
    %v298 = vld [vmem:[#allocation4 + $0x58] sm:$0xff]
    %v299 = vld [vmem:[#allocation4 + $0x60] sm:$0xff]
    %v300 = vld [vmem:[#allocation4 + $0x68] sm:$0xff]
    %v301 = vld [vmem:[#allocation4 + $0x70] sm:$0xff]
    %v302 = vld [vmem:[#allocation4 + $0x78] sm:$0xff]
    %v303 = vld [vmem:[#allocation4 + $0x80] sm:$0xff]
    %v304 = vld [vmem:[#allocation4 + $0x88] sm:$0xff]
    %v305 = vld [vmem:[#allocation4 + $0x90] sm:$0xff]
    %v306 = vld [vmem:[#allocation4 + $0x98] sm:$0xff]
    %v307 = vld [vmem:[#allocation4 + $0xa0] sm:$0xff]
    %v308 = vld [vmem:[#allocation4 + $0xa8] sm:$0xff]
    %v309 = vld [vmem:[#allocation4 + $0xb0] sm:$0xff]
    %v310 = vld [vmem:[#allocation4 + $0xb8] sm:$0xff]
    %v311 = vld [vmem:[#allocation4 + $0xc0] sm:$0xff]
    %v312 = vld [vmem:[#allocation4 + $0xc8] sm:$0xff]
    %v313 = vld [vmem:[#allocation4 + $0xd0] sm:$0xff]
    %v314 = vld [vmem:[#allocation4 + $0xd8] sm:$0xff]
    %v315 = vld [vmem:[#allocation4 + $0xe0] sm:$0xff]
    %v316 = vld [vmem:[#allocation4 + $0xe8] sm:$0xff]
    %v317 = vld [vmem:[#allocation4 + $0xf0] sm:$0xff]
    %v318 = vld [vmem:[#allocation4 + $0xf8] sm:$0xff]
    %v351 = vunpack.c.l.b16 %v287
    %v352 = vunpack.c.h.b16 %v287
    %v353 = vunpack.c.l.b16 %v288
    %v354 = vunpack.c.h.b16 %v288
    %v355 = vunpack.c.l.b16 %v289
    %v356 = vunpack.c.h.b16 %v289
    %v357 = vunpack.c.l.b16 %v290
    %v358 = vunpack.c.h.b16 %v290
    %v359 = vunpack.c.l.b16 %v291
    %v360 = vunpack.c.h.b16 %v291
    %v361 = vunpack.c.l.b16 %v292
    %v362 = vunpack.c.h.b16 %v292
    %v363 = vunpack.c.l.b16 %v293
    %v364 = vunpack.c.h.b16 %v293
    %v365 = vunpack.c.l.b16 %v294
    %v366 = vunpack.c.h.b16 %v294
    %v367 = vunpack.c.l.b16 %v295
    %v368 = vunpack.c.h.b16 %v295
    %v369 = vunpack.c.l.b16 %v296
    %v370 = vunpack.c.h.b16 %v296
    %v371 = vunpack.c.l.b16 %v297
    %v372 = vunpack.c.h.b16 %v297
    %v373 = vunpack.c.l.b16 %v298
    %v374 = vunpack.c.h.b16 %v298
    %v375 = vunpack.c.l.b16 %v299
    %v376 = vunpack.c.h.b16 %v299
    %v377 = vunpack.c.l.b16 %v300
    %v378 = vunpack.c.h.b16 %v300
    %v379 = vunpack.c.l.b16 %v301
    %v380 = vunpack.c.h.b16 %v301
    %v381 = vunpack.c.l.b16 %v302
    %v382 = vunpack.c.h.b16 %v302
    %v383 = vunpack.c.l.b16 %v303
    %v384 = vunpack.c.h.b16 %v303
    %v385 = vunpack.c.l.b16 %v304
    %v386 = vunpack.c.h.b16 %v304
    %v387 = vunpack.c.l.b16 %v305
    %v388 = vunpack.c.h.b16 %v305
    %v389 = vunpack.c.l.b16 %v306
    %v390 = vunpack.c.h.b16 %v306
    %v391 = vunpack.c.l.b16 %v307
    %v392 = vunpack.c.h.b16 %v307
    %v393 = vunpack.c.l.b16 %v308
    %v394 = vunpack.c.h.b16 %v308
    %v395 = vunpack.c.l.b16 %v309
    %v396 = vunpack.c.h.b16 %v309
    %v397 = vunpack.c.l.b16 %v310
    %v398 = vunpack.c.h.b16 %v310
    %v399 = vunpack.c.l.b16 %v311
    %v400 = vunpack.c.h.b16 %v311
    %v401 = vunpack.c.l.b16 %v312
    %v402 = vunpack.c.h.b16 %v312
    %v403 = vunpack.c.l.b16 %v313
    %v404 = vunpack.c.h.b16 %v313
    %v405 = vunpack.c.l.b16 %v314
    %v406 = vunpack.c.h.b16 %v314
    %v407 = vunpack.c.l.b16 %v315
    %v408 = vunpack.c.h.b16 %v315
    %v409 = vunpack.c.l.b16 %v316
    %v410 = vunpack.c.h.b16 %v316
    %v411 = vunpack.c.l.b16 %v317
    %v412 = vunpack.c.h.b16 %v317
    %v413 = vunpack.c.l.b16 %v318
    %v414 = vunpack.c.h.b16 %v318
    %v415 = vpack.c.b16 %v353, %v351
    %v416 = vpack.c.b16 %v354, %v352
    %v417 = vpack.c.b16 %v357, %v355
    %v418 = vpack.c.b16 %v358, %v356
    %v419 = vpack.c.b16 %v361, %v359
    %v420 = vpack.c.b16 %v362, %v360
    %v421 = vpack.c.b16 %v365, %v363
    %v422 = vpack.c.b16 %v366, %v364
    %v423 = vpack.c.b16 %v369, %v367
    %v424 = vpack.c.b16 %v370, %v368
    %v425 = vpack.c.b16 %v373, %v371
    %v426 = vpack.c.b16 %v374, %v372
    %v427 = vpack.c.b16 %v377, %v375
    %v428 = vpack.c.b16 %v378, %v376
    %v429 = vpack.c.b16 %v381, %v379
    %v430 = vpack.c.b16 %v382, %v380
    %v431 = vpack.c.b16 %v385, %v383
    %v432 = vpack.c.b16 %v386, %v384
    %v433 = vpack.c.b16 %v389, %v387
    %v434 = vpack.c.b16 %v390, %v388
    %v435 = vpack.c.b16 %v393, %v391
    %v436 = vpack.c.b16 %v394, %v392
    %v437 = vpack.c.b16 %v397, %v395
    %v438 = vpack.c.b16 %v398, %v396
    %v439 = vpack.c.b16 %v401, %v399
    %v440 = vpack.c.b16 %v402, %v400
    %v441 = vpack.c.b16 %v405, %v403
    %v442 = vpack.c.b16 %v406, %v404
    %v443 = vpack.c.b16 %v409, %v407
    %v444 = vpack.c.b16 %v410, %v408
    %v445 = vpack.c.b16 %v413, %v411
    %v446 = vpack.c.b16 %v414, %v412
    %479 = vmatprep.subr.bf16.mxu0 %v430
    %480 = vmatpush1.bf16.msra.mxu0 %v429
    %481 = vmatprep.subr.bf16.mxu0 %v428
    %482 = vmatpush1.bf16.msra.mxu0 %v427
    %483 = vmatprep.subr.bf16.mxu0 %v426
    %484 = vmatpush1.bf16.msra.mxu0 %v425
    %485 = vmatprep.subr.bf16.mxu0 %v424
    %486 = vmatpush1.bf16.msra.mxu0 %v423
    %487 = vmatprep.subr.bf16.mxu0 %v422
    %488 = vmatpush1.bf16.msra.mxu0 %v421
    %489 = vmatprep.subr.bf16.mxu0 %v420
    %490 = vmatpush1.bf16.msra.mxu0 %v419
    %491 = vmatprep.subr.bf16.mxu0 %v418
    %492 = vmatpush1.bf16.msra.mxu0 %v417
    %493 = vmatprep.subr.bf16.mxu0 %v416
    %494 = vmatpush1.bf16.msra.mxu0 %v415
    %495 = vmatprep.subr.bf16.mxu0 %v446
    %496 = vmatpush2.bf16.msra.mxu0 %v445
    %497 = vmatprep.subr.bf16.mxu0 %v444
    %498 = vmatpush2.bf16.msra.mxu0 %v443
    %499 = vmatprep.subr.bf16.mxu0 %v442
    %500 = vmatpush2.bf16.msra.mxu0 %v441
    %501 = vmatprep.subr.bf16.mxu0 %v440
    %502 = vmatpush2.bf16.msra.mxu0 %v439
    %503 = vmatprep.subr.bf16.mxu0 %v438
    %504 = vmatpush2.bf16.msra.mxu0 %v437
    %505 = vmatprep.subr.bf16.mxu0 %v436
    %506 = vmatpush2.bf16.msra.mxu0 %v435
    %507 = vmatprep.subr.bf16.mxu0 %v434
    %508 = vmatpush2.bf16.msra.mxu0 %v433
    %509 = vmatprep.subr.bf16.mxu0 %v432
    %510 = vmatpush2.bf16.msra.mxu0 %v431
    %511 = vmatprep.mubr.bf16.mxu0 %v286
    %512 = vmatmul.mubr.bf16.gmra.mxu0 %v285
    %v513 = vpop.f32.mrf.mxu0
    %v514 = vadd.f32 0.0, %v513
    %v515 = vpop.f32.mrf.mxu0
    %v516 = vadd.f32 0.0, %v515
    %v517 = vpop.f32.mrf.mxu0
    %v518 = vpop.f32.mrf.mxu0
    %519 = vdwg.mxu0
    %v520 = vld [vmem:[%s5] sm:$0x3]
    %v521 = vld [vmem:[%s6] sm:$0x3]
    %v522 = vrot.slane %v514, 4
    %v523 = vadd.f32 %v514, %v522
    %v524 = vrot.slane %v523, 2
    %v525 = vadd.f32 %v523, %v524
    %v526 = vrot.slane %v525, 1
    %v527 = vadd.f32 %v525, %v526
    %v528 = vrot.slane %v516, 4
    %v529 = vadd.f32 %v516, %v528
    %v530 = vrot.slane %v529, 2
    %v531 = vadd.f32 %v529, %v530
    %v532 = vrot.slane %v531, 1
    %v533 = vadd.f32 %v531, %v532
    %v534 = vmul.f32 %v527, %v226
    %v535 = vmul.f32 %v533, %v226
    %v536 = vsub.f32 %v514, %v534
    %v537 = vsub.f32 %v516, %v535
    %v538 = vmul.f32 %v536, %v536
    %v539 = vmul.f32 %v537, %v537
    %v540 = vrot.slane %v538, 4
    %v541 = vadd.f32 %v538, %v540
    %v542 = vrot.slane %v541, 2
    %v543 = vadd.f32 %v541, %v542
    %v544 = vrot.slane %v543, 1
    %v545 = vadd.f32 %v543, %v544
    %v546 = vrot.slane %v539, 4
    %v547 = vadd.f32 %v539, %v546
    %v548 = vrot.slane %v547, 2
    %v549 = vadd.f32 %v547, %v548
    %v550 = vrot.slane %v549, 1
    %v551 = vadd.f32 %v549, %v550
    %v552 = vmul.f32 %v545, %v226
    %v553 = vmul.f32 %v551, %v226
    %v554 = vadd.f32 %v552, 1e-05
    %v555 = vadd.f32 %v553, 1e-05
    %v556 = vrsqrt.pop %v554
    %v557 = vrsqrt.pop %v555
    %v558 = vmul.f32 %v536, %v556
    %v559 = vmul.f32 %v537, %v557
    %v561 = vlaneseq
    %v562 = vshrl.u32 %v561, 7
    %v563 = vsub.s32 0, %v562
    %v564 = vrot.slane %v520, %v563
    %v565 = vlaneseq
    %v566 = vshrl.u32 %v565, 7
    %v567 = vsub.s32 1, %v566
    %v568 = vrot.slane %v520, %v567
    %v571 = vmul.f32 %v558, %v564
    %v572 = vmul.f32 %v559, %v568
    %v574 = vlaneseq
    %v575 = vshrl.u32 %v574, 7
    %v576 = vsub.s32 0, %v575
    %v577 = vrot.slane %v521, %v576
    %v578 = vlaneseq
    %v579 = vshrl.u32 %v578, 7
    %v580 = vsub.s32 1, %v579
    %v581 = vrot.slane %v521, %v580
    %v584 = vadd.f32 %v571, %v577
    %v585 = vadd.f32 %v572, %v581
    %vm586 = vcmp.ge.f32.partialorder %v584, 0.0
    %vm587 = vcmp.ge.f32.partialorder %v585, 0.0
    %v588 = vmul.f32 %v584, 0.01
    %v589 = vmul.f32 %v585, 0.01
    %v590 = vsel %vm586, %v584, %v588
    %v591 = vsel %vm587, %v585, %v589
    %v592 = vpack.c.bf16 %v590, %v590
    %v593 = vpack.c.bf16 %v591, %v591
    %s594 = scalar_lea.vmem [#allocation4], 256
    %v595 = vld [vmem:[%s594] sm:$0xff]
    %v596 = vld [vmem:[%s594 + $0x8] sm:$0xff]
    %v597 = vld [vmem:[%s594 + $0x10] sm:$0xff]
    %v598 = vld [vmem:[%s594 + $0x18] sm:$0xff]
    %v599 = vld [vmem:[%s594 + $0x20] sm:$0xff]
    %v600 = vld [vmem:[%s594 + $0x28] sm:$0xff]
    %v601 = vld [vmem:[%s594 + $0x30] sm:$0xff]
    %v602 = vld [vmem:[%s594 + $0x38] sm:$0xff]
    %v603 = vld [vmem:[%s594 + $0x40] sm:$0xff]
    %v604 = vld [vmem:[%s594 + $0x48] sm:$0xff]
    %v605 = vld [vmem:[%s594 + $0x50] sm:$0xff]
    %v606 = vld [vmem:[%s594 + $0x58] sm:$0xff]
    %v607 = vld [vmem:[%s594 + $0x60] sm:$0xff]
    %v608 = vld [vmem:[%s594 + $0x68] sm:$0xff]
    %v609 = vld [vmem:[%s594 + $0x70] sm:$0xff]
    %v610 = vld [vmem:[%s594 + $0x78] sm:$0xff]
    %v611 = vld [vmem:[%s594 + $0x80] sm:$0xff]
    %v612 = vld [vmem:[%s594 + $0x88] sm:$0xff]
    %v613 = vld [vmem:[%s594 + $0x90] sm:$0xff]
    %v614 = vld [vmem:[%s594 + $0x98] sm:$0xff]
    %v615 = vld [vmem:[%s594 + $0xa0] sm:$0xff]
    %v616 = vld [vmem:[%s594 + $0xa8] sm:$0xff]
    %v617 = vld [vmem:[%s594 + $0xb0] sm:$0xff]
    %v618 = vld [vmem:[%s594 + $0xb8] sm:$0xff]
    %v619 = vld [vmem:[%s594 + $0xc0] sm:$0xff]
    %v620 = vld [vmem:[%s594 + $0xc8] sm:$0xff]
    %v621 = vld [vmem:[%s594 + $0xd0] sm:$0xff]
    %v622 = vld [vmem:[%s594 + $0xd8] sm:$0xff]
    %v623 = vld [vmem:[%s594 + $0xe0] sm:$0xff]
    %v624 = vld [vmem:[%s594 + $0xe8] sm:$0xff]
    %v625 = vld [vmem:[%s594 + $0xf0] sm:$0xff]
    %v626 = vld [vmem:[%s594 + $0xf8] sm:$0xff]
    %v659 = vunpack.c.l.b16 %v595
    %v660 = vunpack.c.h.b16 %v595
    %v661 = vunpack.c.l.b16 %v596
    %v662 = vunpack.c.h.b16 %v596
    %v663 = vunpack.c.l.b16 %v597
    %v664 = vunpack.c.h.b16 %v597
    %v665 = vunpack.c.l.b16 %v598
    %v666 = vunpack.c.h.b16 %v598
    %v667 = vunpack.c.l.b16 %v599
    %v668 = vunpack.c.h.b16 %v599
    %v669 = vunpack.c.l.b16 %v600
    %v670 = vunpack.c.h.b16 %v600
    %v671 = vunpack.c.l.b16 %v601
    %v672 = vunpack.c.h.b16 %v601
    %v673 = vunpack.c.l.b16 %v602
    %v674 = vunpack.c.h.b16 %v602
    %v675 = vunpack.c.l.b16 %v603
    %v676 = vunpack.c.h.b16 %v603
    %v677 = vunpack.c.l.b16 %v604
    %v678 = vunpack.c.h.b16 %v604
    %v679 = vunpack.c.l.b16 %v605
    %v680 = vunpack.c.h.b16 %v605
    %v681 = vunpack.c.l.b16 %v606
    %v682 = vunpack.c.h.b16 %v606
    %v683 = vunpack.c.l.b16 %v607
    %v684 = vunpack.c.h.b16 %v607
    %v685 = vunpack.c.l.b16 %v608
    %v686 = vunpack.c.h.b16 %v608
    %v687 = vunpack.c.l.b16 %v609
    %v688 = vunpack.c.h.b16 %v609
    %v689 = vunpack.c.l.b16 %v610
    %v690 = vunpack.c.h.b16 %v610
    %v691 = vunpack.c.l.b16 %v611
    %v692 = vunpack.c.h.b16 %v611
    %v693 = vunpack.c.l.b16 %v612
    %v694 = vunpack.c.h.b16 %v612
    %v695 = vunpack.c.l.b16 %v613
    %v696 = vunpack.c.h.b16 %v613
    %v697 = vunpack.c.l.b16 %v614
    %v698 = vunpack.c.h.b16 %v614
    %v699 = vunpack.c.l.b16 %v615
    %v700 = vunpack.c.h.b16 %v615
    %v701 = vunpack.c.l.b16 %v616
    %v702 = vunpack.c.h.b16 %v616
    %v703 = vunpack.c.l.b16 %v617
    %v704 = vunpack.c.h.b16 %v617
    %v705 = vunpack.c.l.b16 %v618
    %v706 = vunpack.c.h.b16 %v618
    %v707 = vunpack.c.l.b16 %v619
    %v708 = vunpack.c.h.b16 %v619
    %v709 = vunpack.c.l.b16 %v620
    %v710 = vunpack.c.h.b16 %v620
    %v711 = vunpack.c.l.b16 %v621
    %v712 = vunpack.c.h.b16 %v621
    %v713 = vunpack.c.l.b16 %v622
    %v714 = vunpack.c.h.b16 %v622
    %v715 = vunpack.c.l.b16 %v623
    %v716 = vunpack.c.h.b16 %v623
    %v717 = vunpack.c.l.b16 %v624
    %v718 = vunpack.c.h.b16 %v624
    %v719 = vunpack.c.l.b16 %v625
    %v720 = vunpack.c.h.b16 %v625
    %v721 = vunpack.c.l.b16 %v626
    %v722 = vunpack.c.h.b16 %v626
    %v723 = vpack.c.b16 %v661, %v659
    %v724 = vpack.c.b16 %v662, %v660
    %v725 = vpack.c.b16 %v665, %v663
    %v726 = vpack.c.b16 %v666, %v664
    %v727 = vpack.c.b16 %v669, %v667
    %v728 = vpack.c.b16 %v670, %v668
    %v729 = vpack.c.b16 %v673, %v671
    %v730 = vpack.c.b16 %v674, %v672
    %v731 = vpack.c.b16 %v677, %v675
    %v732 = vpack.c.b16 %v678, %v676
    %v733 = vpack.c.b16 %v681, %v679
    %v734 = vpack.c.b16 %v682, %v680
    %v735 = vpack.c.b16 %v685, %v683
    %v736 = vpack.c.b16 %v686, %v684
    %v737 = vpack.c.b16 %v689, %v687
    %v738 = vpack.c.b16 %v690, %v688
    %v739 = vpack.c.b16 %v693, %v691
    %v740 = vpack.c.b16 %v694, %v692
    %v741 = vpack.c.b16 %v697, %v695
    %v742 = vpack.c.b16 %v698, %v696
    %v743 = vpack.c.b16 %v701, %v699
    %v744 = vpack.c.b16 %v702, %v700
    %v745 = vpack.c.b16 %v705, %v703
    %v746 = vpack.c.b16 %v706, %v704
    %v747 = vpack.c.b16 %v709, %v707
    %v748 = vpack.c.b16 %v710, %v708
    %v749 = vpack.c.b16 %v713, %v711
    %v750 = vpack.c.b16 %v714, %v712
    %v751 = vpack.c.b16 %v717, %v715
    %v752 = vpack.c.b16 %v718, %v716
    %v753 = vpack.c.b16 %v721, %v719
    %v754 = vpack.c.b16 %v722, %v720
    %787 = vmatprep.subr.bf16.mxu0 %v738
    %788 = vmatpush1.bf16.msra.mxu0 %v737
    %789 = vmatprep.subr.bf16.mxu0 %v736
    %790 = vmatpush1.bf16.msra.mxu0 %v735
    %791 = vmatprep.subr.bf16.mxu0 %v734
    %792 = vmatpush1.bf16.msra.mxu0 %v733
    %793 = vmatprep.subr.bf16.mxu0 %v732
    %794 = vmatpush1.bf16.msra.mxu0 %v731
    %795 = vmatprep.subr.bf16.mxu0 %v730
    %796 = vmatpush1.bf16.msra.mxu0 %v729
    %797 = vmatprep.subr.bf16.mxu0 %v728
    %798 = vmatpush1.bf16.msra.mxu0 %v727
    %799 = vmatprep.subr.bf16.mxu0 %v726
    %800 = vmatpush1.bf16.msra.mxu0 %v725
    %801 = vmatprep.subr.bf16.mxu0 %v724
    %802 = vmatpush1.bf16.msra.mxu0 %v723
    %803 = vmatprep.subr.bf16.mxu0 %v754
    %804 = vmatpush2.bf16.msra.mxu0 %v753
    %805 = vmatprep.subr.bf16.mxu0 %v752
    %806 = vmatpush2.bf16.msra.mxu0 %v751
    %807 = vmatprep.subr.bf16.mxu0 %v750
    %808 = vmatpush2.bf16.msra.mxu0 %v749
    %809 = vmatprep.subr.bf16.mxu0 %v748
    %810 = vmatpush2.bf16.msra.mxu0 %v747
    %811 = vmatprep.subr.bf16.mxu0 %v746
    %812 = vmatpush2.bf16.msra.mxu0 %v745
    %813 = vmatprep.subr.bf16.mxu0 %v744
    %814 = vmatpush2.bf16.msra.mxu0 %v743
    %815 = vmatprep.subr.bf16.mxu0 %v742
    %816 = vmatpush2.bf16.msra.mxu0 %v741
    %817 = vmatprep.subr.bf16.mxu0 %v740
    %818 = vmatpush2.bf16.msra.mxu0 %v739
    %819 = vmatprep.mubr.bf16.mxu0 %v593
    %820 = vmatmul.mubr.bf16.gmra.mxu0 %v592
    %v821 = vpop.f32.mrf.mxu0
    %v822 = vadd.f32 0.0, %v821
    %v823 = vpop.f32.mrf.mxu0
    %v824 = vadd.f32 0.0, %v823
    %v825 = vpop.f32.mrf.mxu0
    %v826 = vpop.f32.mrf.mxu0
    %827 = vdwg.mxu0
    %s828 = scalar_lea.vmem %s5, 2
    %v829 = vld [vmem:[%s828] sm:$0x3]
    %s830 = scalar_lea.vmem %s6, 2
    %v831 = vld [vmem:[%s830] sm:$0x3]
    %v832 = vrot.slane %v822, 4
    %v833 = vadd.f32 %v822, %v832
    %v834 = vrot.slane %v833, 2
    %v835 = vadd.f32 %v833, %v834
    %v836 = vrot.slane %v835, 1
    %v837 = vadd.f32 %v835, %v836
    %v838 = vrot.slane %v824, 4
    %v839 = vadd.f32 %v824, %v838
    %v840 = vrot.slane %v839, 2
    %v841 = vadd.f32 %v839, %v840
    %v842 = vrot.slane %v841, 1
    %v843 = vadd.f32 %v841, %v842
    %v844 = vmul.f32 %v837, %v226
    %v845 = vmul.f32 %v843, %v226
    %v846 = vsub.f32 %v822, %v844
    %v847 = vsub.f32 %v824, %v845
    %v848 = vmul.f32 %v846, %v846
    %v849 = vmul.f32 %v847, %v847
    %v850 = vrot.slane %v848, 4
    %v851 = vadd.f32 %v848, %v850
    %v852 = vrot.slane %v851, 2
    %v853 = vadd.f32 %v851, %v852
    %v854 = vrot.slane %v853, 1
    %v855 = vadd.f32 %v853, %v854
    %v856 = vrot.slane %v849, 4
    %v857 = vadd.f32 %v849, %v856
    %v858 = vrot.slane %v857, 2
    %v859 = vadd.f32 %v857, %v858
    %v860 = vrot.slane %v859, 1
    %v861 = vadd.f32 %v859, %v860
    %v862 = vmul.f32 %v855, %v226
    %v863 = vmul.f32 %v861, %v226
    %v864 = vadd.f32 %v862, 1e-05
    %v865 = vadd.f32 %v863, 1e-05
    %v866 = vrsqrt.pop %v864
    %v867 = vrsqrt.pop %v865
    %v868 = vmul.f32 %v846, %v866
    %v869 = vmul.f32 %v847, %v867
    %v871 = vlaneseq
    %v872 = vshrl.u32 %v871, 7
    %v873 = vsub.s32 0, %v872
    %v874 = vrot.slane %v829, %v873
    %v875 = vlaneseq
    %v876 = vshrl.u32 %v875, 7
    %v877 = vsub.s32 1, %v876
    %v878 = vrot.slane %v829, %v877
    %v881 = vmul.f32 %v868, %v874
    %v882 = vmul.f32 %v869, %v878
    %v884 = vlaneseq
    %v885 = vshrl.u32 %v884, 7
    %v886 = vsub.s32 0, %v885
    %v887 = vrot.slane %v831, %v886
    %v888 = vlaneseq
    %v889 = vshrl.u32 %v888, 7
    %v890 = vsub.s32 1, %v889
    %v891 = vrot.slane %v831, %v890
    %v894 = vadd.f32 %v881, %v887
    %v895 = vadd.f32 %v882, %v891
    %vm896 = vcmp.ge.f32.partialorder %v894, 0.0
    %vm897 = vcmp.ge.f32.partialorder %v895, 0.0
    %v898 = vmul.f32 %v894, 0.01
    %v899 = vmul.f32 %v895, 0.01
    %v900 = vsel %vm896, %v894, %v898
    %v901 = vsel %vm897, %v895, %v899
    %v902 = vpack.c.bf16 %v900, %v900
    %v903 = vpack.c.bf16 %v901, %v901
    %s904 = scalar_lea.vmem [#allocation4], 512
    %v905 = vld [vmem:[%s904] sm:$0xff]
    %v906 = vld [vmem:[%s904 + $0x8] sm:$0xff]
    %v907 = vld [vmem:[%s904 + $0x10] sm:$0xff]
    %v908 = vld [vmem:[%s904 + $0x18] sm:$0xff]
    %v909 = vld [vmem:[%s904 + $0x20] sm:$0xff]
    %v910 = vld [vmem:[%s904 + $0x28] sm:$0xff]
    %v911 = vld [vmem:[%s904 + $0x30] sm:$0xff]
    %v912 = vld [vmem:[%s904 + $0x38] sm:$0xff]
    %v913 = vld [vmem:[%s904 + $0x40] sm:$0xff]
    %v914 = vld [vmem:[%s904 + $0x48] sm:$0xff]
    %v915 = vld [vmem:[%s904 + $0x50] sm:$0xff]
    %v916 = vld [vmem:[%s904 + $0x58] sm:$0xff]
    %v917 = vld [vmem:[%s904 + $0x60] sm:$0xff]
    %v918 = vld [vmem:[%s904 + $0x68] sm:$0xff]
    %v919 = vld [vmem:[%s904 + $0x70] sm:$0xff]
    %v920 = vld [vmem:[%s904 + $0x78] sm:$0xff]
    %v921 = vld [vmem:[%s904 + $0x80] sm:$0xff]
    %v922 = vld [vmem:[%s904 + $0x88] sm:$0xff]
    %v923 = vld [vmem:[%s904 + $0x90] sm:$0xff]
    %v924 = vld [vmem:[%s904 + $0x98] sm:$0xff]
    %v925 = vld [vmem:[%s904 + $0xa0] sm:$0xff]
    %v926 = vld [vmem:[%s904 + $0xa8] sm:$0xff]
    %v927 = vld [vmem:[%s904 + $0xb0] sm:$0xff]
    %v928 = vld [vmem:[%s904 + $0xb8] sm:$0xff]
    %v929 = vld [vmem:[%s904 + $0xc0] sm:$0xff]
    %v930 = vld [vmem:[%s904 + $0xc8] sm:$0xff]
    %v931 = vld [vmem:[%s904 + $0xd0] sm:$0xff]
    %v932 = vld [vmem:[%s904 + $0xd8] sm:$0xff]
    %v933 = vld [vmem:[%s904 + $0xe0] sm:$0xff]
    %v934 = vld [vmem:[%s904 + $0xe8] sm:$0xff]
    %v935 = vld [vmem:[%s904 + $0xf0] sm:$0xff]
    %v936 = vld [vmem:[%s904 + $0xf8] sm:$0xff]
    %v969 = vunpack.c.l.b16 %v905
    %v970 = vunpack.c.h.b16 %v905
    %v971 = vunpack.c.l.b16 %v906
    %v972 = vunpack.c.h.b16 %v906
    %v973 = vunpack.c.l.b16 %v907
    %v974 = vunpack.c.h.b16 %v907
    %v975 = vunpack.c.l.b16 %v908
    %v976 = vunpack.c.h.b16 %v908
    %v977 = vunpack.c.l.b16 %v909
    %v978 = vunpack.c.h.b16 %v909
    %v979 = vunpack.c.l.b16 %v910
    %v980 = vunpack.c.h.b16 %v910
    %v981 = vunpack.c.l.b16 %v911
    %v982 = vunpack.c.h.b16 %v911
    %v983 = vunpack.c.l.b16 %v912
    %v984 = vunpack.c.h.b16 %v912
    %v985 = vunpack.c.l.b16 %v913
    %v986 = vunpack.c.h.b16 %v913
    %v987 = vunpack.c.l.b16 %v914
    %v988 = vunpack.c.h.b16 %v914
    %v989 = vunpack.c.l.b16 %v915
    %v990 = vunpack.c.h.b16 %v915
    %v991 = vunpack.c.l.b16 %v916
    %v992 = vunpack.c.h.b16 %v916
    %v993 = vunpack.c.l.b16 %v917
    %v994 = vunpack.c.h.b16 %v917
    %v995 = vunpack.c.l.b16 %v918
    %v996 = vunpack.c.h.b16 %v918
    %v997 = vunpack.c.l.b16 %v919
    %v998 = vunpack.c.h.b16 %v919
    %v999 = vunpack.c.l.b16 %v920
    %v1000 = vunpack.c.h.b16 %v920
    %v1001 = vunpack.c.l.b16 %v921
    %v1002 = vunpack.c.h.b16 %v921
    %v1003 = vunpack.c.l.b16 %v922
    %v1004 = vunpack.c.h.b16 %v922
    %v1005 = vunpack.c.l.b16 %v923
    %v1006 = vunpack.c.h.b16 %v923
    %v1007 = vunpack.c.l.b16 %v924
    %v1008 = vunpack.c.h.b16 %v924
    %v1009 = vunpack.c.l.b16 %v925
    %v1010 = vunpack.c.h.b16 %v925
    %v1011 = vunpack.c.l.b16 %v926
    %v1012 = vunpack.c.h.b16 %v926
    %v1013 = vunpack.c.l.b16 %v927
    %v1014 = vunpack.c.h.b16 %v927
    %v1015 = vunpack.c.l.b16 %v928
    %v1016 = vunpack.c.h.b16 %v928
    %v1017 = vunpack.c.l.b16 %v929
    %v1018 = vunpack.c.h.b16 %v929
    %v1019 = vunpack.c.l.b16 %v930
    %v1020 = vunpack.c.h.b16 %v930
    %v1021 = vunpack.c.l.b16 %v931
    %v1022 = vunpack.c.h.b16 %v931
    %v1023 = vunpack.c.l.b16 %v932
    %v1024 = vunpack.c.h.b16 %v932
    %v1025 = vunpack.c.l.b16 %v933
    %v1026 = vunpack.c.h.b16 %v933
    %v1027 = vunpack.c.l.b16 %v934
    %v1028 = vunpack.c.h.b16 %v934
    %v1029 = vunpack.c.l.b16 %v935
    %v1030 = vunpack.c.h.b16 %v935
    %v1031 = vunpack.c.l.b16 %v936
    %v1032 = vunpack.c.h.b16 %v936
    %v1033 = vpack.c.b16 %v971, %v969
    %v1034 = vpack.c.b16 %v972, %v970
    %v1035 = vpack.c.b16 %v975, %v973
    %v1036 = vpack.c.b16 %v976, %v974
    %v1037 = vpack.c.b16 %v979, %v977
    %v1038 = vpack.c.b16 %v980, %v978
    %v1039 = vpack.c.b16 %v983, %v981
    %v1040 = vpack.c.b16 %v984, %v982
    %v1041 = vpack.c.b16 %v987, %v985
    %v1042 = vpack.c.b16 %v988, %v986
    %v1043 = vpack.c.b16 %v991, %v989
    %v1044 = vpack.c.b16 %v992, %v990
    %v1045 = vpack.c.b16 %v995, %v993
    %v1046 = vpack.c.b16 %v996, %v994
    %v1047 = vpack.c.b16 %v999, %v997
    %v1048 = vpack.c.b16 %v1000, %v998
    %v1049 = vpack.c.b16 %v1003, %v1001
    %v1050 = vpack.c.b16 %v1004, %v1002
    %v1051 = vpack.c.b16 %v1007, %v1005
    %v1052 = vpack.c.b16 %v1008, %v1006
    %v1053 = vpack.c.b16 %v1011, %v1009
    %v1054 = vpack.c.b16 %v1012, %v1010
    %v1055 = vpack.c.b16 %v1015, %v1013
    %v1056 = vpack.c.b16 %v1016, %v1014
    %v1057 = vpack.c.b16 %v1019, %v1017
    %v1058 = vpack.c.b16 %v1020, %v1018
    %v1059 = vpack.c.b16 %v1023, %v1021
    %v1060 = vpack.c.b16 %v1024, %v1022
    %v1061 = vpack.c.b16 %v1027, %v1025
    %v1062 = vpack.c.b16 %v1028, %v1026
    %v1063 = vpack.c.b16 %v1031, %v1029
    %v1064 = vpack.c.b16 %v1032, %v1030
    %1097 = vmatprep.subr.bf16.mxu0 %v1048
    %1098 = vmatpush1.bf16.msra.mxu0 %v1047
    %1099 = vmatprep.subr.bf16.mxu0 %v1046
    %1100 = vmatpush1.bf16.msra.mxu0 %v1045
    %1101 = vmatprep.subr.bf16.mxu0 %v1044
    %1102 = vmatpush1.bf16.msra.mxu0 %v1043
    %1103 = vmatprep.subr.bf16.mxu0 %v1042
    %1104 = vmatpush1.bf16.msra.mxu0 %v1041
    %1105 = vmatprep.subr.bf16.mxu0 %v1040
    %1106 = vmatpush1.bf16.msra.mxu0 %v1039
    %1107 = vmatprep.subr.bf16.mxu0 %v1038
    %1108 = vmatpush1.bf16.msra.mxu0 %v1037
    %1109 = vmatprep.subr.bf16.mxu0 %v1036
    %1110 = vmatpush1.bf16.msra.mxu0 %v1035
    %1111 = vmatprep.subr.bf16.mxu0 %v1034
    %1112 = vmatpush1.bf16.msra.mxu0 %v1033
    %1113 = vmatprep.subr.bf16.mxu0 %v1064
    %1114 = vmatpush2.bf16.msra.mxu0 %v1063
    %1115 = vmatprep.subr.bf16.mxu0 %v1062
    %1116 = vmatpush2.bf16.msra.mxu0 %v1061
    %1117 = vmatprep.subr.bf16.mxu0 %v1060
    %1118 = vmatpush2.bf16.msra.mxu0 %v1059
    %1119 = vmatprep.subr.bf16.mxu0 %v1058
    %1120 = vmatpush2.bf16.msra.mxu0 %v1057
    %1121 = vmatprep.subr.bf16.mxu0 %v1056
    %1122 = vmatpush2.bf16.msra.mxu0 %v1055
    %1123 = vmatprep.subr.bf16.mxu0 %v1054
    %1124 = vmatpush2.bf16.msra.mxu0 %v1053
    %1125 = vmatprep.subr.bf16.mxu0 %v1052
    %1126 = vmatpush2.bf16.msra.mxu0 %v1051
    %1127 = vmatprep.subr.bf16.mxu0 %v1050
    %1128 = vmatpush2.bf16.msra.mxu0 %v1049
    %1129 = vmatprep.mubr.bf16.mxu0 %v903
    %1130 = vmatmul.mubr.bf16.gmra.mxu0 %v902
    %v1131 = vpop.f32.mrf.mxu0
    %v1132 = vadd.f32 0.0, %v1131
    %v1133 = vpop.f32.mrf.mxu0
    %v1134 = vadd.f32 0.0, %v1133
    %v1135 = vpop.f32.mrf.mxu0
    %v1136 = vpop.f32.mrf.mxu0
    %1137 = vdwg.mxu0
    %s1138 = scalar_lea.vmem %s5, 4
    %v1139 = vld [vmem:[%s1138] sm:$0x3]
    %s1140 = scalar_lea.vmem %s6, 4
    %v1141 = vld [vmem:[%s1140] sm:$0x3]
    %v1142 = vrot.slane %v1132, 4
    %v1143 = vadd.f32 %v1132, %v1142
    %v1144 = vrot.slane %v1143, 2
    %v1145 = vadd.f32 %v1143, %v1144
    %v1146 = vrot.slane %v1145, 1
    %v1147 = vadd.f32 %v1145, %v1146
    %v1148 = vrot.slane %v1134, 4
    %v1149 = vadd.f32 %v1134, %v1148
    %v1150 = vrot.slane %v1149, 2
    %v1151 = vadd.f32 %v1149, %v1150
    %v1152 = vrot.slane %v1151, 1
    %v1153 = vadd.f32 %v1151, %v1152
    %v1154 = vmul.f32 %v1147, %v226
    %v1155 = vmul.f32 %v1153, %v226
    %v1156 = vsub.f32 %v1132, %v1154
    %v1157 = vsub.f32 %v1134, %v1155
    %v1158 = vmul.f32 %v1156, %v1156
    %v1159 = vmul.f32 %v1157, %v1157
    %v1160 = vrot.slane %v1158, 4
    %v1161 = vadd.f32 %v1158, %v1160
    %v1162 = vrot.slane %v1161, 2
    %v1163 = vadd.f32 %v1161, %v1162
    %v1164 = vrot.slane %v1163, 1
    %v1165 = vadd.f32 %v1163, %v1164
    %v1166 = vrot.slane %v1159, 4
    %v1167 = vadd.f32 %v1159, %v1166
    %v1168 = vrot.slane %v1167, 2
    %v1169 = vadd.f32 %v1167, %v1168
    %v1170 = vrot.slane %v1169, 1
    %v1171 = vadd.f32 %v1169, %v1170
    %v1172 = vmul.f32 %v1165, %v226
    %v1173 = vmul.f32 %v1171, %v226
    %v1174 = vadd.f32 %v1172, 1e-05
    %v1175 = vadd.f32 %v1173, 1e-05
    %v1176 = vrsqrt.pop %v1174
    %v1177 = vrsqrt.pop %v1175
    %v1178 = vmul.f32 %v1156, %v1176
    %v1179 = vmul.f32 %v1157, %v1177
    %v1181 = vlaneseq
    %v1182 = vshrl.u32 %v1181, 7
    %v1183 = vsub.s32 0, %v1182
    %v1184 = vrot.slane %v1139, %v1183
    %v1185 = vlaneseq
    %v1186 = vshrl.u32 %v1185, 7
    %v1187 = vsub.s32 1, %v1186
    %v1188 = vrot.slane %v1139, %v1187
    %v1191 = vmul.f32 %v1178, %v1184
    %v1192 = vmul.f32 %v1179, %v1188
    %v1194 = vlaneseq
    %v1195 = vshrl.u32 %v1194, 7
    %v1196 = vsub.s32 0, %v1195
    %v1197 = vrot.slane %v1141, %v1196
    %v1198 = vlaneseq
    %v1199 = vshrl.u32 %v1198, 7
    %v1200 = vsub.s32 1, %v1199
    %v1201 = vrot.slane %v1141, %v1200
    %v1204 = vadd.f32 %v1191, %v1197
    %v1205 = vadd.f32 %v1192, %v1201
    %vm1206 = vcmp.ge.f32.partialorder %v1204, 0.0
    %vm1207 = vcmp.ge.f32.partialorder %v1205, 0.0
    %v1208 = vmul.f32 %v1204, 0.01
    %v1209 = vmul.f32 %v1205, 0.01
    %v1210 = vsel %vm1206, %v1204, %v1208
    %v1211 = vsel %vm1207, %v1205, %v1209
    %v1212 = vpack.c.bf16 %v1210, %v1210
    %v1213 = vpack.c.bf16 %v1211, %v1211
    %s1214 = scalar_lea.vmem [#allocation4], 768
    %v1215 = vld [vmem:[%s1214] sm:$0xff]
    %v1216 = vld [vmem:[%s1214 + $0x8] sm:$0xff]
    %v1217 = vld [vmem:[%s1214 + $0x10] sm:$0xff]
    %v1218 = vld [vmem:[%s1214 + $0x18] sm:$0xff]
    %v1219 = vld [vmem:[%s1214 + $0x20] sm:$0xff]
    %v1220 = vld [vmem:[%s1214 + $0x28] sm:$0xff]
    %v1221 = vld [vmem:[%s1214 + $0x30] sm:$0xff]
    %v1222 = vld [vmem:[%s1214 + $0x38] sm:$0xff]
    %v1223 = vld [vmem:[%s1214 + $0x40] sm:$0xff]
    %v1224 = vld [vmem:[%s1214 + $0x48] sm:$0xff]
    %v1225 = vld [vmem:[%s1214 + $0x50] sm:$0xff]
    %v1226 = vld [vmem:[%s1214 + $0x58] sm:$0xff]
    %v1227 = vld [vmem:[%s1214 + $0x60] sm:$0xff]
    %v1228 = vld [vmem:[%s1214 + $0x68] sm:$0xff]
    %v1229 = vld [vmem:[%s1214 + $0x70] sm:$0xff]
    %v1230 = vld [vmem:[%s1214 + $0x78] sm:$0xff]
    %v1231 = vld [vmem:[%s1214 + $0x80] sm:$0xff]
    %v1232 = vld [vmem:[%s1214 + $0x88] sm:$0xff]
    %v1233 = vld [vmem:[%s1214 + $0x90] sm:$0xff]
    %v1234 = vld [vmem:[%s1214 + $0x98] sm:$0xff]
    %v1235 = vld [vmem:[%s1214 + $0xa0] sm:$0xff]
    %v1236 = vld [vmem:[%s1214 + $0xa8] sm:$0xff]
    %v1237 = vld [vmem:[%s1214 + $0xb0] sm:$0xff]
    %v1238 = vld [vmem:[%s1214 + $0xb8] sm:$0xff]
    %v1239 = vld [vmem:[%s1214 + $0xc0] sm:$0xff]
    %v1240 = vld [vmem:[%s1214 + $0xc8] sm:$0xff]
    %v1241 = vld [vmem:[%s1214 + $0xd0] sm:$0xff]
    %v1242 = vld [vmem:[%s1214 + $0xd8] sm:$0xff]
    %v1243 = vld [vmem:[%s1214 + $0xe0] sm:$0xff]
    %v1244 = vld [vmem:[%s1214 + $0xe8] sm:$0xff]
    %v1245 = vld [vmem:[%s1214 + $0xf0] sm:$0xff]
    %v1246 = vld [vmem:[%s1214 + $0xf8] sm:$0xff]
    %v1279 = vunpack.c.l.b16 %v1215
    %v1280 = vunpack.c.h.b16 %v1215
    %v1281 = vunpack.c.l.b16 %v1216
    %v1282 = vunpack.c.h.b16 %v1216
    %v1283 = vunpack.c.l.b16 %v1217
    %v1284 = vunpack.c.h.b16 %v1217
    %v1285 = vunpack.c.l.b16 %v1218
    %v1286 = vunpack.c.h.b16 %v1218
    %v1287 = vunpack.c.l.b16 %v1219
    %v1288 = vunpack.c.h.b16 %v1219
    %v1289 = vunpack.c.l.b16 %v1220
    %v1290 = vunpack.c.h.b16 %v1220
    %v1291 = vunpack.c.l.b16 %v1221
    %v1292 = vunpack.c.h.b16 %v1221
    %v1293 = vunpack.c.l.b16 %v1222
    %v1294 = vunpack.c.h.b16 %v1222
    %v1295 = vunpack.c.l.b16 %v1223
    %v1296 = vunpack.c.h.b16 %v1223
    %v1297 = vunpack.c.l.b16 %v1224
    %v1298 = vunpack.c.h.b16 %v1224
    %v1299 = vunpack.c.l.b16 %v1225
    %v1300 = vunpack.c.h.b16 %v1225
    %v1301 = vunpack.c.l.b16 %v1226
    %v1302 = vunpack.c.h.b16 %v1226
    %v1303 = vunpack.c.l.b16 %v1227
    %v1304 = vunpack.c.h.b16 %v1227
    %v1305 = vunpack.c.l.b16 %v1228
    %v1306 = vunpack.c.h.b16 %v1228
    %v1307 = vunpack.c.l.b16 %v1229
    %v1308 = vunpack.c.h.b16 %v1229
    %v1309 = vunpack.c.l.b16 %v1230
    %v1310 = vunpack.c.h.b16 %v1230
    %v1311 = vunpack.c.l.b16 %v1231
    %v1312 = vunpack.c.h.b16 %v1231
    %v1313 = vunpack.c.l.b16 %v1232
    %v1314 = vunpack.c.h.b16 %v1232
    %v1315 = vunpack.c.l.b16 %v1233
    %v1316 = vunpack.c.h.b16 %v1233
    %v1317 = vunpack.c.l.b16 %v1234
    %v1318 = vunpack.c.h.b16 %v1234
    %v1319 = vunpack.c.l.b16 %v1235
    %v1320 = vunpack.c.h.b16 %v1235
    %v1321 = vunpack.c.l.b16 %v1236
    %v1322 = vunpack.c.h.b16 %v1236
    %v1323 = vunpack.c.l.b16 %v1237
    %v1324 = vunpack.c.h.b16 %v1237
    %v1325 = vunpack.c.l.b16 %v1238
    %v1326 = vunpack.c.h.b16 %v1238
    %v1327 = vunpack.c.l.b16 %v1239
    %v1328 = vunpack.c.h.b16 %v1239
    %v1329 = vunpack.c.l.b16 %v1240
    %v1330 = vunpack.c.h.b16 %v1240
    %v1331 = vunpack.c.l.b16 %v1241
    %v1332 = vunpack.c.h.b16 %v1241
    %v1333 = vunpack.c.l.b16 %v1242
    %v1334 = vunpack.c.h.b16 %v1242
    %v1335 = vunpack.c.l.b16 %v1243
    %v1336 = vunpack.c.h.b16 %v1243
    %v1337 = vunpack.c.l.b16 %v1244
    %v1338 = vunpack.c.h.b16 %v1244
    %v1339 = vunpack.c.l.b16 %v1245
    %v1340 = vunpack.c.h.b16 %v1245
    %v1341 = vunpack.c.l.b16 %v1246
    %v1342 = vunpack.c.h.b16 %v1246
    %v1343 = vpack.c.b16 %v1281, %v1279
    %v1344 = vpack.c.b16 %v1282, %v1280
    %v1345 = vpack.c.b16 %v1285, %v1283
    %v1346 = vpack.c.b16 %v1286, %v1284
    %v1347 = vpack.c.b16 %v1289, %v1287
    %v1348 = vpack.c.b16 %v1290, %v1288
    %v1349 = vpack.c.b16 %v1293, %v1291
    %v1350 = vpack.c.b16 %v1294, %v1292
    %v1351 = vpack.c.b16 %v1297, %v1295
    %v1352 = vpack.c.b16 %v1298, %v1296
    %v1353 = vpack.c.b16 %v1301, %v1299
    %v1354 = vpack.c.b16 %v1302, %v1300
    %v1355 = vpack.c.b16 %v1305, %v1303
    %v1356 = vpack.c.b16 %v1306, %v1304
    %v1357 = vpack.c.b16 %v1309, %v1307
    %v1358 = vpack.c.b16 %v1310, %v1308
    %v1359 = vpack.c.b16 %v1313, %v1311
    %v1360 = vpack.c.b16 %v1314, %v1312
    %v1361 = vpack.c.b16 %v1317, %v1315
    %v1362 = vpack.c.b16 %v1318, %v1316
    %v1363 = vpack.c.b16 %v1321, %v1319
    %v1364 = vpack.c.b16 %v1322, %v1320
    %v1365 = vpack.c.b16 %v1325, %v1323
    %v1366 = vpack.c.b16 %v1326, %v1324
    %v1367 = vpack.c.b16 %v1329, %v1327
    %v1368 = vpack.c.b16 %v1330, %v1328
    %v1369 = vpack.c.b16 %v1333, %v1331
    %v1370 = vpack.c.b16 %v1334, %v1332
    %v1371 = vpack.c.b16 %v1337, %v1335
    %v1372 = vpack.c.b16 %v1338, %v1336
    %v1373 = vpack.c.b16 %v1341, %v1339
    %v1374 = vpack.c.b16 %v1342, %v1340
    %1407 = vmatprep.subr.bf16.mxu0 %v1358
    %1408 = vmatpush1.bf16.msra.mxu0 %v1357
    %1409 = vmatprep.subr.bf16.mxu0 %v1356
    %1410 = vmatpush1.bf16.msra.mxu0 %v1355
    %1411 = vmatprep.subr.bf16.mxu0 %v1354
    %1412 = vmatpush1.bf16.msra.mxu0 %v1353
    %1413 = vmatprep.subr.bf16.mxu0 %v1352
    %1414 = vmatpush1.bf16.msra.mxu0 %v1351
    %1415 = vmatprep.subr.bf16.mxu0 %v1350
    %1416 = vmatpush1.bf16.msra.mxu0 %v1349
    %1417 = vmatprep.subr.bf16.mxu0 %v1348
    %1418 = vmatpush1.bf16.msra.mxu0 %v1347
    %1419 = vmatprep.subr.bf16.mxu0 %v1346
    %1420 = vmatpush1.bf16.msra.mxu0 %v1345
    %1421 = vmatprep.subr.bf16.mxu0 %v1344
    %1422 = vmatpush1.bf16.msra.mxu0 %v1343
    %1423 = vmatprep.subr.bf16.mxu0 %v1374
    %1424 = vmatpush2.bf16.msra.mxu0 %v1373
    %1425 = vmatprep.subr.bf16.mxu0 %v1372
    %1426 = vmatpush2.bf16.msra.mxu0 %v1371
    %1427 = vmatprep.subr.bf16.mxu0 %v1370
    %1428 = vmatpush2.bf16.msra.mxu0 %v1369
    %1429 = vmatprep.subr.bf16.mxu0 %v1368
    %1430 = vmatpush2.bf16.msra.mxu0 %v1367
    %1431 = vmatprep.subr.bf16.mxu0 %v1366
    %1432 = vmatpush2.bf16.msra.mxu0 %v1365
    %1433 = vmatprep.subr.bf16.mxu0 %v1364
    %1434 = vmatpush2.bf16.msra.mxu0 %v1363
    %1435 = vmatprep.subr.bf16.mxu0 %v1362
    %1436 = vmatpush2.bf16.msra.mxu0 %v1361
    %1437 = vmatprep.subr.bf16.mxu0 %v1360
    %1438 = vmatpush2.bf16.msra.mxu0 %v1359
    %1439 = vmatprep.mubr.bf16.mxu0 %v1213
    %1440 = vmatmul.mubr.bf16.gmra.mxu0 %v1212
    %v1441 = vpop.f32.mrf.mxu0
    %v1442 = vadd.f32 0.0, %v1441
    %v1443 = vpop.f32.mrf.mxu0
    %v1444 = vpop.f32.mrf.mxu0
    %v1445 = vpop.f32.mrf.mxu0
    %1446 = vdwg.mxu0
    %s1447 = scalar_lea.vmem %s5, 6
    %v1448 = vld [vmem:[%s1447] sm:$0x3]
    %s1449 = scalar_lea.vmem %s6, 6
    %v1450 = vld [vmem:[%s1449] sm:$0x3]
    %v1451 = vrot.slane %v1442, 4
    %v1452 = vadd.f32 %v1442, %v1451
    %v1453 = vrot.slane %v1452, 2
    %v1454 = vadd.f32 %v1452, %v1453
    %v1455 = vrot.slane %v1454, 1
    %v1456 = vadd.f32 %v1454, %v1455
    %v1457 = vmul.f32 %v1456, %v226
    %v1458 = vsub.f32 %v1442, %v1457
    %v1459 = vmul.f32 %v1458, %v1458
    %v1460 = vrot.slane %v1459, 4
    %v1461 = vadd.f32 %v1459, %v1460
    %v1462 = vrot.slane %v1461, 2
    %v1463 = vadd.f32 %v1461, %v1462
    %v1464 = vrot.slane %v1463, 1
    %v1465 = vadd.f32 %v1463, %v1464
    %v1466 = vmul.f32 %v1465, %v226
    %v1467 = vadd.f32 %v1466, 1e-05
    %v1468 = vrsqrt.pop %v1467
    %v1469 = vmul.f32 %v1458, %v1468
    %v1471 = vlaneseq
    %v1472 = vshrl.u32 %v1471, 7
    %v1473 = vsub.s32 0, %v1472
    %v1474 = vrot.slane %v1448, %v1473
    %v1476 = vmul.f32 %v1469, %v1474
    %v1478 = vlaneseq
    %v1479 = vshrl.u32 %v1478, 7
    %v1480 = vsub.s32 0, %v1479
    %v1481 = vrot.slane %v1450, %v1480
    %v1483 = vadd.f32 %v1476, %v1481
    %vm1484 = vcmp.ge.f32.partialorder %v1483, 0.0
    %v1485 = vmul.f32 %v1483, 0.01
    %v1486 = vsel %vm1484, %v1483, %v1485
    %1487 = vst [vmem:[%s9] sm:$0xff] %v1486
    %s1488 = scalar_lea.vmem %s0, 4
    %v1489 = vld [vmem:[%s1488] sm:$0xf]
    %s1490 = scalar_lea.vmem [#allocation2], 128
    %v1491 = vld [vmem:[%s1490] sm:$0xff]
    %v1492 = vld [vmem:[%s1490 + $0x8] sm:$0xff]
    %v1493 = vld [vmem:[%s1490 + $0x10] sm:$0xff]
    %v1494 = vld [vmem:[%s1490 + $0x18] sm:$0xff]
    %v1495 = vld [vmem:[%s1490 + $0x20] sm:$0xff]
    %v1496 = vld [vmem:[%s1490 + $0x28] sm:$0xff]
    %v1497 = vld [vmem:[%s1490 + $0x30] sm:$0xff]
    %v1498 = vld [vmem:[%s1490 + $0x38] sm:$0xff]
    %v1499 = vld [vmem:[%s1490 + $0x40] sm:$0xff]
    %v1500 = vld [vmem:[%s1490 + $0x48] sm:$0xff]
    %v1501 = vld [vmem:[%s1490 + $0x50] sm:$0xff]
    %v1502 = vld [vmem:[%s1490 + $0x58] sm:$0xff]
    %v1503 = vld [vmem:[%s1490 + $0x60] sm:$0xff]
    %v1504 = vld [vmem:[%s1490 + $0x68] sm:$0xff]
    %v1505 = vld [vmem:[%s1490 + $0x70] sm:$0xff]
    %v1506 = vld [vmem:[%s1490 + $0x78] sm:$0xff]
    %s1507 = scalar_lea.vmem %s2, 2
    %v1508 = vld [vmem:[%s1507] sm:$0x3]
    %s1509 = scalar_lea.vmem %s3, 2
    %v1510 = vld [vmem:[%s1509] sm:$0x3]
    %v1527 = vunpack.c.l.b16 %v1491
    %v1528 = vunpack.c.h.b16 %v1491
    %v1529 = vunpack.c.l.b16 %v1492
    %v1530 = vunpack.c.h.b16 %v1492
    %v1531 = vunpack.c.l.b16 %v1493
    %v1532 = vunpack.c.h.b16 %v1493
    %v1533 = vunpack.c.l.b16 %v1494
    %v1534 = vunpack.c.h.b16 %v1494
    %v1535 = vunpack.c.l.b16 %v1495
    %v1536 = vunpack.c.h.b16 %v1495
    %v1537 = vunpack.c.l.b16 %v1496
    %v1538 = vunpack.c.h.b16 %v1496
    %v1539 = vunpack.c.l.b16 %v1497
    %v1540 = vunpack.c.h.b16 %v1497
    %v1541 = vunpack.c.l.b16 %v1498
    %v1542 = vunpack.c.h.b16 %v1498
    %v1543 = vunpack.c.l.b16 %v1499
    %v1544 = vunpack.c.h.b16 %v1499
    %v1545 = vunpack.c.l.b16 %v1500
    %v1546 = vunpack.c.h.b16 %v1500
    %v1547 = vunpack.c.l.b16 %v1501
    %v1548 = vunpack.c.h.b16 %v1501
    %v1549 = vunpack.c.l.b16 %v1502
    %v1550 = vunpack.c.h.b16 %v1502
    %v1551 = vunpack.c.l.b16 %v1503
    %v1552 = vunpack.c.h.b16 %v1503
    %v1553 = vunpack.c.l.b16 %v1504
    %v1554 = vunpack.c.h.b16 %v1504
    %v1555 = vunpack.c.l.b16 %v1505
    %v1556 = vunpack.c.h.b16 %v1505
    %v1557 = vunpack.c.l.b16 %v1506
    %v1558 = vunpack.c.h.b16 %v1506
    %v1559 = vpack.c.b16 %v1529, %v1527
    %v1560 = vpack.c.b16 %v1530, %v1528
    %v1561 = vpack.c.b16 %v1533, %v1531
    %v1562 = vpack.c.b16 %v1534, %v1532
    %v1563 = vpack.c.b16 %v1537, %v1535
    %v1564 = vpack.c.b16 %v1538, %v1536
    %v1565 = vpack.c.b16 %v1541, %v1539
    %v1566 = vpack.c.b16 %v1542, %v1540
    %v1567 = vpack.c.b16 %v1545, %v1543
    %v1568 = vpack.c.b16 %v1546, %v1544
    %v1569 = vpack.c.b16 %v1549, %v1547
    %v1570 = vpack.c.b16 %v1550, %v1548
    %v1571 = vpack.c.b16 %v1553, %v1551
    %v1572 = vpack.c.b16 %v1554, %v1552
    %v1573 = vpack.c.b16 %v1557, %v1555
    %v1574 = vpack.c.b16 %v1558, %v1556
    %1591 = vmatprep.subr.bf16.mxu0 %v1574
    %1592 = vmatpush1.bf16.msra.mxu0 %v1573
    %1593 = vmatprep.subr.bf16.mxu0 %v1572
    %1594 = vmatpush1.bf16.msra.mxu0 %v1571
    %1595 = vmatprep.subr.bf16.mxu0 %v1570
    %1596 = vmatpush1.bf16.msra.mxu0 %v1569
    %1597 = vmatprep.subr.bf16.mxu0 %v1568
    %1598 = vmatpush1.bf16.msra.mxu0 %v1567
    %1599 = vmatprep.subr.bf16.mxu0 %v1566
    %1600 = vmatpush1.bf16.msra.mxu0 %v1565
    %1601 = vmatprep.subr.bf16.mxu0 %v1564
    %1602 = vmatpush1.bf16.msra.mxu0 %v1563
    %1603 = vmatprep.subr.bf16.mxu0 %v1562
    %1604 = vmatpush1.bf16.msra.mxu0 %v1561
    %1605 = vmatprep.subr.bf16.mxu0 %v1560
    %1606 = vmatpush1.bf16.msra.mxu0 %v1559
    %1607 = vmatprep.subr.bf16.mxu0 0
    %1608 = vmatpush2.bf16.msra.mxu0 0
    %1609 = vmatprep.subr.bf16.mxu0 0
    %1610 = vmatpush2.bf16.msra.mxu0 0
    %1611 = vmatprep.subr.bf16.mxu0 0
    %1612 = vmatpush2.bf16.msra.mxu0 0
    %1613 = vmatprep.subr.bf16.mxu0 0
    %1614 = vmatpush2.bf16.msra.mxu0 0
    %1615 = vmatprep.subr.bf16.mxu0 0
    %1616 = vmatpush2.bf16.msra.mxu0 0
    %1617 = vmatprep.subr.bf16.mxu0 0
    %1618 = vmatpush2.bf16.msra.mxu0 0
    %1619 = vmatprep.subr.bf16.mxu0 0
    %1620 = vmatpush2.bf16.msra.mxu0 0
    %1621 = vmatprep.subr.bf16.mxu0 0
    %1622 = vmatpush2.bf16.msra.mxu0 0
    %1623 = vmatprep.mubr.bf16.mxu0 0
    %1624 = vmatmul.mubr.bf16.gmra.mxu0 %v1489
    %v1625 = vpop.f32.mrf.mxu0
    %v1626 = vadd.f32 0.0, %v1625
    %v1627 = vpop.f32.mrf.mxu0
    %v1628 = vadd.f32 0.0, %v1627
    %v1629 = vpop.f32.mrf.mxu0
    %v1630 = vpop.f32.mrf.mxu0
    %1631 = vdwg.mxu0
    %v1632 = vrot.slane %v1626, 4
    %v1633 = vadd.f32 %v1626, %v1632
    %v1634 = vrot.slane %v1633, 2
    %v1635 = vadd.f32 %v1633, %v1634
    %v1636 = vrot.slane %v1635, 1
    %v1637 = vadd.f32 %v1635, %v1636
    %v1638 = vrot.slane %v1628, 4
    %v1639 = vadd.f32 %v1628, %v1638
    %v1640 = vrot.slane %v1639, 2
    %v1641 = vadd.f32 %v1639, %v1640
    %v1642 = vrot.slane %v1641, 1
    %v1643 = vadd.f32 %v1641, %v1642
    %v1644 = vmul.f32 %v1637, %v226
    %v1645 = vmul.f32 %v1643, %v226
    %v1646 = vsub.f32 %v1626, %v1644
    %v1647 = vsub.f32 %v1628, %v1645
    %v1648 = vmul.f32 %v1646, %v1646
    %v1649 = vmul.f32 %v1647, %v1647
    %v1650 = vrot.slane %v1648, 4
    %v1651 = vadd.f32 %v1648, %v1650
    %v1652 = vrot.slane %v1651, 2
    %v1653 = vadd.f32 %v1651, %v1652
    %v1654 = vrot.slane %v1653, 1
    %v1655 = vadd.f32 %v1653, %v1654
    %v1656 = vrot.slane %v1649, 4
    %v1657 = vadd.f32 %v1649, %v1656
    %v1658 = vrot.slane %v1657, 2
    %v1659 = vadd.f32 %v1657, %v1658
    %v1660 = vrot.slane %v1659, 1
    %v1661 = vadd.f32 %v1659, %v1660
    %v1662 = vmul.f32 %v1655, %v226
    %v1663 = vmul.f32 %v1661, %v226
    %v1664 = vadd.f32 %v1662, 1e-05
    %v1665 = vadd.f32 %v1663, 1e-05
    %v1666 = vrsqrt.pop %v1664
    %v1667 = vrsqrt.pop %v1665
    %v1668 = vmul.f32 %v1646, %v1666
    %v1669 = vmul.f32 %v1647, %v1667
    %v1671 = vlaneseq
    %v1672 = vshrl.u32 %v1671, 7
    %v1673 = vsub.s32 0, %v1672
    %v1674 = vrot.slane %v1508, %v1673
    %v1675 = vlaneseq
    %v1676 = vshrl.u32 %v1675, 7
    %v1677 = vsub.s32 1, %v1676
    %v1678 = vrot.slane %v1508, %v1677
    %v1681 = vmul.f32 %v1668, %v1674
    %v1682 = vmul.f32 %v1669, %v1678
    %v1684 = vlaneseq
    %v1685 = vshrl.u32 %v1684, 7
    %v1686 = vsub.s32 0, %v1685
    %v1687 = vrot.slane %v1510, %v1686
    %v1688 = vlaneseq
    %v1689 = vshrl.u32 %v1688, 7
    %v1690 = vsub.s32 1, %v1689
    %v1691 = vrot.slane %v1510, %v1690
    %v1694 = vadd.f32 %v1681, %v1687
    %v1695 = vadd.f32 %v1682, %v1691
    %vm1696 = vcmp.ge.f32.partialorder %v1694, 0.0
    %vm1697 = vcmp.ge.f32.partialorder %v1695, 0.0
    %v1698 = vmul.f32 %v1694, 0.01
    %v1699 = vmul.f32 %v1695, 0.01
    %v1700 = vsel %vm1696, %v1694, %v1698
    %v1701 = vsel %vm1697, %v1695, %v1699
    %v1702 = vpack.c.bf16 %v1700, %v1700
    %v1703 = vpack.c.bf16 %v1701, %v1701
    %s1704 = scalar_lea.vmem [#allocation4], 1024
    %v1705 = vld [vmem:[%s1704] sm:$0xff]
    %v1706 = vld [vmem:[%s1704 + $0x8] sm:$0xff]
    %v1707 = vld [vmem:[%s1704 + $0x10] sm:$0xff]
    %v1708 = vld [vmem:[%s1704 + $0x18] sm:$0xff]
    %v1709 = vld [vmem:[%s1704 + $0x20] sm:$0xff]
    %v1710 = vld [vmem:[%s1704 + $0x28] sm:$0xff]
    %v1711 = vld [vmem:[%s1704 + $0x30] sm:$0xff]
    %v1712 = vld [vmem:[%s1704 + $0x38] sm:$0xff]
    %v1713 = vld [vmem:[%s1704 + $0x40] sm:$0xff]
    %v1714 = vld [vmem:[%s1704 + $0x48] sm:$0xff]
    %v1715 = vld [vmem:[%s1704 + $0x50] sm:$0xff]
    %v1716 = vld [vmem:[%s1704 + $0x58] sm:$0xff]
    %v1717 = vld [vmem:[%s1704 + $0x60] sm:$0xff]
    %v1718 = vld [vmem:[%s1704 + $0x68] sm:$0xff]
    %v1719 = vld [vmem:[%s1704 + $0x70] sm:$0xff]
    %v1720 = vld [vmem:[%s1704 + $0x78] sm:$0xff]
    %v1721 = vld [vmem:[%s1704 + $0x80] sm:$0xff]
    %v1722 = vld [vmem:[%s1704 + $0x88] sm:$0xff]
    %v1723 = vld [vmem:[%s1704 + $0x90] sm:$0xff]
    %v1724 = vld [vmem:[%s1704 + $0x98] sm:$0xff]
    %v1725 = vld [vmem:[%s1704 + $0xa0] sm:$0xff]
    %v1726 = vld [vmem:[%s1704 + $0xa8] sm:$0xff]
    %v1727 = vld [vmem:[%s1704 + $0xb0] sm:$0xff]
    %v1728 = vld [vmem:[%s1704 + $0xb8] sm:$0xff]
    %v1729 = vld [vmem:[%s1704 + $0xc0] sm:$0xff]
    %v1730 = vld [vmem:[%s1704 + $0xc8] sm:$0xff]
    %v1731 = vld [vmem:[%s1704 + $0xd0] sm:$0xff]
    %v1732 = vld [vmem:[%s1704 + $0xd8] sm:$0xff]
    %v1733 = vld [vmem:[%s1704 + $0xe0] sm:$0xff]
    %v1734 = vld [vmem:[%s1704 + $0xe8] sm:$0xff]
    %v1735 = vld [vmem:[%s1704 + $0xf0] sm:$0xff]
    %v1736 = vld [vmem:[%s1704 + $0xf8] sm:$0xff]
    %v1769 = vunpack.c.l.b16 %v1705
    %v1770 = vunpack.c.h.b16 %v1705
    %v1771 = vunpack.c.l.b16 %v1706
    %v1772 = vunpack.c.h.b16 %v1706
    %v1773 = vunpack.c.l.b16 %v1707
    %v1774 = vunpack.c.h.b16 %v1707
    %v1775 = vunpack.c.l.b16 %v1708
    %v1776 = vunpack.c.h.b16 %v1708
    %v1777 = vunpack.c.l.b16 %v1709
    %v1778 = vunpack.c.h.b16 %v1709
    %v1779 = vunpack.c.l.b16 %v1710
    %v1780 = vunpack.c.h.b16 %v1710
    %v1781 = vunpack.c.l.b16 %v1711
    %v1782 = vunpack.c.h.b16 %v1711
    %v1783 = vunpack.c.l.b16 %v1712
    %v1784 = vunpack.c.h.b16 %v1712
    %v1785 = vunpack.c.l.b16 %v1713
    %v1786 = vunpack.c.h.b16 %v1713
    %v1787 = vunpack.c.l.b16 %v1714
    %v1788 = vunpack.c.h.b16 %v1714
    %v1789 = vunpack.c.l.b16 %v1715
    %v1790 = vunpack.c.h.b16 %v1715
    %v1791 = vunpack.c.l.b16 %v1716
    %v1792 = vunpack.c.h.b16 %v1716
    %v1793 = vunpack.c.l.b16 %v1717
    %v1794 = vunpack.c.h.b16 %v1717
    %v1795 = vunpack.c.l.b16 %v1718
    %v1796 = vunpack.c.h.b16 %v1718
    %v1797 = vunpack.c.l.b16 %v1719
    %v1798 = vunpack.c.h.b16 %v1719
    %v1799 = vunpack.c.l.b16 %v1720
    %v1800 = vunpack.c.h.b16 %v1720
    %v1801 = vunpack.c.l.b16 %v1721
    %v1802 = vunpack.c.h.b16 %v1721
    %v1803 = vunpack.c.l.b16 %v1722
    %v1804 = vunpack.c.h.b16 %v1722
    %v1805 = vunpack.c.l.b16 %v1723
    %v1806 = vunpack.c.h.b16 %v1723
    %v1807 = vunpack.c.l.b16 %v1724
    %v1808 = vunpack.c.h.b16 %v1724
    %v1809 = vunpack.c.l.b16 %v1725
    %v1810 = vunpack.c.h.b16 %v1725
    %v1811 = vunpack.c.l.b16 %v1726
    %v1812 = vunpack.c.h.b16 %v1726
    %v1813 = vunpack.c.l.b16 %v1727
    %v1814 = vunpack.c.h.b16 %v1727
    %v1815 = vunpack.c.l.b16 %v1728
    %v1816 = vunpack.c.h.b16 %v1728
    %v1817 = vunpack.c.l.b16 %v1729
    %v1818 = vunpack.c.h.b16 %v1729
    %v1819 = vunpack.c.l.b16 %v1730
    %v1820 = vunpack.c.h.b16 %v1730
    %v1821 = vunpack.c.l.b16 %v1731
    %v1822 = vunpack.c.h.b16 %v1731
    %v1823 = vunpack.c.l.b16 %v1732
    %v1824 = vunpack.c.h.b16 %v1732
    %v1825 = vunpack.c.l.b16 %v1733
    %v1826 = vunpack.c.h.b16 %v1733
    %v1827 = vunpack.c.l.b16 %v1734
    %v1828 = vunpack.c.h.b16 %v1734
    %v1829 = vunpack.c.l.b16 %v1735
    %v1830 = vunpack.c.h.b16 %v1735
    %v1831 = vunpack.c.l.b16 %v1736
    %v1832 = vunpack.c.h.b16 %v1736
    %v1833 = vpack.c.b16 %v1771, %v1769
    %v1834 = vpack.c.b16 %v1772, %v1770
    %v1835 = vpack.c.b16 %v1775, %v1773
    %v1836 = vpack.c.b16 %v1776, %v1774
    %v1837 = vpack.c.b16 %v1779, %v1777
    %v1838 = vpack.c.b16 %v1780, %v1778
    %v1839 = vpack.c.b16 %v1783, %v1781
    %v1840 = vpack.c.b16 %v1784, %v1782
    %v1841 = vpack.c.b16 %v1787, %v1785
    %v1842 = vpack.c.b16 %v1788, %v1786
    %v1843 = vpack.c.b16 %v1791, %v1789
    %v1844 = vpack.c.b16 %v1792, %v1790
    %v1845 = vpack.c.b16 %v1795, %v1793
    %v1846 = vpack.c.b16 %v1796, %v1794
    %v1847 = vpack.c.b16 %v1799, %v1797
    %v1848 = vpack.c.b16 %v1800, %v1798
    %v1849 = vpack.c.b16 %v1803, %v1801
    %v1850 = vpack.c.b16 %v1804, %v1802
    %v1851 = vpack.c.b16 %v1807, %v1805
    %v1852 = vpack.c.b16 %v1808, %v1806
    %v1853 = vpack.c.b16 %v1811, %v1809
    %v1854 = vpack.c.b16 %v1812, %v1810
    %v1855 = vpack.c.b16 %v1815, %v1813
    %v1856 = vpack.c.b16 %v1816, %v1814
    %v1857 = vpack.c.b16 %v1819, %v1817
    %v1858 = vpack.c.b16 %v1820, %v1818
    %v1859 = vpack.c.b16 %v1823, %v1821
    %v1860 = vpack.c.b16 %v1824, %v1822
    %v1861 = vpack.c.b16 %v1827, %v1825
    %v1862 = vpack.c.b16 %v1828, %v1826
    %v1863 = vpack.c.b16 %v1831, %v1829
    %v1864 = vpack.c.b16 %v1832, %v1830
    %1897 = vmatprep.subr.bf16.mxu0 %v1848
    %1898 = vmatpush1.bf16.msra.mxu0 %v1847
    %1899 = vmatprep.subr.bf16.mxu0 %v1846
    %1900 = vmatpush1.bf16.msra.mxu0 %v1845
    %1901 = vmatprep.subr.bf16.mxu0 %v1844
    %1902 = vmatpush1.bf16.msra.mxu0 %v1843
    %1903 = vmatprep.subr.bf16.mxu0 %v1842
    %1904 = vmatpush1.bf16.msra.mxu0 %v1841
    %1905 = vmatprep.subr.bf16.mxu0 %v1840
    %1906 = vmatpush1.bf16.msra.mxu0 %v1839
    %1907 = vmatprep.subr.bf16.mxu0 %v1838
    %1908 = vmatpush1.bf16.msra.mxu0 %v1837
    %1909 = vmatprep.subr.bf16.mxu0 %v1836
    %1910 = vmatpush1.bf16.msra.mxu0 %v1835
    %1911 = vmatprep.subr.bf16.mxu0 %v1834
    %1912 = vmatpush1.bf16.msra.mxu0 %v1833
    %1913 = vmatprep.subr.bf16.mxu0 %v1864
    %1914 = vmatpush2.bf16.msra.mxu0 %v1863
    %1915 = vmatprep.subr.bf16.mxu0 %v1862
    %1916 = vmatpush2.bf16.msra.mxu0 %v1861
    %1917 = vmatprep.subr.bf16.mxu0 %v1860
    %1918 = vmatpush2.bf16.msra.mxu0 %v1859
    %1919 = vmatprep.subr.bf16.mxu0 %v1858
    %1920 = vmatpush2.bf16.msra.mxu0 %v1857
    %1921 = vmatprep.subr.bf16.mxu0 %v1856
    %1922 = vmatpush2.bf16.msra.mxu0 %v1855
    %1923 = vmatprep.subr.bf16.mxu0 %v1854
    %1924 = vmatpush2.bf16.msra.mxu0 %v1853
    %1925 = vmatprep.subr.bf16.mxu0 %v1852
    %1926 = vmatpush2.bf16.msra.mxu0 %v1851
    %1927 = vmatprep.subr.bf16.mxu0 %v1850
    %1928 = vmatpush2.bf16.msra.mxu0 %v1849
    %1929 = vmatprep.mubr.bf16.mxu0 %v1703
    %1930 = vmatmul.mubr.bf16.gmra.mxu0 %v1702
    %v1931 = vpop.f32.mrf.mxu0
    %v1932 = vadd.f32 0.0, %v1931
    %v1933 = vpop.f32.mrf.mxu0
    %v1934 = vadd.f32 0.0, %v1933
    %v1935 = vpop.f32.mrf.mxu0
    %v1936 = vpop.f32.mrf.mxu0
    %1937 = vdwg.mxu0
    %s1938 = scalar_lea.vmem %s5, 8
    %v1939 = vld [vmem:[%s1938] sm:$0x3]
    %s1940 = scalar_lea.vmem %s6, 8
    %v1941 = vld [vmem:[%s1940] sm:$0x3]
    %v1942 = vrot.slane %v1932, 4
    %v1943 = vadd.f32 %v1932, %v1942
    %v1944 = vrot.slane %v1943, 2
    %v1945 = vadd.f32 %v1943, %v1944
    %v1946 = vrot.slane %v1945, 1
    %v1947 = vadd.f32 %v1945, %v1946
    %v1948 = vrot.slane %v1934, 4
    %v1949 = vadd.f32 %v1934, %v1948
    %v1950 = vrot.slane %v1949, 2
    %v1951 = vadd.f32 %v1949, %v1950
    %v1952 = vrot.slane %v1951, 1
    %v1953 = vadd.f32 %v1951, %v1952
    %v1954 = vmul.f32 %v1947, %v226
    %v1955 = vmul.f32 %v1953, %v226
    %v1956 = vsub.f32 %v1932, %v1954
    %v1957 = vsub.f32 %v1934, %v1955
    %v1958 = vmul.f32 %v1956, %v1956
    %v1959 = vmul.f32 %v1957, %v1957
    %v1960 = vrot.slane %v1958, 4
    %v1961 = vadd.f32 %v1958, %v1960
    %v1962 = vrot.slane %v1961, 2
    %v1963 = vadd.f32 %v1961, %v1962
    %v1964 = vrot.slane %v1963, 1
    %v1965 = vadd.f32 %v1963, %v1964
    %v1966 = vrot.slane %v1959, 4
    %v1967 = vadd.f32 %v1959, %v1966
    %v1968 = vrot.slane %v1967, 2
    %v1969 = vadd.f32 %v1967, %v1968
    %v1970 = vrot.slane %v1969, 1
    %v1971 = vadd.f32 %v1969, %v1970
    %v1972 = vmul.f32 %v1965, %v226
    %v1973 = vmul.f32 %v1971, %v226
    %v1974 = vadd.f32 %v1972, 1e-05
    %v1975 = vadd.f32 %v1973, 1e-05
    %v1976 = vrsqrt.pop %v1974
    %v1977 = vrsqrt.pop %v1975
    %v1978 = vmul.f32 %v1956, %v1976
    %v1979 = vmul.f32 %v1957, %v1977
    %v1981 = vlaneseq
    %v1982 = vshrl.u32 %v1981, 7
    %v1983 = vsub.s32 0, %v1982
    %v1984 = vrot.slane %v1939, %v1983
    %v1985 = vlaneseq
    %v1986 = vshrl.u32 %v1985, 7
    %v1987 = vsub.s32 1, %v1986
    %v1988 = vrot.slane %v1939, %v1987
    %v1991 = vmul.f32 %v1978, %v1984
    %v1992 = vmul.f32 %v1979, %v1988
    %v1994 = vlaneseq
    %v1995 = vshrl.u32 %v1994, 7
    %v1996 = vsub.s32 0, %v1995
    %v1997 = vrot.slane %v1941, %v1996
    %v1998 = vlaneseq
    %v1999 = vshrl.u32 %v1998, 7
    %v2000 = vsub.s32 1, %v1999
    %v2001 = vrot.slane %v1941, %v2000
    %v2004 = vadd.f32 %v1991, %v1997
    %v2005 = vadd.f32 %v1992, %v2001
    %vm2006 = vcmp.ge.f32.partialorder %v2004, 0.0
    %vm2007 = vcmp.ge.f32.partialorder %v2005, 0.0
    %v2008 = vmul.f32 %v2004, 0.01
    %v2009 = vmul.f32 %v2005, 0.01
    %v2010 = vsel %vm2006, %v2004, %v2008
    %v2011 = vsel %vm2007, %v2005, %v2009
    %v2012 = vpack.c.bf16 %v2010, %v2010
    %v2013 = vpack.c.bf16 %v2011, %v2011
    %s2014 = scalar_lea.vmem [#allocation4], 1280
    %v2015 = vld [vmem:[%s2014] sm:$0xff]
    %v2016 = vld [vmem:[%s2014 + $0x8] sm:$0xff]
    %v2017 = vld [vmem:[%s2014 + $0x10] sm:$0xff]
    %v2018 = vld [vmem:[%s2014 + $0x18] sm:$0xff]
    %v2019 = vld [vmem:[%s2014 + $0x20] sm:$0xff]
    %v2020 = vld [vmem:[%s2014 + $0x28] sm:$0xff]
    %v2021 = vld [vmem:[%s2014 + $0x30] sm:$0xff]
    %v2022 = vld [vmem:[%s2014 + $0x38] sm:$0xff]
    %v2023 = vld [vmem:[%s2014 + $0x40] sm:$0xff]
    %v2024 = vld [vmem:[%s2014 + $0x48] sm:$0xff]
    %v2025 = vld [vmem:[%s2014 + $0x50] sm:$0xff]
    %v2026 = vld [vmem:[%s2014 + $0x58] sm:$0xff]
    %v2027 = vld [vmem:[%s2014 + $0x60] sm:$0xff]
    %v2028 = vld [vmem:[%s2014 + $0x68] sm:$0xff]
    %v2029 = vld [vmem:[%s2014 + $0x70] sm:$0xff]
    %v2030 = vld [vmem:[%s2014 + $0x78] sm:$0xff]
    %v2031 = vld [vmem:[%s2014 + $0x80] sm:$0xff]
    %v2032 = vld [vmem:[%s2014 + $0x88] sm:$0xff]
    %v2033 = vld [vmem:[%s2014 + $0x90] sm:$0xff]
    %v2034 = vld [vmem:[%s2014 + $0x98] sm:$0xff]
    %v2035 = vld [vmem:[%s2014 + $0xa0] sm:$0xff]
    %v2036 = vld [vmem:[%s2014 + $0xa8] sm:$0xff]
    %v2037 = vld [vmem:[%s2014 + $0xb0] sm:$0xff]
    %v2038 = vld [vmem:[%s2014 + $0xb8] sm:$0xff]
    %v2039 = vld [vmem:[%s2014 + $0xc0] sm:$0xff]
    %v2040 = vld [vmem:[%s2014 + $0xc8] sm:$0xff]
    %v2041 = vld [vmem:[%s2014 + $0xd0] sm:$0xff]
    %v2042 = vld [vmem:[%s2014 + $0xd8] sm:$0xff]
    %v2043 = vld [vmem:[%s2014 + $0xe0] sm:$0xff]
    %v2044 = vld [vmem:[%s2014 + $0xe8] sm:$0xff]
    %v2045 = vld [vmem:[%s2014 + $0xf0] sm:$0xff]
    %v2046 = vld [vmem:[%s2014 + $0xf8] sm:$0xff]
    %v2079 = vunpack.c.l.b16 %v2015
    %v2080 = vunpack.c.h.b16 %v2015
    %v2081 = vunpack.c.l.b16 %v2016
    %v2082 = vunpack.c.h.b16 %v2016
    %v2083 = vunpack.c.l.b16 %v2017
    %v2084 = vunpack.c.h.b16 %v2017
    %v2085 = vunpack.c.l.b16 %v2018
    %v2086 = vunpack.c.h.b16 %v2018
    %v2087 = vunpack.c.l.b16 %v2019
    %v2088 = vunpack.c.h.b16 %v2019
    %v2089 = vunpack.c.l.b16 %v2020
    %v2090 = vunpack.c.h.b16 %v2020
    %v2091 = vunpack.c.l.b16 %v2021
    %v2092 = vunpack.c.h.b16 %v2021
    %v2093 = vunpack.c.l.b16 %v2022
    %v2094 = vunpack.c.h.b16 %v2022
    %v2095 = vunpack.c.l.b16 %v2023
    %v2096 = vunpack.c.h.b16 %v2023
    %v2097 = vunpack.c.l.b16 %v2024
    %v2098 = vunpack.c.h.b16 %v2024
    %v2099 = vunpack.c.l.b16 %v2025
    %v2100 = vunpack.c.h.b16 %v2025
    %v2101 = vunpack.c.l.b16 %v2026
    %v2102 = vunpack.c.h.b16 %v2026
    %v2103 = vunpack.c.l.b16 %v2027
    %v2104 = vunpack.c.h.b16 %v2027
    %v2105 = vunpack.c.l.b16 %v2028
    %v2106 = vunpack.c.h.b16 %v2028
    %v2107 = vunpack.c.l.b16 %v2029
    %v2108 = vunpack.c.h.b16 %v2029
    %v2109 = vunpack.c.l.b16 %v2030
    %v2110 = vunpack.c.h.b16 %v2030
    %v2111 = vunpack.c.l.b16 %v2031
    %v2112 = vunpack.c.h.b16 %v2031
    %v2113 = vunpack.c.l.b16 %v2032
    %v2114 = vunpack.c.h.b16 %v2032
    %v2115 = vunpack.c.l.b16 %v2033
    %v2116 = vunpack.c.h.b16 %v2033
    %v2117 = vunpack.c.l.b16 %v2034
    %v2118 = vunpack.c.h.b16 %v2034
    %v2119 = vunpack.c.l.b16 %v2035
    %v2120 = vunpack.c.h.b16 %v2035
    %v2121 = vunpack.c.l.b16 %v2036
    %v2122 = vunpack.c.h.b16 %v2036
    %v2123 = vunpack.c.l.b16 %v2037
    %v2124 = vunpack.c.h.b16 %v2037
    %v2125 = vunpack.c.l.b16 %v2038
    %v2126 = vunpack.c.h.b16 %v2038
    %v2127 = vunpack.c.l.b16 %v2039
    %v2128 = vunpack.c.h.b16 %v2039
    %v2129 = vunpack.c.l.b16 %v2040
    %v2130 = vunpack.c.h.b16 %v2040
    %v2131 = vunpack.c.l.b16 %v2041
    %v2132 = vunpack.c.h.b16 %v2041
    %v2133 = vunpack.c.l.b16 %v2042
    %v2134 = vunpack.c.h.b16 %v2042
    %v2135 = vunpack.c.l.b16 %v2043
    %v2136 = vunpack.c.h.b16 %v2043
    %v2137 = vunpack.c.l.b16 %v2044
    %v2138 = vunpack.c.h.b16 %v2044
    %v2139 = vunpack.c.l.b16 %v2045
    %v2140 = vunpack.c.h.b16 %v2045
    %v2141 = vunpack.c.l.b16 %v2046
    %v2142 = vunpack.c.h.b16 %v2046
    %v2143 = vpack.c.b16 %v2081, %v2079
    %v2144 = vpack.c.b16 %v2082, %v2080
    %v2145 = vpack.c.b16 %v2085, %v2083
    %v2146 = vpack.c.b16 %v2086, %v2084
    %v2147 = vpack.c.b16 %v2089, %v2087
    %v2148 = vpack.c.b16 %v2090, %v2088
    %v2149 = vpack.c.b16 %v2093, %v2091
    %v2150 = vpack.c.b16 %v2094, %v2092
    %v2151 = vpack.c.b16 %v2097, %v2095
    %v2152 = vpack.c.b16 %v2098, %v2096
    %v2153 = vpack.c.b16 %v2101, %v2099
    %v2154 = vpack.c.b16 %v2102, %v2100
    %v2155 = vpack.c.b16 %v2105, %v2103
    %v2156 = vpack.c.b16 %v2106, %v2104
    %v2157 = vpack.c.b16 %v2109, %v2107
    %v2158 = vpack.c.b16 %v2110, %v2108
    %v2159 = vpack.c.b16 %v2113, %v2111
    %v2160 = vpack.c.b16 %v2114, %v2112
    %v2161 = vpack.c.b16 %v2117, %v2115
    %v2162 = vpack.c.b16 %v2118, %v2116
    %v2163 = vpack.c.b16 %v2121, %v2119
    %v2164 = vpack.c.b16 %v2122, %v2120
    %v2165 = vpack.c.b16 %v2125, %v2123
    %v2166 = vpack.c.b16 %v2126, %v2124
    %v2167 = vpack.c.b16 %v2129, %v2127
    %v2168 = vpack.c.b16 %v2130, %v2128
    %v2169 = vpack.c.b16 %v2133, %v2131
    %v2170 = vpack.c.b16 %v2134, %v2132
    %v2171 = vpack.c.b16 %v2137, %v2135
    %v2172 = vpack.c.b16 %v2138, %v2136
    %v2173 = vpack.c.b16 %v2141, %v2139
    %v2174 = vpack.c.b16 %v2142, %v2140
    %2207 = vmatprep.subr.bf16.mxu0 %v2158
    %2208 = vmatpush1.bf16.msra.mxu0 %v2157
    %2209 = vmatprep.subr.bf16.mxu0 %v2156
    %2210 = vmatpush1.bf16.msra.mxu0 %v2155
    %2211 = vmatprep.subr.bf16.mxu0 %v2154
    %2212 = vmatpush1.bf16.msra.mxu0 %v2153
    %2213 = vmatprep.subr.bf16.mxu0 %v2152
    %2214 = vmatpush1.bf16.msra.mxu0 %v2151
    %2215 = vmatprep.subr.bf16.mxu0 %v2150
    %2216 = vmatpush1.bf16.msra.mxu0 %v2149
    %2217 = vmatprep.subr.bf16.mxu0 %v2148
    %2218 = vmatpush1.bf16.msra.mxu0 %v2147
    %2219 = vmatprep.subr.bf16.mxu0 %v2146
    %2220 = vmatpush1.bf16.msra.mxu0 %v2145
    %2221 = vmatprep.subr.bf16.mxu0 %v2144
    %2222 = vmatpush1.bf16.msra.mxu0 %v2143
    %2223 = vmatprep.subr.bf16.mxu0 %v2174
    %2224 = vmatpush2.bf16.msra.mxu0 %v2173
    %2225 = vmatprep.subr.bf16.mxu0 %v2172
    %2226 = vmatpush2.bf16.msra.mxu0 %v2171
    %2227 = vmatprep.subr.bf16.mxu0 %v2170
    %2228 = vmatpush2.bf16.msra.mxu0 %v2169
    %2229 = vmatprep.subr.bf16.mxu0 %v2168
    %2230 = vmatpush2.bf16.msra.mxu0 %v2167
    %2231 = vmatprep.subr.bf16.mxu0 %v2166
    %2232 = vmatpush2.bf16.msra.mxu0 %v2165
    %2233 = vmatprep.subr.bf16.mxu0 %v2164
    %2234 = vmatpush2.bf16.msra.mxu0 %v2163
    %2235 = vmatprep.subr.bf16.mxu0 %v2162
    %2236 = vmatpush2.bf16.msra.mxu0 %v2161
    %2237 = vmatprep.subr.bf16.mxu0 %v2160
    %2238 = vmatpush2.bf16.msra.mxu0 %v2159
    %2239 = vmatprep.mubr.bf16.mxu0 %v2013
    %2240 = vmatmul.mubr.bf16.gmra.mxu0 %v2012
    %v2241 = vpop.f32.mrf.mxu0
    %v2242 = vadd.f32 0.0, %v2241
    %v2243 = vpop.f32.mrf.mxu0
    %v2244 = vadd.f32 0.0, %v2243
    %v2245 = vpop.f32.mrf.mxu0
    %v2246 = vpop.f32.mrf.mxu0
    %2247 = vdwg.mxu0
    %s2248 = scalar_lea.vmem %s5, 10
    %v2249 = vld [vmem:[%s2248] sm:$0x3]
    %s2250 = scalar_lea.vmem %s6, 10
    %v2251 = vld [vmem:[%s2250] sm:$0x3]
    %v2252 = vrot.slane %v2242, 4
    %v2253 = vadd.f32 %v2242, %v2252
    %v2254 = vrot.slane %v2253, 2
    %v2255 = vadd.f32 %v2253, %v2254
    %v2256 = vrot.slane %v2255, 1
    %v2257 = vadd.f32 %v2255, %v2256
    %v2258 = vrot.slane %v2244, 4
    %v2259 = vadd.f32 %v2244, %v2258
    %v2260 = vrot.slane %v2259, 2
    %v2261 = vadd.f32 %v2259, %v2260
    %v2262 = vrot.slane %v2261, 1
    %v2263 = vadd.f32 %v2261, %v2262
    %v2264 = vmul.f32 %v2257, %v226
    %v2265 = vmul.f32 %v2263, %v226
    %v2266 = vsub.f32 %v2242, %v2264
    %v2267 = vsub.f32 %v2244, %v2265
    %v2268 = vmul.f32 %v2266, %v2266
    %v2269 = vmul.f32 %v2267, %v2267
    %v2270 = vrot.slane %v2268, 4
    %v2271 = vadd.f32 %v2268, %v2270
    %v2272 = vrot.slane %v2271, 2
    %v2273 = vadd.f32 %v2271, %v2272
    %v2274 = vrot.slane %v2273, 1
    %v2275 = vadd.f32 %v2273, %v2274
    %v2276 = vrot.slane %v2269, 4
    %v2277 = vadd.f32 %v2269, %v2276
    %v2278 = vrot.slane %v2277, 2
    %v2279 = vadd.f32 %v2277, %v2278
    %v2280 = vrot.slane %v2279, 1
    %v2281 = vadd.f32 %v2279, %v2280
    %v2282 = vmul.f32 %v2275, %v226
    %v2283 = vmul.f32 %v2281, %v226
    %v2284 = vadd.f32 %v2282, 1e-05
    %v2285 = vadd.f32 %v2283, 1e-05
    %v2286 = vrsqrt.pop %v2284
    %v2287 = vrsqrt.pop %v2285
    %v2288 = vmul.f32 %v2266, %v2286
    %v2289 = vmul.f32 %v2267, %v2287
    %v2291 = vlaneseq
    %v2292 = vshrl.u32 %v2291, 7
    %v2293 = vsub.s32 0, %v2292
    %v2294 = vrot.slane %v2249, %v2293
    %v2295 = vlaneseq
    %v2296 = vshrl.u32 %v2295, 7
    %v2297 = vsub.s32 1, %v2296
    %v2298 = vrot.slane %v2249, %v2297
    %v2301 = vmul.f32 %v2288, %v2294
    %v2302 = vmul.f32 %v2289, %v2298
    %v2304 = vlaneseq
    %v2305 = vshrl.u32 %v2304, 7
    %v2306 = vsub.s32 0, %v2305
    %v2307 = vrot.slane %v2251, %v2306
    %v2308 = vlaneseq
    %v2309 = vshrl.u32 %v2308, 7
    %v2310 = vsub.s32 1, %v2309
    %v2311 = vrot.slane %v2251, %v2310
    %v2314 = vadd.f32 %v2301, %v2307
    %v2315 = vadd.f32 %v2302, %v2311
    %vm2316 = vcmp.ge.f32.partialorder %v2314, 0.0
    %vm2317 = vcmp.ge.f32.partialorder %v2315, 0.0
    %v2318 = vmul.f32 %v2314, 0.01
    %v2319 = vmul.f32 %v2315, 0.01
    %v2320 = vsel %vm2316, %v2314, %v2318
    %v2321 = vsel %vm2317, %v2315, %v2319
    %v2322 = vpack.c.bf16 %v2320, %v2320
    %v2323 = vpack.c.bf16 %v2321, %v2321
    %s2324 = scalar_lea.vmem [#allocation4], 1536
    %v2325 = vld [vmem:[%s2324] sm:$0xff]
    %v2326 = vld [vmem:[%s2324 + $0x8] sm:$0xff]
    %v2327 = vld [vmem:[%s2324 + $0x10] sm:$0xff]
    %v2328 = vld [vmem:[%s2324 + $0x18] sm:$0xff]
    %v2329 = vld [vmem:[%s2324 + $0x20] sm:$0xff]
    %v2330 = vld [vmem:[%s2324 + $0x28] sm:$0xff]
    %v2331 = vld [vmem:[%s2324 + $0x30] sm:$0xff]
    %v2332 = vld [vmem:[%s2324 + $0x38] sm:$0xff]
    %v2333 = vld [vmem:[%s2324 + $0x40] sm:$0xff]
    %v2334 = vld [vmem:[%s2324 + $0x48] sm:$0xff]
    %v2335 = vld [vmem:[%s2324 + $0x50] sm:$0xff]
    %v2336 = vld [vmem:[%s2324 + $0x58] sm:$0xff]
    %v2337 = vld [vmem:[%s2324 + $0x60] sm:$0xff]
    %v2338 = vld [vmem:[%s2324 + $0x68] sm:$0xff]
    %v2339 = vld [vmem:[%s2324 + $0x70] sm:$0xff]
    %v2340 = vld [vmem:[%s2324 + $0x78] sm:$0xff]
    %v2341 = vld [vmem:[%s2324 + $0x80] sm:$0xff]
    %v2342 = vld [vmem:[%s2324 + $0x88] sm:$0xff]
    %v2343 = vld [vmem:[%s2324 + $0x90] sm:$0xff]
    %v2344 = vld [vmem:[%s2324 + $0x98] sm:$0xff]
    %v2345 = vld [vmem:[%s2324 + $0xa0] sm:$0xff]
    %v2346 = vld [vmem:[%s2324 + $0xa8] sm:$0xff]
    %v2347 = vld [vmem:[%s2324 + $0xb0] sm:$0xff]
    %v2348 = vld [vmem:[%s2324 + $0xb8] sm:$0xff]
    %v2349 = vld [vmem:[%s2324 + $0xc0] sm:$0xff]
    %v2350 = vld [vmem:[%s2324 + $0xc8] sm:$0xff]
    %v2351 = vld [vmem:[%s2324 + $0xd0] sm:$0xff]
    %v2352 = vld [vmem:[%s2324 + $0xd8] sm:$0xff]
    %v2353 = vld [vmem:[%s2324 + $0xe0] sm:$0xff]
    %v2354 = vld [vmem:[%s2324 + $0xe8] sm:$0xff]
    %v2355 = vld [vmem:[%s2324 + $0xf0] sm:$0xff]
    %v2356 = vld [vmem:[%s2324 + $0xf8] sm:$0xff]
    %v2389 = vunpack.c.l.b16 %v2325
    %v2390 = vunpack.c.h.b16 %v2325
    %v2391 = vunpack.c.l.b16 %v2326
    %v2392 = vunpack.c.h.b16 %v2326
    %v2393 = vunpack.c.l.b16 %v2327
    %v2394 = vunpack.c.h.b16 %v2327
    %v2395 = vunpack.c.l.b16 %v2328
    %v2396 = vunpack.c.h.b16 %v2328
    %v2397 = vunpack.c.l.b16 %v2329
    %v2398 = vunpack.c.h.b16 %v2329
    %v2399 = vunpack.c.l.b16 %v2330
    %v2400 = vunpack.c.h.b16 %v2330
    %v2401 = vunpack.c.l.b16 %v2331
    %v2402 = vunpack.c.h.b16 %v2331
    %v2403 = vunpack.c.l.b16 %v2332
    %v2404 = vunpack.c.h.b16 %v2332
    %v2405 = vunpack.c.l.b16 %v2333
    %v2406 = vunpack.c.h.b16 %v2333
    %v2407 = vunpack.c.l.b16 %v2334
    %v2408 = vunpack.c.h.b16 %v2334
    %v2409 = vunpack.c.l.b16 %v2335
    %v2410 = vunpack.c.h.b16 %v2335
    %v2411 = vunpack.c.l.b16 %v2336
    %v2412 = vunpack.c.h.b16 %v2336
    %v2413 = vunpack.c.l.b16 %v2337
    %v2414 = vunpack.c.h.b16 %v2337
    %v2415 = vunpack.c.l.b16 %v2338
    %v2416 = vunpack.c.h.b16 %v2338
    %v2417 = vunpack.c.l.b16 %v2339
    %v2418 = vunpack.c.h.b16 %v2339
    %v2419 = vunpack.c.l.b16 %v2340
    %v2420 = vunpack.c.h.b16 %v2340
    %v2421 = vunpack.c.l.b16 %v2341
    %v2422 = vunpack.c.h.b16 %v2341
    %v2423 = vunpack.c.l.b16 %v2342
    %v2424 = vunpack.c.h.b16 %v2342
    %v2425 = vunpack.c.l.b16 %v2343
    %v2426 = vunpack.c.h.b16 %v2343
    %v2427 = vunpack.c.l.b16 %v2344
    %v2428 = vunpack.c.h.b16 %v2344
    %v2429 = vunpack.c.l.b16 %v2345
    %v2430 = vunpack.c.h.b16 %v2345
    %v2431 = vunpack.c.l.b16 %v2346
    %v2432 = vunpack.c.h.b16 %v2346
    %v2433 = vunpack.c.l.b16 %v2347
    %v2434 = vunpack.c.h.b16 %v2347
    %v2435 = vunpack.c.l.b16 %v2348
    %v2436 = vunpack.c.h.b16 %v2348
    %v2437 = vunpack.c.l.b16 %v2349
    %v2438 = vunpack.c.h.b16 %v2349
    %v2439 = vunpack.c.l.b16 %v2350
    %v2440 = vunpack.c.h.b16 %v2350
    %v2441 = vunpack.c.l.b16 %v2351
    %v2442 = vunpack.c.h.b16 %v2351
    %v2443 = vunpack.c.l.b16 %v2352
    %v2444 = vunpack.c.h.b16 %v2352
    %v2445 = vunpack.c.l.b16 %v2353
    %v2446 = vunpack.c.h.b16 %v2353
    %v2447 = vunpack.c.l.b16 %v2354
    %v2448 = vunpack.c.h.b16 %v2354
    %v2449 = vunpack.c.l.b16 %v2355
    %v2450 = vunpack.c.h.b16 %v2355
    %v2451 = vunpack.c.l.b16 %v2356
    %v2452 = vunpack.c.h.b16 %v2356
    %v2453 = vpack.c.b16 %v2391, %v2389
    %v2454 = vpack.c.b16 %v2392, %v2390
    %v2455 = vpack.c.b16 %v2395, %v2393
    %v2456 = vpack.c.b16 %v2396, %v2394
    %v2457 = vpack.c.b16 %v2399, %v2397
    %v2458 = vpack.c.b16 %v2400, %v2398
    %v2459 = vpack.c.b16 %v2403, %v2401
    %v2460 = vpack.c.b16 %v2404, %v2402
    %v2461 = vpack.c.b16 %v2407, %v2405
    %v2462 = vpack.c.b16 %v2408, %v2406
    %v2463 = vpack.c.b16 %v2411, %v2409
    %v2464 = vpack.c.b16 %v2412, %v2410
    %v2465 = vpack.c.b16 %v2415, %v2413
    %v2466 = vpack.c.b16 %v2416, %v2414
    %v2467 = vpack.c.b16 %v2419, %v2417
    %v2468 = vpack.c.b16 %v2420, %v2418
    %v2469 = vpack.c.b16 %v2423, %v2421
    %v2470 = vpack.c.b16 %v2424, %v2422
    %v2471 = vpack.c.b16 %v2427, %v2425
    %v2472 = vpack.c.b16 %v2428, %v2426
    %v2473 = vpack.c.b16 %v2431, %v2429
    %v2474 = vpack.c.b16 %v2432, %v2430
    %v2475 = vpack.c.b16 %v2435, %v2433
    %v2476 = vpack.c.b16 %v2436, %v2434
    %v2477 = vpack.c.b16 %v2439, %v2437
    %v2478 = vpack.c.b16 %v2440, %v2438
    %v2479 = vpack.c.b16 %v2443, %v2441
    %v2480 = vpack.c.b16 %v2444, %v2442
    %v2481 = vpack.c.b16 %v2447, %v2445
    %v2482 = vpack.c.b16 %v2448, %v2446
    %v2483 = vpack.c.b16 %v2451, %v2449
    %v2484 = vpack.c.b16 %v2452, %v2450
    %2517 = vmatprep.subr.bf16.mxu0 %v2468
    %2518 = vmatpush1.bf16.msra.mxu0 %v2467
    %2519 = vmatprep.subr.bf16.mxu0 %v2466
    %2520 = vmatpush1.bf16.msra.mxu0 %v2465
    %2521 = vmatprep.subr.bf16.mxu0 %v2464
    %2522 = vmatpush1.bf16.msra.mxu0 %v2463
    %2523 = vmatprep.subr.bf16.mxu0 %v2462
    %2524 = vmatpush1.bf16.msra.mxu0 %v2461
    %2525 = vmatprep.subr.bf16.mxu0 %v2460
    %2526 = vmatpush1.bf16.msra.mxu0 %v2459
    %2527 = vmatprep.subr.bf16.mxu0 %v2458
    %2528 = vmatpush1.bf16.msra.mxu0 %v2457
    %2529 = vmatprep.subr.bf16.mxu0 %v2456
    %2530 = vmatpush1.bf16.msra.mxu0 %v2455
    %2531 = vmatprep.subr.bf16.mxu0 %v2454
    %2532 = vmatpush1.bf16.msra.mxu0 %v2453
    %2533 = vmatprep.subr.bf16.mxu0 %v2484
    %2534 = vmatpush2.bf16.msra.mxu0 %v2483
    %2535 = vmatprep.subr.bf16.mxu0 %v2482
    %2536 = vmatpush2.bf16.msra.mxu0 %v2481
    %2537 = vmatprep.subr.bf16.mxu0 %v2480
    %2538 = vmatpush2.bf16.msra.mxu0 %v2479
    %2539 = vmatprep.subr.bf16.mxu0 %v2478
    %2540 = vmatpush2.bf16.msra.mxu0 %v2477
    %2541 = vmatprep.subr.bf16.mxu0 %v2476
    %2542 = vmatpush2.bf16.msra.mxu0 %v2475
    %2543 = vmatprep.subr.bf16.mxu0 %v2474
    %2544 = vmatpush2.bf16.msra.mxu0 %v2473
    %2545 = vmatprep.subr.bf16.mxu0 %v2472
    %2546 = vmatpush2.bf16.msra.mxu0 %v2471
    %2547 = vmatprep.subr.bf16.mxu0 %v2470
    %2548 = vmatpush2.bf16.msra.mxu0 %v2469
    %2549 = vmatprep.mubr.bf16.mxu0 %v2323
    %2550 = vmatmul.mubr.bf16.gmra.mxu0 %v2322
    %v2551 = vpop.f32.mrf.mxu0
    %v2552 = vadd.f32 0.0, %v2551
    %v2553 = vpop.f32.mrf.mxu0
    %v2554 = vadd.f32 0.0, %v2553
    %v2555 = vpop.f32.mrf.mxu0
    %v2556 = vpop.f32.mrf.mxu0
    %2557 = vdwg.mxu0
    %s2558 = scalar_lea.vmem %s5, 12
    %v2559 = vld [vmem:[%s2558] sm:$0x3]
    %s2560 = scalar_lea.vmem %s6, 12
    %v2561 = vld [vmem:[%s2560] sm:$0x3]
    %v2562 = vrot.slane %v2552, 4
    %v2563 = vadd.f32 %v2552, %v2562
    %v2564 = vrot.slane %v2563, 2
    %v2565 = vadd.f32 %v2563, %v2564
    %v2566 = vrot.slane %v2565, 1
    %v2567 = vadd.f32 %v2565, %v2566
    %v2568 = vrot.slane %v2554, 4
    %v2569 = vadd.f32 %v2554, %v2568
    %v2570 = vrot.slane %v2569, 2
    %v2571 = vadd.f32 %v2569, %v2570
    %v2572 = vrot.slane %v2571, 1
    %v2573 = vadd.f32 %v2571, %v2572
    %v2574 = vmul.f32 %v2567, %v226
    %v2575 = vmul.f32 %v2573, %v226
    %v2576 = vsub.f32 %v2552, %v2574
    %v2577 = vsub.f32 %v2554, %v2575
    %v2578 = vmul.f32 %v2576, %v2576
    %v2579 = vmul.f32 %v2577, %v2577
    %v2580 = vrot.slane %v2578, 4
    %v2581 = vadd.f32 %v2578, %v2580
    %v2582 = vrot.slane %v2581, 2
    %v2583 = vadd.f32 %v2581, %v2582
    %v2584 = vrot.slane %v2583, 1
    %v2585 = vadd.f32 %v2583, %v2584
    %v2586 = vrot.slane %v2579, 4
    %v2587 = vadd.f32 %v2579, %v2586
    %v2588 = vrot.slane %v2587, 2
    %v2589 = vadd.f32 %v2587, %v2588
    %v2590 = vrot.slane %v2589, 1
    %v2591 = vadd.f32 %v2589, %v2590
    %v2592 = vmul.f32 %v2585, %v226
    %v2593 = vmul.f32 %v2591, %v226
    %v2594 = vadd.f32 %v2592, 1e-05
    %v2595 = vadd.f32 %v2593, 1e-05
    %v2596 = vrsqrt.pop %v2594
    %v2597 = vrsqrt.pop %v2595
    %v2598 = vmul.f32 %v2576, %v2596
    %v2599 = vmul.f32 %v2577, %v2597
    %v2601 = vlaneseq
    %v2602 = vshrl.u32 %v2601, 7
    %v2603 = vsub.s32 0, %v2602
    %v2604 = vrot.slane %v2559, %v2603
    %v2605 = vlaneseq
    %v2606 = vshrl.u32 %v2605, 7
    %v2607 = vsub.s32 1, %v2606
    %v2608 = vrot.slane %v2559, %v2607
    %v2611 = vmul.f32 %v2598, %v2604
    %v2612 = vmul.f32 %v2599, %v2608
    %v2614 = vlaneseq
    %v2615 = vshrl.u32 %v2614, 7
    %v2616 = vsub.s32 0, %v2615
    %v2617 = vrot.slane %v2561, %v2616
    %v2618 = vlaneseq
    %v2619 = vshrl.u32 %v2618, 7
    %v2620 = vsub.s32 1, %v2619
    %v2621 = vrot.slane %v2561, %v2620
    %v2624 = vadd.f32 %v2611, %v2617
    %v2625 = vadd.f32 %v2612, %v2621
    %vm2626 = vcmp.ge.f32.partialorder %v2624, 0.0
    %vm2627 = vcmp.ge.f32.partialorder %v2625, 0.0
    %v2628 = vmul.f32 %v2624, 0.01
    %v2629 = vmul.f32 %v2625, 0.01
    %v2630 = vsel %vm2626, %v2624, %v2628
    %v2631 = vsel %vm2627, %v2625, %v2629
    %v2632 = vpack.c.bf16 %v2630, %v2630
    %v2633 = vpack.c.bf16 %v2631, %v2631
    %s2634 = scalar_lea.vmem [#allocation4], 1792
    %v2635 = vld [vmem:[%s2634] sm:$0xff]
    %v2636 = vld [vmem:[%s2634 + $0x8] sm:$0xff]
    %v2637 = vld [vmem:[%s2634 + $0x10] sm:$0xff]
    %v2638 = vld [vmem:[%s2634 + $0x18] sm:$0xff]
    %v2639 = vld [vmem:[%s2634 + $0x20] sm:$0xff]
    %v2640 = vld [vmem:[%s2634 + $0x28] sm:$0xff]
    %v2641 = vld [vmem:[%s2634 + $0x30] sm:$0xff]
    %v2642 = vld [vmem:[%s2634 + $0x38] sm:$0xff]
    %v2643 = vld [vmem:[%s2634 + $0x40] sm:$0xff]
    %v2644 = vld [vmem:[%s2634 + $0x48] sm:$0xff]
    %v2645 = vld [vmem:[%s2634 + $0x50] sm:$0xff]
    %v2646 = vld [vmem:[%s2634 + $0x58] sm:$0xff]
    %v2647 = vld [vmem:[%s2634 + $0x60] sm:$0xff]
    %v2648 = vld [vmem:[%s2634 + $0x68] sm:$0xff]
    %v2649 = vld [vmem:[%s2634 + $0x70] sm:$0xff]
    %v2650 = vld [vmem:[%s2634 + $0x78] sm:$0xff]
    %v2651 = vld [vmem:[%s2634 + $0x80] sm:$0xff]
    %v2652 = vld [vmem:[%s2634 + $0x88] sm:$0xff]
    %v2653 = vld [vmem:[%s2634 + $0x90] sm:$0xff]
    %v2654 = vld [vmem:[%s2634 + $0x98] sm:$0xff]
    %v2655 = vld [vmem:[%s2634 + $0xa0] sm:$0xff]
    %v2656 = vld [vmem:[%s2634 + $0xa8] sm:$0xff]
    %v2657 = vld [vmem:[%s2634 + $0xb0] sm:$0xff]
    %v2658 = vld [vmem:[%s2634 + $0xb8] sm:$0xff]
    %v2659 = vld [vmem:[%s2634 + $0xc0] sm:$0xff]
    %v2660 = vld [vmem:[%s2634 + $0xc8] sm:$0xff]
    %v2661 = vld [vmem:[%s2634 + $0xd0] sm:$0xff]
    %v2662 = vld [vmem:[%s2634 + $0xd8] sm:$0xff]
    %v2663 = vld [vmem:[%s2634 + $0xe0] sm:$0xff]
    %v2664 = vld [vmem:[%s2634 + $0xe8] sm:$0xff]
    %v2665 = vld [vmem:[%s2634 + $0xf0] sm:$0xff]
    %v2666 = vld [vmem:[%s2634 + $0xf8] sm:$0xff]
    %v2699 = vunpack.c.l.b16 %v2635
    %v2700 = vunpack.c.h.b16 %v2635
    %v2701 = vunpack.c.l.b16 %v2636
    %v2702 = vunpack.c.h.b16 %v2636
    %v2703 = vunpack.c.l.b16 %v2637
    %v2704 = vunpack.c.h.b16 %v2637
    %v2705 = vunpack.c.l.b16 %v2638
    %v2706 = vunpack.c.h.b16 %v2638
    %v2707 = vunpack.c.l.b16 %v2639
    %v2708 = vunpack.c.h.b16 %v2639
    %v2709 = vunpack.c.l.b16 %v2640
    %v2710 = vunpack.c.h.b16 %v2640
    %v2711 = vunpack.c.l.b16 %v2641
    %v2712 = vunpack.c.h.b16 %v2641
    %v2713 = vunpack.c.l.b16 %v2642
    %v2714 = vunpack.c.h.b16 %v2642
    %v2715 = vunpack.c.l.b16 %v2643
    %v2716 = vunpack.c.h.b16 %v2643
    %v2717 = vunpack.c.l.b16 %v2644
    %v2718 = vunpack.c.h.b16 %v2644
    %v2719 = vunpack.c.l.b16 %v2645
    %v2720 = vunpack.c.h.b16 %v2645
    %v2721 = vunpack.c.l.b16 %v2646
    %v2722 = vunpack.c.h.b16 %v2646
    %v2723 = vunpack.c.l.b16 %v2647
    %v2724 = vunpack.c.h.b16 %v2647
    %v2725 = vunpack.c.l.b16 %v2648
    %v2726 = vunpack.c.h.b16 %v2648
    %v2727 = vunpack.c.l.b16 %v2649
    %v2728 = vunpack.c.h.b16 %v2649
    %v2729 = vunpack.c.l.b16 %v2650
    %v2730 = vunpack.c.h.b16 %v2650
    %v2731 = vunpack.c.l.b16 %v2651
    %v2732 = vunpack.c.h.b16 %v2651
    %v2733 = vunpack.c.l.b16 %v2652
    %v2734 = vunpack.c.h.b16 %v2652
    %v2735 = vunpack.c.l.b16 %v2653
    %v2736 = vunpack.c.h.b16 %v2653
    %v2737 = vunpack.c.l.b16 %v2654
    %v2738 = vunpack.c.h.b16 %v2654
    %v2739 = vunpack.c.l.b16 %v2655
    %v2740 = vunpack.c.h.b16 %v2655
    %v2741 = vunpack.c.l.b16 %v2656
    %v2742 = vunpack.c.h.b16 %v2656
    %v2743 = vunpack.c.l.b16 %v2657
    %v2744 = vunpack.c.h.b16 %v2657
    %v2745 = vunpack.c.l.b16 %v2658
    %v2746 = vunpack.c.h.b16 %v2658
    %v2747 = vunpack.c.l.b16 %v2659
    %v2748 = vunpack.c.h.b16 %v2659
    %v2749 = vunpack.c.l.b16 %v2660
    %v2750 = vunpack.c.h.b16 %v2660
    %v2751 = vunpack.c.l.b16 %v2661
    %v2752 = vunpack.c.h.b16 %v2661
    %v2753 = vunpack.c.l.b16 %v2662
    %v2754 = vunpack.c.h.b16 %v2662
    %v2755 = vunpack.c.l.b16 %v2663
    %v2756 = vunpack.c.h.b16 %v2663
    %v2757 = vunpack.c.l.b16 %v2664
    %v2758 = vunpack.c.h.b16 %v2664
    %v2759 = vunpack.c.l.b16 %v2665
    %v2760 = vunpack.c.h.b16 %v2665
    %v2761 = vunpack.c.l.b16 %v2666
    %v2762 = vunpack.c.h.b16 %v2666
    %v2763 = vpack.c.b16 %v2701, %v2699
    %v2764 = vpack.c.b16 %v2702, %v2700
    %v2765 = vpack.c.b16 %v2705, %v2703
    %v2766 = vpack.c.b16 %v2706, %v2704
    %v2767 = vpack.c.b16 %v2709, %v2707
    %v2768 = vpack.c.b16 %v2710, %v2708
    %v2769 = vpack.c.b16 %v2713, %v2711
    %v2770 = vpack.c.b16 %v2714, %v2712
    %v2771 = vpack.c.b16 %v2717, %v2715
    %v2772 = vpack.c.b16 %v2718, %v2716
    %v2773 = vpack.c.b16 %v2721, %v2719
    %v2774 = vpack.c.b16 %v2722, %v2720
    %v2775 = vpack.c.b16 %v2725, %v2723
    %v2776 = vpack.c.b16 %v2726, %v2724
    %v2777 = vpack.c.b16 %v2729, %v2727
    %v2778 = vpack.c.b16 %v2730, %v2728
    %v2779 = vpack.c.b16 %v2733, %v2731
    %v2780 = vpack.c.b16 %v2734, %v2732
    %v2781 = vpack.c.b16 %v2737, %v2735
    %v2782 = vpack.c.b16 %v2738, %v2736
    %v2783 = vpack.c.b16 %v2741, %v2739
    %v2784 = vpack.c.b16 %v2742, %v2740
    %v2785 = vpack.c.b16 %v2745, %v2743
    %v2786 = vpack.c.b16 %v2746, %v2744
    %v2787 = vpack.c.b16 %v2749, %v2747
    %v2788 = vpack.c.b16 %v2750, %v2748
    %v2789 = vpack.c.b16 %v2753, %v2751
    %v2790 = vpack.c.b16 %v2754, %v2752
    %v2791 = vpack.c.b16 %v2757, %v2755
    %v2792 = vpack.c.b16 %v2758, %v2756
    %v2793 = vpack.c.b16 %v2761, %v2759
    %v2794 = vpack.c.b16 %v2762, %v2760
    %2827 = vmatprep.subr.bf16.mxu0 %v2778
    %2828 = vmatpush1.bf16.msra.mxu0 %v2777
    %2829 = vmatprep.subr.bf16.mxu0 %v2776
    %2830 = vmatpush1.bf16.msra.mxu0 %v2775
    %2831 = vmatprep.subr.bf16.mxu0 %v2774
    %2832 = vmatpush1.bf16.msra.mxu0 %v2773
    %2833 = vmatprep.subr.bf16.mxu0 %v2772
    %2834 = vmatpush1.bf16.msra.mxu0 %v2771
    %2835 = vmatprep.subr.bf16.mxu0 %v2770
    %2836 = vmatpush1.bf16.msra.mxu0 %v2769
    %2837 = vmatprep.subr.bf16.mxu0 %v2768
    %2838 = vmatpush1.bf16.msra.mxu0 %v2767
    %2839 = vmatprep.subr.bf16.mxu0 %v2766
    %2840 = vmatpush1.bf16.msra.mxu0 %v2765
    %2841 = vmatprep.subr.bf16.mxu0 %v2764
    %2842 = vmatpush1.bf16.msra.mxu0 %v2763
    %2843 = vmatprep.subr.bf16.mxu0 %v2794
    %2844 = vmatpush2.bf16.msra.mxu0 %v2793
    %2845 = vmatprep.subr.bf16.mxu0 %v2792
    %2846 = vmatpush2.bf16.msra.mxu0 %v2791
    %2847 = vmatprep.subr.bf16.mxu0 %v2790
    %2848 = vmatpush2.bf16.msra.mxu0 %v2789
    %2849 = vmatprep.subr.bf16.mxu0 %v2788
    %2850 = vmatpush2.bf16.msra.mxu0 %v2787
    %2851 = vmatprep.subr.bf16.mxu0 %v2786
    %2852 = vmatpush2.bf16.msra.mxu0 %v2785
    %2853 = vmatprep.subr.bf16.mxu0 %v2784
    %2854 = vmatpush2.bf16.msra.mxu0 %v2783
    %2855 = vmatprep.subr.bf16.mxu0 %v2782
    %2856 = vmatpush2.bf16.msra.mxu0 %v2781
    %2857 = vmatprep.subr.bf16.mxu0 %v2780
    %2858 = vmatpush2.bf16.msra.mxu0 %v2779
    %2859 = vmatprep.mubr.bf16.mxu0 %v2633
    %2860 = vmatmul.mubr.bf16.gmra.mxu0 %v2632
    %v2861 = vpop.f32.mrf.mxu0
    %v2862 = vadd.f32 0.0, %v2861
    %v2863 = vpop.f32.mrf.mxu0
    %v2864 = vadd.f32 0.0, %v2863
    %v2865 = vpop.f32.mrf.mxu0
    %v2866 = vpop.f32.mrf.mxu0
    %2867 = vdwg.mxu0
    %s2868 = scalar_lea.vmem %s5, 14
    %v2869 = vld [vmem:[%s2868] sm:$0x3]
    %s2870 = scalar_lea.vmem %s6, 14
    %v2871 = vld [vmem:[%s2870] sm:$0x3]
    %v2872 = vrot.slane %v2862, 4
    %v2873 = vadd.f32 %v2862, %v2872
    %v2874 = vrot.slane %v2873, 2
    %v2875 = vadd.f32 %v2873, %v2874
    %v2876 = vrot.slane %v2875, 1
    %v2877 = vadd.f32 %v2875, %v2876
    %v2878 = vrot.slane %v2864, 4
    %v2879 = vadd.f32 %v2864, %v2878
    %v2880 = vrot.slane %v2879, 2
    %v2881 = vadd.f32 %v2879, %v2880
    %v2882 = vrot.slane %v2881, 1
    %v2883 = vadd.f32 %v2881, %v2882
    %v2884 = vmul.f32 %v2877, %v226
    %v2885 = vmul.f32 %v2883, %v226
    %v2886 = vsub.f32 %v2862, %v2884
    %v2887 = vsub.f32 %v2864, %v2885
    %v2888 = vmul.f32 %v2886, %v2886
    %v2889 = vmul.f32 %v2887, %v2887
    %v2890 = vrot.slane %v2888, 4
    %v2891 = vadd.f32 %v2888, %v2890
    %v2892 = vrot.slane %v2891, 2
    %v2893 = vadd.f32 %v2891, %v2892
    %v2894 = vrot.slane %v2893, 1
    %v2895 = vadd.f32 %v2893, %v2894
    %v2896 = vrot.slane %v2889, 4
    %v2897 = vadd.f32 %v2889, %v2896
    %v2898 = vrot.slane %v2897, 2
    %v2899 = vadd.f32 %v2897, %v2898
    %v2900 = vrot.slane %v2899, 1
    %v2901 = vadd.f32 %v2899, %v2900
    %v2902 = vmul.f32 %v2895, %v226
    %v2903 = vmul.f32 %v2901, %v226
    %v2904 = vadd.f32 %v2902, 1e-05
    %v2905 = vadd.f32 %v2903, 1e-05
    %v2906 = vrsqrt.pop %v2904
    %v2907 = vrsqrt.pop %v2905
    %v2908 = vmul.f32 %v2886, %v2906
    %v2909 = vmul.f32 %v2887, %v2907
    %v2911 = vlaneseq
    %v2912 = vshrl.u32 %v2911, 7
    %v2913 = vsub.s32 0, %v2912
    %v2914 = vrot.slane %v2869, %v2913
    %v2915 = vlaneseq
    %v2916 = vshrl.u32 %v2915, 7
    %v2917 = vsub.s32 1, %v2916
    %v2918 = vrot.slane %v2869, %v2917
    %v2921 = vmul.f32 %v2908, %v2914
    %v2922 = vmul.f32 %v2909, %v2918
    %v2924 = vlaneseq
    %v2925 = vshrl.u32 %v2924, 7
    %v2926 = vsub.s32 0, %v2925
    %v2927 = vrot.slane %v2871, %v2926
    %v2928 = vlaneseq
    %v2929 = vshrl.u32 %v2928, 7
    %v2930 = vsub.s32 1, %v2929
    %v2931 = vrot.slane %v2871, %v2930
    %v2934 = vadd.f32 %v2921, %v2927
    %v2935 = vadd.f32 %v2922, %v2931
    %vm2936 = vcmp.ge.f32.partialorder %v2934, 0.0
    %vm2937 = vcmp.ge.f32.partialorder %v2935, 0.0
    %v2938 = vmul.f32 %v2934, 0.01
    %v2939 = vmul.f32 %v2935, 0.01
    %v2940 = vsel %vm2936, %v2934, %v2938
    %v2941 = vsel %vm2937, %v2935, %v2939
    %v2942 = vpack.c.bf16 %v2940, %v2940
    %v2943 = vpack.c.bf16 %v2941, %v2941
    %v2944 = vld [vmem:[#allocation6] sm:$0xf]
    %v2945 = vld [vmem:[#allocation6 + $0x4] sm:$0xf]
    %v2946 = vld [vmem:[#allocation6 + $0x8] sm:$0xf]
    %v2947 = vld [vmem:[#allocation6 + $0xc] sm:$0xf]
    %v2948 = vld [vmem:[#allocation6 + $0x10] sm:$0xf]
    %v2949 = vld [vmem:[#allocation6 + $0x14] sm:$0xf]
    %v2950 = vld [vmem:[#allocation6 + $0x18] sm:$0xf]
    %v2951 = vld [vmem:[#allocation6 + $0x1c] sm:$0xf]
    %v2952 = vld [vmem:[#allocation6 + $0x20] sm:$0xf]
    %v2953 = vld [vmem:[#allocation6 + $0x24] sm:$0xf]
    %v2954 = vld [vmem:[#allocation6 + $0x28] sm:$0xf]
    %v2955 = vld [vmem:[#allocation6 + $0x2c] sm:$0xf]
    %v2956 = vld [vmem:[#allocation6 + $0x30] sm:$0xf]
    %v2957 = vld [vmem:[#allocation6 + $0x34] sm:$0xf]
    %v2958 = vld [vmem:[#allocation6 + $0x38] sm:$0xf]
    %v2959 = vld [vmem:[#allocation6 + $0x3c] sm:$0xf]
    %v2960 = vld [vmem:[#allocation6 + $0x40] sm:$0xf]
    %v2961 = vld [vmem:[#allocation6 + $0x44] sm:$0xf]
    %v2962 = vld [vmem:[#allocation6 + $0x48] sm:$0xf]
    %v2963 = vld [vmem:[#allocation6 + $0x4c] sm:$0xf]
    %v2964 = vld [vmem:[#allocation6 + $0x50] sm:$0xf]
    %v2965 = vld [vmem:[#allocation6 + $0x54] sm:$0xf]
    %v2966 = vld [vmem:[#allocation6 + $0x58] sm:$0xf]
    %v2967 = vld [vmem:[#allocation6 + $0x5c] sm:$0xf]
    %v2968 = vld [vmem:[#allocation6 + $0x60] sm:$0xf]
    %v2969 = vld [vmem:[#allocation6 + $0x64] sm:$0xf]
    %v2970 = vld [vmem:[#allocation6 + $0x68] sm:$0xf]
    %v2971 = vld [vmem:[#allocation6 + $0x6c] sm:$0xf]
    %v2972 = vld [vmem:[#allocation6 + $0x70] sm:$0xf]
    %v2973 = vld [vmem:[#allocation6 + $0x74] sm:$0xf]
    %v2974 = vld [vmem:[#allocation6 + $0x78] sm:$0xf]
    %v2975 = vld [vmem:[#allocation6 + $0x7c] sm:$0xf]
    %v2976 = vld [vmem:[%s8] sm:$0x1]
    %v2978 = vlaneseq
    %v2979 = vshrl.u32 %v2978, 7
    %v2980 = vsub.s32 0, %v2979
    %v2981 = vrot.slane %v2976, %v2980
    %v3015 = vunpack.c.l.b16 %v2944
    %v3016 = vunpack.c.l.b16 %v2945
    %v3017 = vunpack.c.l.b16 %v2946
    %v3018 = vunpack.c.l.b16 %v2947
    %v3019 = vunpack.c.l.b16 %v2948
    %v3020 = vunpack.c.l.b16 %v2949
    %v3021 = vunpack.c.l.b16 %v2950
    %v3022 = vunpack.c.l.b16 %v2951
    %v3023 = vunpack.c.l.b16 %v2952
    %v3024 = vunpack.c.l.b16 %v2953
    %v3025 = vunpack.c.l.b16 %v2954
    %v3026 = vunpack.c.l.b16 %v2955
    %v3027 = vunpack.c.l.b16 %v2956
    %v3028 = vunpack.c.l.b16 %v2957
    %v3029 = vunpack.c.l.b16 %v2958
    %v3030 = vunpack.c.l.b16 %v2959
    %v3031 = vunpack.c.l.b16 %v2960
    %v3032 = vunpack.c.l.b16 %v2961
    %v3033 = vunpack.c.l.b16 %v2962
    %v3034 = vunpack.c.l.b16 %v2963
    %v3035 = vunpack.c.l.b16 %v2964
    %v3036 = vunpack.c.l.b16 %v2965
    %v3037 = vunpack.c.l.b16 %v2966
    %v3038 = vunpack.c.l.b16 %v2967
    %v3039 = vunpack.c.l.b16 %v2968
    %v3040 = vunpack.c.l.b16 %v2969
    %v3041 = vunpack.c.l.b16 %v2970
    %v3042 = vunpack.c.l.b16 %v2971
    %v3043 = vunpack.c.l.b16 %v2972
    %v3044 = vunpack.c.l.b16 %v2973
    %v3045 = vunpack.c.l.b16 %v2974
    %v3046 = vunpack.c.l.b16 %v2975
    %v3047 = vpack.c.b16 %v3016, %v3015
    %v3048 = vpack.c.b16 %v3018, %v3017
    %v3049 = vpack.c.b16 %v3020, %v3019
    %v3050 = vpack.c.b16 %v3022, %v3021
    %v3051 = vpack.c.b16 %v3024, %v3023
    %v3052 = vpack.c.b16 %v3026, %v3025
    %v3053 = vpack.c.b16 %v3028, %v3027
    %v3054 = vpack.c.b16 %v3030, %v3029
    %v3055 = vpack.c.b16 %v3032, %v3031
    %v3056 = vpack.c.b16 %v3034, %v3033
    %v3057 = vpack.c.b16 %v3036, %v3035
    %v3058 = vpack.c.b16 %v3038, %v3037
    %v3059 = vpack.c.b16 %v3040, %v3039
    %v3060 = vpack.c.b16 %v3042, %v3041
    %v3061 = vpack.c.b16 %v3044, %v3043
    %v3062 = vpack.c.b16 %v3046, %v3045
    %3079 = vmatprep.subr.bf16.mxu0 0
    %3080 = vmatpush1.bf16.msra.mxu0 %v3054
    %3081 = vmatprep.subr.bf16.mxu0 0
    %3082 = vmatpush1.bf16.msra.mxu0 %v3053
    %3083 = vmatprep.subr.bf16.mxu0 0
    %3084 = vmatpush1.bf16.msra.mxu0 %v3052
    %3085 = vmatprep.subr.bf16.mxu0 0
    %3086 = vmatpush1.bf16.msra.mxu0 %v3051
    %3087 = vmatprep.subr.bf16.mxu0 0
    %3088 = vmatpush1.bf16.msra.mxu0 %v3050
    %3089 = vmatprep.subr.bf16.mxu0 0
    %3090 = vmatpush1.bf16.msra.mxu0 %v3049
    %3091 = vmatprep.subr.bf16.mxu0 0
    %3092 = vmatpush1.bf16.msra.mxu0 %v3048
    %3093 = vmatprep.subr.bf16.mxu0 0
    %3094 = vmatpush1.bf16.msra.mxu0 %v3047
    %3095 = vmatprep.subr.bf16.mxu0 0
    %3096 = vmatpush2.bf16.msra.mxu0 %v3062
    %3097 = vmatprep.subr.bf16.mxu0 0
    %3098 = vmatpush2.bf16.msra.mxu0 %v3061
    %3099 = vmatprep.subr.bf16.mxu0 0
    %3100 = vmatpush2.bf16.msra.mxu0 %v3060
    %3101 = vmatprep.subr.bf16.mxu0 0
    %3102 = vmatpush2.bf16.msra.mxu0 %v3059
    %3103 = vmatprep.subr.bf16.mxu0 0
    %3104 = vmatpush2.bf16.msra.mxu0 %v3058
    %3105 = vmatprep.subr.bf16.mxu0 0
    %3106 = vmatpush2.bf16.msra.mxu0 %v3057
    %3107 = vmatprep.subr.bf16.mxu0 0
    %3108 = vmatpush2.bf16.msra.mxu0 %v3056
    %3109 = vmatprep.subr.bf16.mxu0 0
    %3110 = vmatpush2.bf16.msra.mxu0 %v3055
    %3111 = vmatprep.mubr.bf16.mxu0 %v2943
    %3112 = vmatmul.mubr.bf16.gmra.mxu0 %v2942
    %v3113 = vpop.f32.mrf.mxu0
    %v3114 = vadd.f32 %v2981, %v3113
    %v3115 = vpop.f32.mrf.mxu0
    %v3116 = vpop.f32.mrf.mxu0
    %v3117 = vpop.f32.mrf.mxu0
    %3118 = vdwg.mxu0
    %s3119 = scalar_lea.vmem %s9, 8
    %3120 = vst [vmem:[%s3119] sm:$0xff] %v3114
    // Predicated region
    $region50: #{rt_generator_forward.3} parent=1 // pred_check
      _
    $region51: #{rt_generator_forward.3} parent=1 // pred_check_branch
      %3122 = sbr.rel (0) target = $region53
    $region52: #{rt_generator_forward.3} parent=1 // pred_region
      _
    $region53: #{rt_generator_forward.3} parent=1 // pred_fallthru
      _
    // Predicated region
    $region54: #{rt_generator_forward.3} parent=1 // pred_check
      _
    $region55: #{rt_generator_forward.3} parent=1 // pred_check_branch
      %3124 = sbr.rel (0) target = $region57
    $region56: #{rt_generator_forward.3} parent=1 // pred_region
      _
    $region57: #{rt_generator_forward.3} parent=1 // pred_fallthru
      _
    %3125 = vsyncpa [#allocation3], 1
    %3126 = vsyncpa [#allocation5], 1

</llo_original>
